<compile_context>
chip_gen: v5e
topology: v5e:2x2
jax: 0.10.0
libtpu: 0.0.40
codegen_flags: <defaults>
</compile_context>

<pallas_src>
import functools

import jax
import jax.numpy as jnp
import numpy as np
from jax import lax
from jax.experimental import pallas as pl
from jax.experimental.pallas import tpu as pltpu

DILATIONS = (1, 2, 4, 8)


def _dblock_kernel(x_ref, w_ref, b_ref, m_ref, o_ref, *, C, W, HW, dilations):
    # x_ref : (1, C, HW)         one image, channels-first, spatial flattened
    # w_ref : (n_conv, 9, C, C)  w[i, dy*3+dx, cout, cin]
    # b_ref : (n_conv, C, 1)     per-conv bias (zero-initialized in Dblock)
    # m_ref : (n_conv, 9, 1, HW) zero-padding validity mask per (conv, tap)
    # o_ref : (1, C, HW)         out = x + sum_i relu(conv_i(...))
    a = x_ref[0]           # (C, HW) current activation (starts as x)
    total = a              # residual accumulator, carried in vregs

    for i, d in enumerate(dilations):
        psum = None
        for dy in range(3):
            for dx in range(3):
                tap = dy * 3 + dx
                # Flat source offset of dilated tap (dy, dx): row shift
                # (dy-1)*d and column shift (dx-1)*d in row-major H*W.
                s = (dy - 1) * d * W + (dx - 1) * d
                # shifted[p] = a[p + s]  (wrap-around values are masked off).
                t = a if s == 0 else pltpu.roll(a, shift=(-s) % HW, axis=1)
                if not (dy == 1 and dx == 1):
                    # Zero out positions whose source pixel falls in the
                    # zero-padding region (emulates padding = dilation).
                    t = t * m_ref[i, tap]
                contrib = jnp.dot(w_ref[i, tap], t,
                                  preferred_element_type=jnp.float32)
                psum = contrib if psum is None else psum + contrib
        y = jnp.maximum(psum + b_ref[i], 0.0)   # bias + ReLU
        total = total + y                       # residual sum
        a = y                                   # feed the next dilated conv

    o_ref[0] = total                            # single lane-dense store


def dblock_forward(x_nchw, weights_oihw, biases):
    """Dblock forward: chained 3x3 convs with dilation (1,2,4,8), padding =
    dilation, ReLU after each; output = x + d1 + d2 + d3 + d4.  NCHW in/out."""
    N, C, H, W = x_nchw.shape
    HW = H * W
    n_conv = len(weights_oihw)

    # NCHW -> (N, C, H*W): free reshape (no transpose / extra HBM pass).
    x = x_nchw.reshape(N, C, HW).astype(jnp.float32)

    # (Cout, Cin, 3, 3) -> (9, Cout, Cin): w[i, dy*3+dx] is the tap matrix.
    w = jnp.stack([jnp.transpose(wi, (2, 3, 0, 1)).reshape(9, C, C)
                   for wi in weights_oihw], axis=0).astype(jnp.float32)
    b = jnp.stack(biases, axis=0).reshape(n_conv, C, 1).astype(jnp.float32)

    # Host-precomputed masks: for each (dilation, tap), 1.0 where the dilated
    # source pixel lies inside the image, 0.0 where it falls in the padding.
    masks = np.zeros((n_conv, 9, 1, HW), np.float32)
    for ci, d in enumerate(DILATIONS):
        for dy in range(3):
            for dx in range(3):
                ii = np.arange(H)[:, None] + (dy - 1) * d
                jj = np.arange(W)[None, :] + (dx - 1) * d
                valid = (ii >= 0) & (ii < H) & (jj >= 0) & (jj < W)
                masks[ci, dy * 3 + dx, 0, :] = (
                    valid.astype(np.float32).reshape(-1))
    masks = jnp.asarray(masks)

    kern = functools.partial(_dblock_kernel, C=C, W=W, HW=HW,
                             dilations=DILATIONS)

    out = pl.pallas_call(
        kern,
        out_shape=jax.ShapeDtypeStruct((N, C, HW), jnp.float32),
        grid_spec=pltpu.PrefetchScalarGridSpec(
            num_scalar_prefetch=0,
            grid=(N,),
            in_specs=[
                pl.BlockSpec((1, C, HW), lambda n: (n, 0, 0)),
                pl.BlockSpec((n_conv, 9, C, C), lambda n: (0, 0, 0, 0)),
                pl.BlockSpec((n_conv, C, 1), lambda n: (0, 0, 0)),
                pl.BlockSpec((n_conv, 9, 1, HW), lambda n: (0, 0, 0, 0)),
            ],
            out_specs=pl.BlockSpec((1, C, HW), lambda n: (n, 0, 0)),
        ),
        compiler_params=pltpu.CompilerParams(
            dimension_semantics=("parallel",)),   # no cross-batch state
    )(x, w, b, masks)

    # (N, C, H*W) -> NCHW: free reshape.
    return out.reshape(N, C, H, W)


def _reference(x, weights, biases):
    """Plain-JAX reference replicating the PyTorch Dblock forward."""
    def conv_relu(a, w, b, d):
        y = lax.conv_general_dilated(
            a, w, window_strides=(1, 1), padding=((d, d), (d, d)),
            rhs_dilation=(d, d),
            dimension_numbers=("NCHW", "OIHW", "NCHW"))
        return jnp.maximum(y + b.reshape(1, -1, 1, 1), 0.0)

    d1 = conv_relu(x, weights[0], biases[0], 1)
    d2 = conv_relu(d1, weights[1], biases[1], 2)
    d3 = conv_relu(d2, weights[2], biases[2], 4)
    d4 = conv_relu(d3, weights[3], biases[3], 8)
    return x + d1 + d2 + d3 + d4


if __name__ == "__main__":
    N, C, H, W = 2, 4, 16, 16   # Dblock(channel=4)

    key = jax.random.PRNGKey(0)
    kx, *kws = jax.random.split(key, 1 + len(DILATIONS))
    x = jax.random.normal(kx, (N, C, H, W), dtype=jnp.float32)
    # Conv2d weights (OIHW); Dblock zero-initializes all conv biases.
    weights = [jax.random.normal(k, (C, C, 3, 3), dtype=jnp.float32) * 0.1
               for k in kws]
    biases = [jnp.zeros((C,), jnp.float32) for _ in range(len(DILATIONS))]

    out = dblock_forward(x, weights, biases)
    jax.block_until_ready(out)

    ref = _reference(x, weights, biases)
    np.testing.assert_allclose(np.asarray(out), np.asarray(ref),
                               rtol=1e-4, atol=1e-4)

    print("KERNEL_OK")
</pallas_src>

<mosaic_0001>
module attributes {stable_mosaic.version = 11 : i64} {
  func.func @_dblock_kernel(%arg0: i32, %arg1: memref<1x4x256xf32, #tpu.memory_space<vmem>>, %arg2: memref<4x9x4x4xf32, #tpu.memory_space<vmem>>, %arg3: memref<4x4x1xf32, #tpu.memory_space<vmem>>, %arg4: memref<4x9x1x256xf32, #tpu.memory_space<vmem>>, %arg5: memref<1x4x256xf32, #tpu.memory_space<vmem>>) attributes {dimension_semantics = [#tpu.dimension_semantics<parallel>], iteration_bounds = array<i64: 2>, scalar_prefetch = 0 : i64, scratch_operands = 0 : i64, tpu.core_type = #tpu.core_type<tc>, window_params = [{transform_indices = @transform_0, window_bounds = array<i64: 1, 4, 256>}, {pipeline_mode = #tpu.pipeline_mode<synchronous>, transform_indices = @transform_1, window_bounds = array<i64: 4, 9, 4, 4>}, {pipeline_mode = #tpu.pipeline_mode<synchronous>, transform_indices = @transform_2, window_bounds = array<i64: 4, 4, 1>}, {pipeline_mode = #tpu.pipeline_mode<synchronous>, transform_indices = @transform_3, window_bounds = array<i64: 4, 9, 1, 256>}, {transform_indices = @transform_4, window_bounds = array<i64: 1, 4, 256>}]} {
    %c0 = arith.constant 0 : index
    %c0_0 = arith.constant 0 : index
    %c0_1 = arith.constant 0 : index
    %0 = vector.load %arg1[%c0, %c0_0, %c0_1] : memref<1x4x256xf32, #tpu.memory_space<vmem>>, vector<1x4x256xf32>
    %1 = vector.shape_cast %0 : vector<1x4x256xf32> to vector<4x256xf32>
    %c17_i32 = arith.constant 17 : i32
    %2 = tpu.dynamic_rotate %1 by %c17_i32 dim 1 : vector<4x256xf32>, i32 -> vector<4x256xf32>
    %c0_2 = arith.constant 0 : index
    %c0_3 = arith.constant 0 : index
    %c0_4 = arith.constant 0 : index
    %c0_5 = arith.constant 0 : index
    %3 = vector.load %arg4[%c0_2, %c0_3, %c0_4, %c0_5] : memref<4x9x1x256xf32, #tpu.memory_space<vmem>>, vector<1x1x1x256xf32>
    %4 = vector.shape_cast %3 : vector<1x1x1x256xf32> to vector<1x256xf32>
    %5 = vector.broadcast %4 : vector<1x256xf32> to vector<4x256xf32>
    %6 = arith.mulf %2, %5 : vector<4x256xf32>
    %c0_6 = arith.constant 0 : index
    %c0_7 = arith.constant 0 : index
    %c0_8 = arith.constant 0 : index
    %c0_9 = arith.constant 0 : index
    %7 = vector.load %arg2[%c0_6, %c0_7, %c0_8, %c0_9] : memref<4x9x4x4xf32, #tpu.memory_space<vmem>>, vector<1x1x4x4xf32>
    %8 = vector.shape_cast %7 : vector<1x1x4x4xf32> to vector<4x4xf32>
    %cst = arith.constant dense<0.000000e+00> : vector<4x256xf32>
    %9 = tpu.matmul %8, %6, %cst {dimension_numbers = #tpu.dot_dimension_numbers<[1], [0], [0], [1], [0, 0, 1, 1], [], []>} : vector<4x4xf32>, vector<4x256xf32>, vector<4x256xf32> -> vector<4x256xf32>
    %c16_i32 = arith.constant 16 : i32
    %10 = tpu.dynamic_rotate %1 by %c16_i32 dim 1 : vector<4x256xf32>, i32 -> vector<4x256xf32>
    %c0_10 = arith.constant 0 : index
    %c1 = arith.constant 1 : index
    %c0_11 = arith.constant 0 : index
    %c0_12 = arith.constant 0 : index
    %11 = vector.load %arg4[%c0_10, %c1, %c0_11, %c0_12] : memref<4x9x1x256xf32, #tpu.memory_space<vmem>>, vector<1x1x1x256xf32>
    %12 = vector.shape_cast %11 : vector<1x1x1x256xf32> to vector<1x256xf32>
    %13 = vector.broadcast %12 : vector<1x256xf32> to vector<4x256xf32>
    %14 = arith.mulf %10, %13 : vector<4x256xf32>
    %c0_13 = arith.constant 0 : index
    %c1_14 = arith.constant 1 : index
    %c0_15 = arith.constant 0 : index
    %c0_16 = arith.constant 0 : index
    %15 = vector.load %arg2[%c0_13, %c1_14, %c0_15, %c0_16] : memref<4x9x4x4xf32, #tpu.memory_space<vmem>>, vector<1x1x4x4xf32>
    %16 = vector.shape_cast %15 : vector<1x1x4x4xf32> to vector<4x4xf32>
    %cst_17 = arith.constant dense<0.000000e+00> : vector<4x256xf32>
    %17 = tpu.matmul %16, %14, %cst_17 {dimension_numbers = #tpu.dot_dimension_numbers<[1], [0], [0], [1], [0, 0, 1, 1], [], []>} : vector<4x4xf32>, vector<4x256xf32>, vector<4x256xf32> -> vector<4x256xf32>
    %18 = arith.addf %9, %17 : vector<4x256xf32>
    %c15_i32 = arith.constant 15 : i32
    %19 = tpu.dynamic_rotate %1 by %c15_i32 dim 1 : vector<4x256xf32>, i32 -> vector<4x256xf32>
    %c0_18 = arith.constant 0 : index
    %c2 = arith.constant 2 : index
    %c0_19 = arith.constant 0 : index
    %c0_20 = arith.constant 0 : index
    %20 = vector.load %arg4[%c0_18, %c2, %c0_19, %c0_20] : memref<4x9x1x256xf32, #tpu.memory_space<vmem>>, vector<1x1x1x256xf32>
    %21 = vector.shape_cast %20 : vector<1x1x1x256xf32> to vector<1x256xf32>
    %22 = vector.broadcast %21 : vector<1x256xf32> to vector<4x256xf32>
    %23 = arith.mulf %19, %22 : vector<4x256xf32>
    %c0_21 = arith.constant 0 : index
    %c2_22 = arith.constant 2 : index
    %c0_23 = arith.constant 0 : index
    %c0_24 = arith.constant 0 : index
    %24 = vector.load %arg2[%c0_21, %c2_22, %c0_23, %c0_24] : memref<4x9x4x4xf32, #tpu.memory_space<vmem>>, vector<1x1x4x4xf32>
    %25 = vector.shape_cast %24 : vector<1x1x4x4xf32> to vector<4x4xf32>
    %cst_25 = arith.constant dense<0.000000e+00> : vector<4x256xf32>
    %26 = tpu.matmul %25, %23, %cst_25 {dimension_numbers = #tpu.dot_dimension_numbers<[1], [0], [0], [1], [0, 0, 1, 1], [], []>} : vector<4x4xf32>, vector<4x256xf32>, vector<4x256xf32> -> vector<4x256xf32>
    %27 = arith.addf %18, %26 : vector<4x256xf32>
    %c1_i32 = arith.constant 1 : i32
    %28 = tpu.dynamic_rotate %1 by %c1_i32 dim 1 : vector<4x256xf32>, i32 -> vector<4x256xf32>
    %c0_26 = arith.constant 0 : index
    %c3 = arith.constant 3 : index
    %c0_27 = arith.constant 0 : index
    %c0_28 = arith.constant 0 : index
    %29 = vector.load %arg4[%c0_26, %c3, %c0_27, %c0_28] : memref<4x9x1x256xf32, #tpu.memory_space<vmem>>, vector<1x1x1x256xf32>
    %30 = vector.shape_cast %29 : vector<1x1x1x256xf32> to vector<1x256xf32>
    %31 = vector.broadcast %30 : vector<1x256xf32> to vector<4x256xf32>
    %32 = arith.mulf %28, %31 : vector<4x256xf32>
    %c0_29 = arith.constant 0 : index
    %c3_30 = arith.constant 3 : index
    %c0_31 = arith.constant 0 : index
    %c0_32 = arith.constant 0 : index
    %33 = vector.load %arg2[%c0_29, %c3_30, %c0_31, %c0_32] : memref<4x9x4x4xf32, #tpu.memory_space<vmem>>, vector<1x1x4x4xf32>
    %34 = vector.shape_cast %33 : vector<1x1x4x4xf32> to vector<4x4xf32>
    %cst_33 = arith.constant dense<0.000000e+00> : vector<4x256xf32>
    %35 = tpu.matmul %34, %32, %cst_33 {dimension_numbers = #tpu.dot_dimension_numbers<[1], [0], [0], [1], [0, 0, 1, 1], [], []>} : vector<4x4xf32>, vector<4x256xf32>, vector<4x256xf32> -> vector<4x256xf32>
    %36 = arith.addf %27, %35 : vector<4x256xf32>
    %c0_34 = arith.constant 0 : index
    %c4 = arith.constant 4 : index
    %c0_35 = arith.constant 0 : index
    %c0_36 = arith.constant 0 : index
    %37 = vector.load %arg2[%c0_34, %c4, %c0_35, %c0_36] : memref<4x9x4x4xf32, #tpu.memory_space<vmem>>, vector<1x1x4x4xf32>
    %38 = vector.shape_cast %37 : vector<1x1x4x4xf32> to vector<4x4xf32>
    %cst_37 = arith.constant dense<0.000000e+00> : vector<4x256xf32>
    %39 = tpu.matmul %38, %1, %cst_37 {dimension_numbers = #tpu.dot_dimension_numbers<[1], [0], [0], [1], [0, 0, 1, 1], [], []>} : vector<4x4xf32>, vector<4x256xf32>, vector<4x256xf32> -> vector<4x256xf32>
    %40 = arith.addf %36, %39 : vector<4x256xf32>
    %c255_i32 = arith.constant 255 : i32
    %41 = tpu.dynamic_rotate %1 by %c255_i32 dim 1 : vector<4x256xf32>, i32 -> vector<4x256xf32>
    %c0_38 = arith.constant 0 : index
    %c5 = arith.constant 5 : index
    %c0_39 = arith.constant 0 : index
    %c0_40 = arith.constant 0 : index
    %42 = vector.load %arg4[%c0_38, %c5, %c0_39, %c0_40] : memref<4x9x1x256xf32, #tpu.memory_space<vmem>>, vector<1x1x1x256xf32>
    %43 = vector.shape_cast %42 : vector<1x1x1x256xf32> to vector<1x256xf32>
    %44 = vector.broadcast %43 : vector<1x256xf32> to vector<4x256xf32>
    %45 = arith.mulf %41, %44 : vector<4x256xf32>
    %c0_41 = arith.constant 0 : index
    %c5_42 = arith.constant 5 : index
    %c0_43 = arith.constant 0 : index
    %c0_44 = arith.constant 0 : index
    %46 = vector.load %arg2[%c0_41, %c5_42, %c0_43, %c0_44] : memref<4x9x4x4xf32, #tpu.memory_space<vmem>>, vector<1x1x4x4xf32>
    %47 = vector.shape_cast %46 : vector<1x1x4x4xf32> to vector<4x4xf32>
    %cst_45 = arith.constant dense<0.000000e+00> : vector<4x256xf32>
    %48 = tpu.matmul %47, %45, %cst_45 {dimension_numbers = #tpu.dot_dimension_numbers<[1], [0], [0], [1], [0, 0, 1, 1], [], []>} : vector<4x4xf32>, vector<4x256xf32>, vector<4x256xf32> -> vector<4x256xf32>
    %49 = arith.addf %40, %48 : vector<4x256xf32>
    %c241_i32 = arith.constant 241 : i32
    %50 = tpu.dynamic_rotate %1 by %c241_i32 dim 1 : vector<4x256xf32>, i32 -> vector<4x256xf32>
    %c0_46 = arith.constant 0 : index
    %c6 = arith.constant 6 : index
    %c0_47 = arith.constant 0 : index
    %c0_48 = arith.constant 0 : index
    %51 = vector.load %arg4[%c0_46, %c6, %c0_47, %c0_48] : memref<4x9x1x256xf32, #tpu.memory_space<vmem>>, vector<1x1x1x256xf32>
    %52 = vector.shape_cast %51 : vector<1x1x1x256xf32> to vector<1x256xf32>
    %53 = vector.broadcast %52 : vector<1x256xf32> to vector<4x256xf32>
    %54 = arith.mulf %50, %53 : vector<4x256xf32>
    %c0_49 = arith.constant 0 : index
    %c6_50 = arith.constant 6 : index
    %c0_51 = arith.constant 0 : index
    %c0_52 = arith.constant 0 : index
    %55 = vector.load %arg2[%c0_49, %c6_50, %c0_51, %c0_52] : memref<4x9x4x4xf32, #tpu.memory_space<vmem>>, vector<1x1x4x4xf32>
    %56 = vector.shape_cast %55 : vector<1x1x4x4xf32> to vector<4x4xf32>
    %cst_53 = arith.constant dense<0.000000e+00> : vector<4x256xf32>
    %57 = tpu.matmul %56, %54, %cst_53 {dimension_numbers = #tpu.dot_dimension_numbers<[1], [0], [0], [1], [0, 0, 1, 1], [], []>} : vector<4x4xf32>, vector<4x256xf32>, vector<4x256xf32> -> vector<4x256xf32>
    %58 = arith.addf %49, %57 : vector<4x256xf32>
    %c240_i32 = arith.constant 240 : i32
    %59 = tpu.dynamic_rotate %1 by %c240_i32 dim 1 : vector<4x256xf32>, i32 -> vector<4x256xf32>
    %c0_54 = arith.constant 0 : index
    %c7 = arith.constant 7 : index
    %c0_55 = arith.constant 0 : index
    %c0_56 = arith.constant 0 : index
    %60 = vector.load %arg4[%c0_54, %c7, %c0_55, %c0_56] : memref<4x9x1x256xf32, #tpu.memory_space<vmem>>, vector<1x1x1x256xf32>
    %61 = vector.shape_cast %60 : vector<1x1x1x256xf32> to vector<1x256xf32>
    %62 = vector.broadcast %61 : vector<1x256xf32> to vector<4x256xf32>
    %63 = arith.mulf %59, %62 : vector<4x256xf32>
    %c0_57 = arith.constant 0 : index
    %c7_58 = arith.constant 7 : index
    %c0_59 = arith.constant 0 : index
    %c0_60 = arith.constant 0 : index
    %64 = vector.load %arg2[%c0_57, %c7_58, %c0_59, %c0_60] : memref<4x9x4x4xf32, #tpu.memory_space<vmem>>, vector<1x1x4x4xf32>
    %65 = vector.shape_cast %64 : vector<1x1x4x4xf32> to vector<4x4xf32>
    %cst_61 = arith.constant dense<0.000000e+00> : vector<4x256xf32>
    %66 = tpu.matmul %65, %63, %cst_61 {dimension_numbers = #tpu.dot_dimension_numbers<[1], [0], [0], [1], [0, 0, 1, 1], [], []>} : vector<4x4xf32>, vector<4x256xf32>, vector<4x256xf32> -> vector<4x256xf32>
    %67 = arith.addf %58, %66 : vector<4x256xf32>
    %c239_i32 = arith.constant 239 : i32
    %68 = tpu.dynamic_rotate %1 by %c239_i32 dim 1 : vector<4x256xf32>, i32 -> vector<4x256xf32>
    %c0_62 = arith.constant 0 : index
    %c8 = arith.constant 8 : index
    %c0_63 = arith.constant 0 : index
    %c0_64 = arith.constant 0 : index
    %69 = vector.load %arg4[%c0_62, %c8, %c0_63, %c0_64] : memref<4x9x1x256xf32, #tpu.memory_space<vmem>>, vector<1x1x1x256xf32>
    %70 = vector.shape_cast %69 : vector<1x1x1x256xf32> to vector<1x256xf32>
    %71 = vector.broadcast %70 : vector<1x256xf32> to vector<4x256xf32>
    %72 = arith.mulf %68, %71 : vector<4x256xf32>
    %c0_65 = arith.constant 0 : index
    %c8_66 = arith.constant 8 : index
    %c0_67 = arith.constant 0 : index
    %c0_68 = arith.constant 0 : index
    %73 = vector.load %arg2[%c0_65, %c8_66, %c0_67, %c0_68] : memref<4x9x4x4xf32, #tpu.memory_space<vmem>>, vector<1x1x4x4xf32>
    %74 = vector.shape_cast %73 : vector<1x1x4x4xf32> to vector<4x4xf32>
    %cst_69 = arith.constant dense<0.000000e+00> : vector<4x256xf32>
    %75 = tpu.matmul %74, %72, %cst_69 {dimension_numbers = #tpu.dot_dimension_numbers<[1], [0], [0], [1], [0, 0, 1, 1], [], []>} : vector<4x4xf32>, vector<4x256xf32>, vector<4x256xf32> -> vector<4x256xf32>
    %76 = arith.addf %67, %75 : vector<4x256xf32>
    %c0_70 = arith.constant 0 : index
    %c0_71 = arith.constant 0 : index
    %c0_72 = arith.constant 0 : index
    %77 = vector.load %arg3[%c0_70, %c0_71, %c0_72] : memref<4x4x1xf32, #tpu.memory_space<vmem>>, vector<1x4x1xf32>
    %78 = vector.shape_cast %77 : vector<1x4x1xf32> to vector<4x1xf32>
    %79 = vector.broadcast %78 : vector<4x1xf32> to vector<4x256xf32>
    %80 = arith.addf %76, %79 : vector<4x256xf32>
    %cst_73 = arith.constant 0.000000e+00 : f32
    %81 = vector.broadcast %cst_73 : f32 to vector<4x256xf32>
    %82 = arith.maximumf %80, %81 : vector<4x256xf32>
    %83 = arith.addf %1, %82 : vector<4x256xf32>
    %c34_i32 = arith.constant 34 : i32
    %84 = tpu.dynamic_rotate %82 by %c34_i32 dim 1 : vector<4x256xf32>, i32 -> vector<4x256xf32>
    %c1_74 = arith.constant 1 : index
    %c0_75 = arith.constant 0 : index
    %c0_76 = arith.constant 0 : index
    %c0_77 = arith.constant 0 : index
    %85 = vector.load %arg4[%c1_74, %c0_75, %c0_76, %c0_77] : memref<4x9x1x256xf32, #tpu.memory_space<vmem>>, vector<1x1x1x256xf32>
    %86 = vector.shape_cast %85 : vector<1x1x1x256xf32> to vector<1x256xf32>
    %87 = vector.broadcast %86 : vector<1x256xf32> to vector<4x256xf32>
    %88 = arith.mulf %84, %87 : vector<4x256xf32>
    %c1_78 = arith.constant 1 : index
    %c0_79 = arith.constant 0 : index
    %c0_80 = arith.constant 0 : index
    %c0_81 = arith.constant 0 : index
    %89 = vector.load %arg2[%c1_78, %c0_79, %c0_80, %c0_81] : memref<4x9x4x4xf32, #tpu.memory_space<vmem>>, vector<1x1x4x4xf32>
    %90 = vector.shape_cast %89 : vector<1x1x4x4xf32> to vector<4x4xf32>
    %cst_82 = arith.constant dense<0.000000e+00> : vector<4x256xf32>
    %91 = tpu.matmul %90, %88, %cst_82 {dimension_numbers = #tpu.dot_dimension_numbers<[1], [0], [0], [1], [0, 0, 1, 1], [], []>} : vector<4x4xf32>, vector<4x256xf32>, vector<4x256xf32> -> vector<4x256xf32>
    %c32_i32 = arith.constant 32 : i32
    %92 = tpu.dynamic_rotate %82 by %c32_i32 dim 1 : vector<4x256xf32>, i32 -> vector<4x256xf32>
    %c1_83 = arith.constant 1 : index
    %c1_84 = arith.constant 1 : index
    %c0_85 = arith.constant 0 : index
    %c0_86 = arith.constant 0 : index
    %93 = vector.load %arg4[%c1_83, %c1_84, %c0_85, %c0_86] : memref<4x9x1x256xf32, #tpu.memory_space<vmem>>, vector<1x1x1x256xf32>
    %94 = vector.shape_cast %93 : vector<1x1x1x256xf32> to vector<1x256xf32>
    %95 = vector.broadcast %94 : vector<1x256xf32> to vector<4x256xf32>
    %96 = arith.mulf %92, %95 : vector<4x256xf32>
    %c1_87 = arith.constant 1 : index
    %c1_88 = arith.constant 1 : index
    %c0_89 = arith.constant 0 : index
    %c0_90 = arith.constant 0 : index
    %97 = vector.load %arg2[%c1_87, %c1_88, %c0_89, %c0_90] : memref<4x9x4x4xf32, #tpu.memory_space<vmem>>, vector<1x1x4x4xf32>
    %98 = vector.shape_cast %97 : vector<1x1x4x4xf32> to vector<4x4xf32>
    %cst_91 = arith.constant dense<0.000000e+00> : vector<4x256xf32>
    %99 = tpu.matmul %98, %96, %cst_91 {dimension_numbers = #tpu.dot_dimension_numbers<[1], [0], [0], [1], [0, 0, 1, 1], [], []>} : vector<4x4xf32>, vector<4x256xf32>, vector<4x256xf32> -> vector<4x256xf32>
    %100 = arith.addf %91, %99 : vector<4x256xf32>
    %c30_i32 = arith.constant 30 : i32
    %101 = tpu.dynamic_rotate %82 by %c30_i32 dim 1 : vector<4x256xf32>, i32 -> vector<4x256xf32>
    %c1_92 = arith.constant 1 : index
    %c2_93 = arith.constant 2 : index
    %c0_94 = arith.constant 0 : index
    %c0_95 = arith.constant 0 : index
    %102 = vector.load %arg4[%c1_92, %c2_93, %c0_94, %c0_95] : memref<4x9x1x256xf32, #tpu.memory_space<vmem>>, vector<1x1x1x256xf32>
    %103 = vector.shape_cast %102 : vector<1x1x1x256xf32> to vector<1x256xf32>
    %104 = vector.broadcast %103 : vector<1x256xf32> to vector<4x256xf32>
    %105 = arith.mulf %101, %104 : vector<4x256xf32>
    %c1_96 = arith.constant 1 : index
    %c2_97 = arith.constant 2 : index
    %c0_98 = arith.constant 0 : index
    %c0_99 = arith.constant 0 : index
    %106 = vector.load %arg2[%c1_96, %c2_97, %c0_98, %c0_99] : memref<4x9x4x4xf32, #tpu.memory_space<vmem>>, vector<1x1x4x4xf32>
    %107 = vector.shape_cast %106 : vector<1x1x4x4xf32> to vector<4x4xf32>
    %cst_100 = arith.constant dense<0.000000e+00> : vector<4x256xf32>
    %108 = tpu.matmul %107, %105, %cst_100 {dimension_numbers = #tpu.dot_dimension_numbers<[1], [0], [0], [1], [0, 0, 1, 1], [], []>} : vector<4x4xf32>, vector<4x256xf32>, vector<4x256xf32> -> vector<4x256xf32>
    %109 = arith.addf %100, %108 : vector<4x256xf32>
    %c2_i32 = arith.constant 2 : i32
    %110 = tpu.dynamic_rotate %82 by %c2_i32 dim 1 : vector<4x256xf32>, i32 -> vector<4x256xf32>
    %c1_101 = arith.constant 1 : index
    %c3_102 = arith.constant 3 : index
    %c0_103 = arith.constant 0 : index
    %c0_104 = arith.constant 0 : index
    %111 = vector.load %arg4[%c1_101, %c3_102, %c0_103, %c0_104] : memref<4x9x1x256xf32, #tpu.memory_space<vmem>>, vector<1x1x1x256xf32>
    %112 = vector.shape_cast %111 : vector<1x1x1x256xf32> to vector<1x256xf32>
    %113 = vector.broadcast %112 : vector<1x256xf32> to vector<4x256xf32>
    %114 = arith.mulf %110, %113 : vector<4x256xf32>
    %c1_105 = arith.constant 1 : index
    %c3_106 = arith.constant 3 : index
    %c0_107 = arith.constant 0 : index
    %c0_108 = arith.constant 0 : index
    %115 = vector.load %arg2[%c1_105, %c3_106, %c0_107, %c0_108] : memref<4x9x4x4xf32, #tpu.memory_space<vmem>>, vector<1x1x4x4xf32>
    %116 = vector.shape_cast %115 : vector<1x1x4x4xf32> to vector<4x4xf32>
    %cst_109 = arith.constant dense<0.000000e+00> : vector<4x256xf32>
    %117 = tpu.matmul %116, %114, %cst_109 {dimension_numbers = #tpu.dot_dimension_numbers<[1], [0], [0], [1], [0, 0, 1, 1], [], []>} : vector<4x4xf32>, vector<4x256xf32>, vector<4x256xf32> -> vector<4x256xf32>
    %118 = arith.addf %109, %117 : vector<4x256xf32>
    %c1_110 = arith.constant 1 : index
    %c4_111 = arith.constant 4 : index
    %c0_112 = arith.constant 0 : index
    %c0_113 = arith.constant 0 : index
    %119 = vector.load %arg2[%c1_110, %c4_111, %c0_112, %c0_113] : memref<4x9x4x4xf32, #tpu.memory_space<vmem>>, vector<1x1x4x4xf32>
    %120 = vector.shape_cast %119 : vector<1x1x4x4xf32> to vector<4x4xf32>
    %cst_114 = arith.constant dense<0.000000e+00> : vector<4x256xf32>
    %121 = tpu.matmul %120, %82, %cst_114 {dimension_numbers = #tpu.dot_dimension_numbers<[1], [0], [0], [1], [0, 0, 1, 1], [], []>} : vector<4x4xf32>, vector<4x256xf32>, vector<4x256xf32> -> vector<4x256xf32>
    %122 = arith.addf %118, %121 : vector<4x256xf32>
    %c254_i32 = arith.constant 254 : i32
    %123 = tpu.dynamic_rotate %82 by %c254_i32 dim 1 : vector<4x256xf32>, i32 -> vector<4x256xf32>
    %c1_115 = arith.constant 1 : index
    %c5_116 = arith.constant 5 : index
    %c0_117 = arith.constant 0 : index
    %c0_118 = arith.constant 0 : index
    %124 = vector.load %arg4[%c1_115, %c5_116, %c0_117, %c0_118] : memref<4x9x1x256xf32, #tpu.memory_space<vmem>>, vector<1x1x1x256xf32>
    %125 = vector.shape_cast %124 : vector<1x1x1x256xf32> to vector<1x256xf32>
    %126 = vector.broadcast %125 : vector<1x256xf32> to vector<4x256xf32>
    %127 = arith.mulf %123, %126 : vector<4x256xf32>
    %c1_119 = arith.constant 1 : index
    %c5_120 = arith.constant 5 : index
    %c0_121 = arith.constant 0 : index
    %c0_122 = arith.constant 0 : index
    %128 = vector.load %arg2[%c1_119, %c5_120, %c0_121, %c0_122] : memref<4x9x4x4xf32, #tpu.memory_space<vmem>>, vector<1x1x4x4xf32>
    %129 = vector.shape_cast %128 : vector<1x1x4x4xf32> to vector<4x4xf32>
    %cst_123 = arith.constant dense<0.000000e+00> : vector<4x256xf32>
    %130 = tpu.matmul %129, %127, %cst_123 {dimension_numbers = #tpu.dot_dimension_numbers<[1], [0], [0], [1], [0, 0, 1, 1], [], []>} : vector<4x4xf32>, vector<4x256xf32>, vector<4x256xf32> -> vector<4x256xf32>
    %131 = arith.addf %122, %130 : vector<4x256xf32>
    %c226_i32 = arith.constant 226 : i32
    %132 = tpu.dynamic_rotate %82 by %c226_i32 dim 1 : vector<4x256xf32>, i32 -> vector<4x256xf32>
    %c1_124 = arith.constant 1 : index
    %c6_125 = arith.constant 6 : index
    %c0_126 = arith.constant 0 : index
    %c0_127 = arith.constant 0 : index
    %133 = vector.load %arg4[%c1_124, %c6_125, %c0_126, %c0_127] : memref<4x9x1x256xf32, #tpu.memory_space<vmem>>, vector<1x1x1x256xf32>
    %134 = vector.shape_cast %133 : vector<1x1x1x256xf32> to vector<1x256xf32>
    %135 = vector.broadcast %134 : vector<1x256xf32> to vector<4x256xf32>
    %136 = arith.mulf %132, %135 : vector<4x256xf32>
    %c1_128 = arith.constant 1 : index
    %c6_129 = arith.constant 6 : index
    %c0_130 = arith.constant 0 : index
    %c0_131 = arith.constant 0 : index
    %137 = vector.load %arg2[%c1_128, %c6_129, %c0_130, %c0_131] : memref<4x9x4x4xf32, #tpu.memory_space<vmem>>, vector<1x1x4x4xf32>
    %138 = vector.shape_cast %137 : vector<1x1x4x4xf32> to vector<4x4xf32>
    %cst_132 = arith.constant dense<0.000000e+00> : vector<4x256xf32>
    %139 = tpu.matmul %138, %136, %cst_132 {dimension_numbers = #tpu.dot_dimension_numbers<[1], [0], [0], [1], [0, 0, 1, 1], [], []>} : vector<4x4xf32>, vector<4x256xf32>, vector<4x256xf32> -> vector<4x256xf32>
    %140 = arith.addf %131, %139 : vector<4x256xf32>
    %c224_i32 = arith.constant 224 : i32
    %141 = tpu.dynamic_rotate %82 by %c224_i32 dim 1 : vector<4x256xf32>, i32 -> vector<4x256xf32>
    %c1_133 = arith.constant 1 : index
    %c7_134 = arith.constant 7 : index
    %c0_135 = arith.constant 0 : index
    %c0_136 = arith.constant 0 : index
    %142 = vector.load %arg4[%c1_133, %c7_134, %c0_135, %c0_136] : memref<4x9x1x256xf32, #tpu.memory_space<vmem>>, vector<1x1x1x256xf32>
    %143 = vector.shape_cast %142 : vector<1x1x1x256xf32> to vector<1x256xf32>
    %144 = vector.broadcast %143 : vector<1x256xf32> to vector<4x256xf32>
    %145 = arith.mulf %141, %144 : vector<4x256xf32>
    %c1_137 = arith.constant 1 : index
    %c7_138 = arith.constant 7 : index
    %c0_139 = arith.constant 0 : index
    %c0_140 = arith.constant 0 : index
    %146 = vector.load %arg2[%c1_137, %c7_138, %c0_139, %c0_140] : memref<4x9x4x4xf32, #tpu.memory_space<vmem>>, vector<1x1x4x4xf32>
    %147 = vector.shape_cast %146 : vector<1x1x4x4xf32> to vector<4x4xf32>
    %cst_141 = arith.constant dense<0.000000e+00> : vector<4x256xf32>
    %148 = tpu.matmul %147, %145, %cst_141 {dimension_numbers = #tpu.dot_dimension_numbers<[1], [0], [0], [1], [0, 0, 1, 1], [], []>} : vector<4x4xf32>, vector<4x256xf32>, vector<4x256xf32> -> vector<4x256xf32>
    %149 = arith.addf %140, %148 : vector<4x256xf32>
    %c222_i32 = arith.constant 222 : i32
    %150 = tpu.dynamic_rotate %82 by %c222_i32 dim 1 : vector<4x256xf32>, i32 -> vector<4x256xf32>
    %c1_142 = arith.constant 1 : index
    %c8_143 = arith.constant 8 : index
    %c0_144 = arith.constant 0 : index
    %c0_145 = arith.constant 0 : index
    %151 = vector.load %arg4[%c1_142, %c8_143, %c0_144, %c0_145] : memref<4x9x1x256xf32, #tpu.memory_space<vmem>>, vector<1x1x1x256xf32>
    %152 = vector.shape_cast %151 : vector<1x1x1x256xf32> to vector<1x256xf32>
    %153 = vector.broadcast %152 : vector<1x256xf32> to vector<4x256xf32>
    %154 = arith.mulf %150, %153 : vector<4x256xf32>
    %c1_146 = arith.constant 1 : index
    %c8_147 = arith.constant 8 : index
    %c0_148 = arith.constant 0 : index
    %c0_149 = arith.constant 0 : index
    %155 = vector.load %arg2[%c1_146, %c8_147, %c0_148, %c0_149] : memref<4x9x4x4xf32, #tpu.memory_space<vmem>>, vector<1x1x4x4xf32>
    %156 = vector.shape_cast %155 : vector<1x1x4x4xf32> to vector<4x4xf32>
    %cst_150 = arith.constant dense<0.000000e+00> : vector<4x256xf32>
    %157 = tpu.matmul %156, %154, %cst_150 {dimension_numbers = #tpu.dot_dimension_numbers<[1], [0], [0], [1], [0, 0, 1, 1], [], []>} : vector<4x4xf32>, vector<4x256xf32>, vector<4x256xf32> -> vector<4x256xf32>
    %158 = arith.addf %149, %157 : vector<4x256xf32>
    %c1_151 = arith.constant 1 : index
    %c0_152 = arith.constant 0 : index
    %c0_153 = arith.constant 0 : index
    %159 = vector.load %arg3[%c1_151, %c0_152, %c0_153] : memref<4x4x1xf32, #tpu.memory_space<vmem>>, vector<1x4x1xf32>
    %160 = vector.shape_cast %159 : vector<1x4x1xf32> to vector<4x1xf32>
    %161 = vector.broadcast %160 : vector<4x1xf32> to vector<4x256xf32>
    %162 = arith.addf %158, %161 : vector<4x256xf32>
    %cst_154 = arith.constant 0.000000e+00 : f32
    %163 = vector.broadcast %cst_154 : f32 to vector<4x256xf32>
    %164 = arith.maximumf %162, %163 : vector<4x256xf32>
    %165 = arith.addf %83, %164 : vector<4x256xf32>
    %c68_i32 = arith.constant 68 : i32
    %166 = tpu.dynamic_rotate %164 by %c68_i32 dim 1 : vector<4x256xf32>, i32 -> vector<4x256xf32>
    %c2_155 = arith.constant 2 : index
    %c0_156 = arith.constant 0 : index
    %c0_157 = arith.constant 0 : index
    %c0_158 = arith.constant 0 : index
    %167 = vector.load %arg4[%c2_155, %c0_156, %c0_157, %c0_158] : memref<4x9x1x256xf32, #tpu.memory_space<vmem>>, vector<1x1x1x256xf32>
    %168 = vector.shape_cast %167 : vector<1x1x1x256xf32> to vector<1x256xf32>
    %169 = vector.broadcast %168 : vector<1x256xf32> to vector<4x256xf32>
    %170 = arith.mulf %166, %169 : vector<4x256xf32>
    %c2_159 = arith.constant 2 : index
    %c0_160 = arith.constant 0 : index
    %c0_161 = arith.constant 0 : index
    %c0_162 = arith.constant 0 : index
    %171 = vector.load %arg2[%c2_159, %c0_160, %c0_161, %c0_162] : memref<4x9x4x4xf32, #tpu.memory_space<vmem>>, vector<1x1x4x4xf32>
    %172 = vector.shape_cast %171 : vector<1x1x4x4xf32> to vector<4x4xf32>
    %cst_163 = arith.constant dense<0.000000e+00> : vector<4x256xf32>
    %173 = tpu.matmul %172, %170, %cst_163 {dimension_numbers = #tpu.dot_dimension_numbers<[1], [0], [0], [1], [0, 0, 1, 1], [], []>} : vector<4x4xf32>, vector<4x256xf32>, vector<4x256xf32> -> vector<4x256xf32>
    %c64_i32 = arith.constant 64 : i32
    %174 = tpu.dynamic_rotate %164 by %c64_i32 dim 1 : vector<4x256xf32>, i32 -> vector<4x256xf32>
    %c2_164 = arith.constant 2 : index
    %c1_165 = arith.constant 1 : index
    %c0_166 = arith.constant 0 : index
    %c0_167 = arith.constant 0 : index
    %175 = vector.load %arg4[%c2_164, %c1_165, %c0_166, %c0_167] : memref<4x9x1x256xf32, #tpu.memory_space<vmem>>, vector<1x1x1x256xf32>
    %176 = vector.shape_cast %175 : vector<1x1x1x256xf32> to vector<1x256xf32>
    %177 = vector.broadcast %176 : vector<1x256xf32> to vector<4x256xf32>
    %178 = arith.mulf %174, %177 : vector<4x256xf32>
    %c2_168 = arith.constant 2 : index
    %c1_169 = arith.constant 1 : index
    %c0_170 = arith.constant 0 : index
    %c0_171 = arith.constant 0 : index
    %179 = vector.load %arg2[%c2_168, %c1_169, %c0_170, %c0_171] : memref<4x9x4x4xf32, #tpu.memory_space<vmem>>, vector<1x1x4x4xf32>
    %180 = vector.shape_cast %179 : vector<1x1x4x4xf32> to vector<4x4xf32>
    %cst_172 = arith.constant dense<0.000000e+00> : vector<4x256xf32>
    %181 = tpu.matmul %180, %178, %cst_172 {dimension_numbers = #tpu.dot_dimension_numbers<[1], [0], [0], [1], [0, 0, 1, 1], [], []>} : vector<4x4xf32>, vector<4x256xf32>, vector<4x256xf32> -> vector<4x256xf32>
    %182 = arith.addf %173, %181 : vector<4x256xf32>
    %c60_i32 = arith.constant 60 : i32
    %183 = tpu.dynamic_rotate %164 by %c60_i32 dim 1 : vector<4x256xf32>, i32 -> vector<4x256xf32>
    %c2_173 = arith.constant 2 : index
    %c2_174 = arith.constant 2 : index
    %c0_175 = arith.constant 0 : index
    %c0_176 = arith.constant 0 : index
    %184 = vector.load %arg4[%c2_173, %c2_174, %c0_175, %c0_176] : memref<4x9x1x256xf32, #tpu.memory_space<vmem>>, vector<1x1x1x256xf32>
    %185 = vector.shape_cast %184 : vector<1x1x1x256xf32> to vector<1x256xf32>
    %186 = vector.broadcast %185 : vector<1x256xf32> to vector<4x256xf32>
    %187 = arith.mulf %183, %186 : vector<4x256xf32>
    %c2_177 = arith.constant 2 : index
    %c2_178 = arith.constant 2 : index
    %c0_179 = arith.constant 0 : index
    %c0_180 = arith.constant 0 : index
    %188 = vector.load %arg2[%c2_177, %c2_178, %c0_179, %c0_180] : memref<4x9x4x4xf32, #tpu.memory_space<vmem>>, vector<1x1x4x4xf32>
    %189 = vector.shape_cast %188 : vector<1x1x4x4xf32> to vector<4x4xf32>
    %cst_181 = arith.constant dense<0.000000e+00> : vector<4x256xf32>
    %190 = tpu.matmul %189, %187, %cst_181 {dimension_numbers = #tpu.dot_dimension_numbers<[1], [0], [0], [1], [0, 0, 1, 1], [], []>} : vector<4x4xf32>, vector<4x256xf32>, vector<4x256xf32> -> vector<4x256xf32>
    %191 = arith.addf %182, %190 : vector<4x256xf32>
    %c4_i32 = arith.constant 4 : i32
    %192 = tpu.dynamic_rotate %164 by %c4_i32 dim 1 : vector<4x256xf32>, i32 -> vector<4x256xf32>
    %c2_182 = arith.constant 2 : index
    %c3_183 = arith.constant 3 : index
    %c0_184 = arith.constant 0 : index
    %c0_185 = arith.constant 0 : index
    %193 = vector.load %arg4[%c2_182, %c3_183, %c0_184, %c0_185] : memref<4x9x1x256xf32, #tpu.memory_space<vmem>>, vector<1x1x1x256xf32>
    %194 = vector.shape_cast %193 : vector<1x1x1x256xf32> to vector<1x256xf32>
    %195 = vector.broadcast %194 : vector<1x256xf32> to vector<4x256xf32>
    %196 = arith.mulf %192, %195 : vector<4x256xf32>
    %c2_186 = arith.constant 2 : index
    %c3_187 = arith.constant 3 : index
    %c0_188 = arith.constant 0 : index
    %c0_189 = arith.constant 0 : index
    %197 = vector.load %arg2[%c2_186, %c3_187, %c0_188, %c0_189] : memref<4x9x4x4xf32, #tpu.memory_space<vmem>>, vector<1x1x4x4xf32>
    %198 = vector.shape_cast %197 : vector<1x1x4x4xf32> to vector<4x4xf32>
    %cst_190 = arith.constant dense<0.000000e+00> : vector<4x256xf32>
    %199 = tpu.matmul %198, %196, %cst_190 {dimension_numbers = #tpu.dot_dimension_numbers<[1], [0], [0], [1], [0, 0, 1, 1], [], []>} : vector<4x4xf32>, vector<4x256xf32>, vector<4x256xf32> -> vector<4x256xf32>
    %200 = arith.addf %191, %199 : vector<4x256xf32>
    %c2_191 = arith.constant 2 : index
    %c4_192 = arith.constant 4 : index
    %c0_193 = arith.constant 0 : index
    %c0_194 = arith.constant 0 : index
    %201 = vector.load %arg2[%c2_191, %c4_192, %c0_193, %c0_194] : memref<4x9x4x4xf32, #tpu.memory_space<vmem>>, vector<1x1x4x4xf32>
    %202 = vector.shape_cast %201 : vector<1x1x4x4xf32> to vector<4x4xf32>
    %cst_195 = arith.constant dense<0.000000e+00> : vector<4x256xf32>
    %203 = tpu.matmul %202, %164, %cst_195 {dimension_numbers = #tpu.dot_dimension_numbers<[1], [0], [0], [1], [0, 0, 1, 1], [], []>} : vector<4x4xf32>, vector<4x256xf32>, vector<4x256xf32> -> vector<4x256xf32>
    %204 = arith.addf %200, %203 : vector<4x256xf32>
    %c252_i32 = arith.constant 252 : i32
    %205 = tpu.dynamic_rotate %164 by %c252_i32 dim 1 : vector<4x256xf32>, i32 -> vector<4x256xf32>
    %c2_196 = arith.constant 2 : index
    %c5_197 = arith.constant 5 : index
    %c0_198 = arith.constant 0 : index
    %c0_199 = arith.constant 0 : index
    %206 = vector.load %arg4[%c2_196, %c5_197, %c0_198, %c0_199] : memref<4x9x1x256xf32, #tpu.memory_space<vmem>>, vector<1x1x1x256xf32>
    %207 = vector.shape_cast %206 : vector<1x1x1x256xf32> to vector<1x256xf32>
    %208 = vector.broadcast %207 : vector<1x256xf32> to vector<4x256xf32>
    %209 = arith.mulf %205, %208 : vector<4x256xf32>
    %c2_200 = arith.constant 2 : index
    %c5_201 = arith.constant 5 : index
    %c0_202 = arith.constant 0 : index
    %c0_203 = arith.constant 0 : index
    %210 = vector.load %arg2[%c2_200, %c5_201, %c0_202, %c0_203] : memref<4x9x4x4xf32, #tpu.memory_space<vmem>>, vector<1x1x4x4xf32>
    %211 = vector.shape_cast %210 : vector<1x1x4x4xf32> to vector<4x4xf32>
    %cst_204 = arith.constant dense<0.000000e+00> : vector<4x256xf32>
    %212 = tpu.matmul %211, %209, %cst_204 {dimension_numbers = #tpu.dot_dimension_numbers<[1], [0], [0], [1], [0, 0, 1, 1], [], []>} : vector<4x4xf32>, vector<4x256xf32>, vector<4x256xf32> -> vector<4x256xf32>
    %213 = arith.addf %204, %212 : vector<4x256xf32>
    %c196_i32 = arith.constant 196 : i32
    %214 = tpu.dynamic_rotate %164 by %c196_i32 dim 1 : vector<4x256xf32>, i32 -> vector<4x256xf32>
    %c2_205 = arith.constant 2 : index
    %c6_206 = arith.constant 6 : index
    %c0_207 = arith.constant 0 : index
    %c0_208 = arith.constant 0 : index
    %215 = vector.load %arg4[%c2_205, %c6_206, %c0_207, %c0_208] : memref<4x9x1x256xf32, #tpu.memory_space<vmem>>, vector<1x1x1x256xf32>
    %216 = vector.shape_cast %215 : vector<1x1x1x256xf32> to vector<1x256xf32>
    %217 = vector.broadcast %216 : vector<1x256xf32> to vector<4x256xf32>
    %218 = arith.mulf %214, %217 : vector<4x256xf32>
    %c2_209 = arith.constant 2 : index
    %c6_210 = arith.constant 6 : index
    %c0_211 = arith.constant 0 : index
    %c0_212 = arith.constant 0 : index
    %219 = vector.load %arg2[%c2_209, %c6_210, %c0_211, %c0_212] : memref<4x9x4x4xf32, #tpu.memory_space<vmem>>, vector<1x1x4x4xf32>
    %220 = vector.shape_cast %219 : vector<1x1x4x4xf32> to vector<4x4xf32>
    %cst_213 = arith.constant dense<0.000000e+00> : vector<4x256xf32>
    %221 = tpu.matmul %220, %218, %cst_213 {dimension_numbers = #tpu.dot_dimension_numbers<[1], [0], [0], [1], [0, 0, 1, 1], [], []>} : vector<4x4xf32>, vector<4x256xf32>, vector<4x256xf32> -> vector<4x256xf32>
    %222 = arith.addf %213, %221 : vector<4x256xf32>
    %c192_i32 = arith.constant 192 : i32
    %223 = tpu.dynamic_rotate %164 by %c192_i32 dim 1 : vector<4x256xf32>, i32 -> vector<4x256xf32>
    %c2_214 = arith.constant 2 : index
    %c7_215 = arith.constant 7 : index
    %c0_216 = arith.constant 0 : index
    %c0_217 = arith.constant 0 : index
    %224 = vector.load %arg4[%c2_214, %c7_215, %c0_216, %c0_217] : memref<4x9x1x256xf32, #tpu.memory_space<vmem>>, vector<1x1x1x256xf32>
    %225 = vector.shape_cast %224 : vector<1x1x1x256xf32> to vector<1x256xf32>
    %226 = vector.broadcast %225 : vector<1x256xf32> to vector<4x256xf32>
    %227 = arith.mulf %223, %226 : vector<4x256xf32>
    %c2_218 = arith.constant 2 : index
    %c7_219 = arith.constant 7 : index
    %c0_220 = arith.constant 0 : index
    %c0_221 = arith.constant 0 : index
    %228 = vector.load %arg2[%c2_218, %c7_219, %c0_220, %c0_221] : memref<4x9x4x4xf32, #tpu.memory_space<vmem>>, vector<1x1x4x4xf32>
    %229 = vector.shape_cast %228 : vector<1x1x4x4xf32> to vector<4x4xf32>
    %cst_222 = arith.constant dense<0.000000e+00> : vector<4x256xf32>
    %230 = tpu.matmul %229, %227, %cst_222 {dimension_numbers = #tpu.dot_dimension_numbers<[1], [0], [0], [1], [0, 0, 1, 1], [], []>} : vector<4x4xf32>, vector<4x256xf32>, vector<4x256xf32> -> vector<4x256xf32>
    %231 = arith.addf %222, %230 : vector<4x256xf32>
    %c188_i32 = arith.constant 188 : i32
    %232 = tpu.dynamic_rotate %164 by %c188_i32 dim 1 : vector<4x256xf32>, i32 -> vector<4x256xf32>
    %c2_223 = arith.constant 2 : index
    %c8_224 = arith.constant 8 : index
    %c0_225 = arith.constant 0 : index
    %c0_226 = arith.constant 0 : index
    %233 = vector.load %arg4[%c2_223, %c8_224, %c0_225, %c0_226] : memref<4x9x1x256xf32, #tpu.memory_space<vmem>>, vector<1x1x1x256xf32>
    %234 = vector.shape_cast %233 : vector<1x1x1x256xf32> to vector<1x256xf32>
    %235 = vector.broadcast %234 : vector<1x256xf32> to vector<4x256xf32>
    %236 = arith.mulf %232, %235 : vector<4x256xf32>
    %c2_227 = arith.constant 2 : index
    %c8_228 = arith.constant 8 : index
    %c0_229 = arith.constant 0 : index
    %c0_230 = arith.constant 0 : index
    %237 = vector.load %arg2[%c2_227, %c8_228, %c0_229, %c0_230] : memref<4x9x4x4xf32, #tpu.memory_space<vmem>>, vector<1x1x4x4xf32>
    %238 = vector.shape_cast %237 : vector<1x1x4x4xf32> to vector<4x4xf32>
    %cst_231 = arith.constant dense<0.000000e+00> : vector<4x256xf32>
    %239 = tpu.matmul %238, %236, %cst_231 {dimension_numbers = #tpu.dot_dimension_numbers<[1], [0], [0], [1], [0, 0, 1, 1], [], []>} : vector<4x4xf32>, vector<4x256xf32>, vector<4x256xf32> -> vector<4x256xf32>
    %240 = arith.addf %231, %239 : vector<4x256xf32>
    %c2_232 = arith.constant 2 : index
    %c0_233 = arith.constant 0 : index
    %c0_234 = arith.constant 0 : index
    %241 = vector.load %arg3[%c2_232, %c0_233, %c0_234] : memref<4x4x1xf32, #tpu.memory_space<vmem>>, vector<1x4x1xf32>
    %242 = vector.shape_cast %241 : vector<1x4x1xf32> to vector<4x1xf32>
    %243 = vector.broadcast %242 : vector<4x1xf32> to vector<4x256xf32>
    %244 = arith.addf %240, %243 : vector<4x256xf32>
    %cst_235 = arith.constant 0.000000e+00 : f32
    %245 = vector.broadcast %cst_235 : f32 to vector<4x256xf32>
    %246 = arith.maximumf %244, %245 : vector<4x256xf32>
    %247 = arith.addf %165, %246 : vector<4x256xf32>
    %c136_i32 = arith.constant 136 : i32
    %248 = tpu.dynamic_rotate %246 by %c136_i32 dim 1 : vector<4x256xf32>, i32 -> vector<4x256xf32>
    %c3_236 = arith.constant 3 : index
    %c0_237 = arith.constant 0 : index
    %c0_238 = arith.constant 0 : index
    %c0_239 = arith.constant 0 : index
    %249 = vector.load %arg4[%c3_236, %c0_237, %c0_238, %c0_239] : memref<4x9x1x256xf32, #tpu.memory_space<vmem>>, vector<1x1x1x256xf32>
    %250 = vector.shape_cast %249 : vector<1x1x1x256xf32> to vector<1x256xf32>
    %251 = vector.broadcast %250 : vector<1x256xf32> to vector<4x256xf32>
    %252 = arith.mulf %248, %251 : vector<4x256xf32>
    %c3_240 = arith.constant 3 : index
    %c0_241 = arith.constant 0 : index
    %c0_242 = arith.constant 0 : index
    %c0_243 = arith.constant 0 : index
    %253 = vector.load %arg2[%c3_240, %c0_241, %c0_242, %c0_243] : memref<4x9x4x4xf32, #tpu.memory_space<vmem>>, vector<1x1x4x4xf32>
    %254 = vector.shape_cast %253 : vector<1x1x4x4xf32> to vector<4x4xf32>
    %cst_244 = arith.constant dense<0.000000e+00> : vector<4x256xf32>
    %255 = tpu.matmul %254, %252, %cst_244 {dimension_numbers = #tpu.dot_dimension_numbers<[1], [0], [0], [1], [0, 0, 1, 1], [], []>} : vector<4x4xf32>, vector<4x256xf32>, vector<4x256xf32> -> vector<4x256xf32>
    %c128_i32 = arith.constant 128 : i32
    %256 = tpu.dynamic_rotate %246 by %c128_i32 dim 1 : vector<4x256xf32>, i32 -> vector<4x256xf32>
    %c3_245 = arith.constant 3 : index
    %c1_246 = arith.constant 1 : index
    %c0_247 = arith.constant 0 : index
    %c0_248 = arith.constant 0 : index
    %257 = vector.load %arg4[%c3_245, %c1_246, %c0_247, %c0_248] : memref<4x9x1x256xf32, #tpu.memory_space<vmem>>, vector<1x1x1x256xf32>
    %258 = vector.shape_cast %257 : vector<1x1x1x256xf32> to vector<1x256xf32>
    %259 = vector.broadcast %258 : vector<1x256xf32> to vector<4x256xf32>
    %260 = arith.mulf %256, %259 : vector<4x256xf32>
    %c3_249 = arith.constant 3 : index
    %c1_250 = arith.constant 1 : index
    %c0_251 = arith.constant 0 : index
    %c0_252 = arith.constant 0 : index
    %261 = vector.load %arg2[%c3_249, %c1_250, %c0_251, %c0_252] : memref<4x9x4x4xf32, #tpu.memory_space<vmem>>, vector<1x1x4x4xf32>
    %262 = vector.shape_cast %261 : vector<1x1x4x4xf32> to vector<4x4xf32>
    %cst_253 = arith.constant dense<0.000000e+00> : vector<4x256xf32>
    %263 = tpu.matmul %262, %260, %cst_253 {dimension_numbers = #tpu.dot_dimension_numbers<[1], [0], [0], [1], [0, 0, 1, 1], [], []>} : vector<4x4xf32>, vector<4x256xf32>, vector<4x256xf32> -> vector<4x256xf32>
    %264 = arith.addf %255, %263 : vector<4x256xf32>
    %c120_i32 = arith.constant 120 : i32
    %265 = tpu.dynamic_rotate %246 by %c120_i32 dim 1 : vector<4x256xf32>, i32 -> vector<4x256xf32>
    %c3_254 = arith.constant 3 : index
    %c2_255 = arith.constant 2 : index
    %c0_256 = arith.constant 0 : index
    %c0_257 = arith.constant 0 : index
    %266 = vector.load %arg4[%c3_254, %c2_255, %c0_256, %c0_257] : memref<4x9x1x256xf32, #tpu.memory_space<vmem>>, vector<1x1x1x256xf32>
    %267 = vector.shape_cast %266 : vector<1x1x1x256xf32> to vector<1x256xf32>
    %268 = vector.broadcast %267 : vector<1x256xf32> to vector<4x256xf32>
    %269 = arith.mulf %265, %268 : vector<4x256xf32>
    %c3_258 = arith.constant 3 : index
    %c2_259 = arith.constant 2 : index
    %c0_260 = arith.constant 0 : index
    %c0_261 = arith.constant 0 : index
    %270 = vector.load %arg2[%c3_258, %c2_259, %c0_260, %c0_261] : memref<4x9x4x4xf32, #tpu.memory_space<vmem>>, vector<1x1x4x4xf32>
    %271 = vector.shape_cast %270 : vector<1x1x4x4xf32> to vector<4x4xf32>
    %cst_262 = arith.constant dense<0.000000e+00> : vector<4x256xf32>
    %272 = tpu.matmul %271, %269, %cst_262 {dimension_numbers = #tpu.dot_dimension_numbers<[1], [0], [0], [1], [0, 0, 1, 1], [], []>} : vector<4x4xf32>, vector<4x256xf32>, vector<4x256xf32> -> vector<4x256xf32>
    %273 = arith.addf %264, %272 : vector<4x256xf32>
    %c8_i32 = arith.constant 8 : i32
    %274 = tpu.dynamic_rotate %246 by %c8_i32 dim 1 : vector<4x256xf32>, i32 -> vector<4x256xf32>
    %c3_263 = arith.constant 3 : index
    %c3_264 = arith.constant 3 : index
    %c0_265 = arith.constant 0 : index
    %c0_266 = arith.constant 0 : index
    %275 = vector.load %arg4[%c3_263, %c3_264, %c0_265, %c0_266] : memref<4x9x1x256xf32, #tpu.memory_space<vmem>>, vector<1x1x1x256xf32>
    %276 = vector.shape_cast %275 : vector<1x1x1x256xf32> to vector<1x256xf32>
    %277 = vector.broadcast %276 : vector<1x256xf32> to vector<4x256xf32>
    %278 = arith.mulf %274, %277 : vector<4x256xf32>
    %c3_267 = arith.constant 3 : index
    %c3_268 = arith.constant 3 : index
    %c0_269 = arith.constant 0 : index
    %c0_270 = arith.constant 0 : index
    %279 = vector.load %arg2[%c3_267, %c3_268, %c0_269, %c0_270] : memref<4x9x4x4xf32, #tpu.memory_space<vmem>>, vector<1x1x4x4xf32>
    %280 = vector.shape_cast %279 : vector<1x1x4x4xf32> to vector<4x4xf32>
    %cst_271 = arith.constant dense<0.000000e+00> : vector<4x256xf32>
    %281 = tpu.matmul %280, %278, %cst_271 {dimension_numbers = #tpu.dot_dimension_numbers<[1], [0], [0], [1], [0, 0, 1, 1], [], []>} : vector<4x4xf32>, vector<4x256xf32>, vector<4x256xf32> -> vector<4x256xf32>
    %282 = arith.addf %273, %281 : vector<4x256xf32>
    %c3_272 = arith.constant 3 : index
    %c4_273 = arith.constant 4 : index
    %c0_274 = arith.constant 0 : index
    %c0_275 = arith.constant 0 : index
    %283 = vector.load %arg2[%c3_272, %c4_273, %c0_274, %c0_275] : memref<4x9x4x4xf32, #tpu.memory_space<vmem>>, vector<1x1x4x4xf32>
    %284 = vector.shape_cast %283 : vector<1x1x4x4xf32> to vector<4x4xf32>
    %cst_276 = arith.constant dense<0.000000e+00> : vector<4x256xf32>
    %285 = tpu.matmul %284, %246, %cst_276 {dimension_numbers = #tpu.dot_dimension_numbers<[1], [0], [0], [1], [0, 0, 1, 1], [], []>} : vector<4x4xf32>, vector<4x256xf32>, vector<4x256xf32> -> vector<4x256xf32>
    %286 = arith.addf %282, %285 : vector<4x256xf32>
    %c248_i32 = arith.constant 248 : i32
    %287 = tpu.dynamic_rotate %246 by %c248_i32 dim 1 : vector<4x256xf32>, i32 -> vector<4x256xf32>
    %c3_277 = arith.constant 3 : index
    %c5_278 = arith.constant 5 : index
    %c0_279 = arith.constant 0 : index
    %c0_280 = arith.constant 0 : index
    %288 = vector.load %arg4[%c3_277, %c5_278, %c0_279, %c0_280] : memref<4x9x1x256xf32, #tpu.memory_space<vmem>>, vector<1x1x1x256xf32>
    %289 = vector.shape_cast %288 : vector<1x1x1x256xf32> to vector<1x256xf32>
    %290 = vector.broadcast %289 : vector<1x256xf32> to vector<4x256xf32>
    %291 = arith.mulf %287, %290 : vector<4x256xf32>
    %c3_281 = arith.constant 3 : index
    %c5_282 = arith.constant 5 : index
    %c0_283 = arith.constant 0 : index
    %c0_284 = arith.constant 0 : index
    %292 = vector.load %arg2[%c3_281, %c5_282, %c0_283, %c0_284] : memref<4x9x4x4xf32, #tpu.memory_space<vmem>>, vector<1x1x4x4xf32>
    %293 = vector.shape_cast %292 : vector<1x1x4x4xf32> to vector<4x4xf32>
    %cst_285 = arith.constant dense<0.000000e+00> : vector<4x256xf32>
    %294 = tpu.matmul %293, %291, %cst_285 {dimension_numbers = #tpu.dot_dimension_numbers<[1], [0], [0], [1], [0, 0, 1, 1], [], []>} : vector<4x4xf32>, vector<4x256xf32>, vector<4x256xf32> -> vector<4x256xf32>
    %295 = arith.addf %286, %294 : vector<4x256xf32>
    %c136_i32_286 = arith.constant 136 : i32
    %296 = tpu.dynamic_rotate %246 by %c136_i32_286 dim 1 : vector<4x256xf32>, i32 -> vector<4x256xf32>
    %c3_287 = arith.constant 3 : index
    %c6_288 = arith.constant 6 : index
    %c0_289 = arith.constant 0 : index
    %c0_290 = arith.constant 0 : index
    %297 = vector.load %arg4[%c3_287, %c6_288, %c0_289, %c0_290] : memref<4x9x1x256xf32, #tpu.memory_space<vmem>>, vector<1x1x1x256xf32>
    %298 = vector.shape_cast %297 : vector<1x1x1x256xf32> to vector<1x256xf32>
    %299 = vector.broadcast %298 : vector<1x256xf32> to vector<4x256xf32>
    %300 = arith.mulf %296, %299 : vector<4x256xf32>
    %c3_291 = arith.constant 3 : index
    %c6_292 = arith.constant 6 : index
    %c0_293 = arith.constant 0 : index
    %c0_294 = arith.constant 0 : index
    %301 = vector.load %arg2[%c3_291, %c6_292, %c0_293, %c0_294] : memref<4x9x4x4xf32, #tpu.memory_space<vmem>>, vector<1x1x4x4xf32>
    %302 = vector.shape_cast %301 : vector<1x1x4x4xf32> to vector<4x4xf32>
    %cst_295 = arith.constant dense<0.000000e+00> : vector<4x256xf32>
    %303 = tpu.matmul %302, %300, %cst_295 {dimension_numbers = #tpu.dot_dimension_numbers<[1], [0], [0], [1], [0, 0, 1, 1], [], []>} : vector<4x4xf32>, vector<4x256xf32>, vector<4x256xf32> -> vector<4x256xf32>
    %304 = arith.addf %295, %303 : vector<4x256xf32>
    %c128_i32_296 = arith.constant 128 : i32
    %305 = tpu.dynamic_rotate %246 by %c128_i32_296 dim 1 : vector<4x256xf32>, i32 -> vector<4x256xf32>
    %c3_297 = arith.constant 3 : index
    %c7_298 = arith.constant 7 : index
    %c0_299 = arith.constant 0 : index
    %c0_300 = arith.constant 0 : index
    %306 = vector.load %arg4[%c3_297, %c7_298, %c0_299, %c0_300] : memref<4x9x1x256xf32, #tpu.memory_space<vmem>>, vector<1x1x1x256xf32>
    %307 = vector.shape_cast %306 : vector<1x1x1x256xf32> to vector<1x256xf32>
    %308 = vector.broadcast %307 : vector<1x256xf32> to vector<4x256xf32>
    %309 = arith.mulf %305, %308 : vector<4x256xf32>
    %c3_301 = arith.constant 3 : index
    %c7_302 = arith.constant 7 : index
    %c0_303 = arith.constant 0 : index
    %c0_304 = arith.constant 0 : index
    %310 = vector.load %arg2[%c3_301, %c7_302, %c0_303, %c0_304] : memref<4x9x4x4xf32, #tpu.memory_space<vmem>>, vector<1x1x4x4xf32>
    %311 = vector.shape_cast %310 : vector<1x1x4x4xf32> to vector<4x4xf32>
    %cst_305 = arith.constant dense<0.000000e+00> : vector<4x256xf32>
    %312 = tpu.matmul %311, %309, %cst_305 {dimension_numbers = #tpu.dot_dimension_numbers<[1], [0], [0], [1], [0, 0, 1, 1], [], []>} : vector<4x4xf32>, vector<4x256xf32>, vector<4x256xf32> -> vector<4x256xf32>
    %313 = arith.addf %304, %312 : vector<4x256xf32>
    %c120_i32_306 = arith.constant 120 : i32
    %314 = tpu.dynamic_rotate %246 by %c120_i32_306 dim 1 : vector<4x256xf32>, i32 -> vector<4x256xf32>
    %c3_307 = arith.constant 3 : index
    %c8_308 = arith.constant 8 : index
    %c0_309 = arith.constant 0 : index
    %c0_310 = arith.constant 0 : index
    %315 = vector.load %arg4[%c3_307, %c8_308, %c0_309, %c0_310] : memref<4x9x1x256xf32, #tpu.memory_space<vmem>>, vector<1x1x1x256xf32>
    %316 = vector.shape_cast %315 : vector<1x1x1x256xf32> to vector<1x256xf32>
    %317 = vector.broadcast %316 : vector<1x256xf32> to vector<4x256xf32>
    %318 = arith.mulf %314, %317 : vector<4x256xf32>
    %c3_311 = arith.constant 3 : index
    %c8_312 = arith.constant 8 : index
    %c0_313 = arith.constant 0 : index
    %c0_314 = arith.constant 0 : index
    %319 = vector.load %arg2[%c3_311, %c8_312, %c0_313, %c0_314] : memref<4x9x4x4xf32, #tpu.memory_space<vmem>>, vector<1x1x4x4xf32>
    %320 = vector.shape_cast %319 : vector<1x1x4x4xf32> to vector<4x4xf32>
    %cst_315 = arith.constant dense<0.000000e+00> : vector<4x256xf32>
    %321 = tpu.matmul %320, %318, %cst_315 {dimension_numbers = #tpu.dot_dimension_numbers<[1], [0], [0], [1], [0, 0, 1, 1], [], []>} : vector<4x4xf32>, vector<4x256xf32>, vector<4x256xf32> -> vector<4x256xf32>
    %322 = arith.addf %313, %321 : vector<4x256xf32>
    %c3_316 = arith.constant 3 : index
    %c0_317 = arith.constant 0 : index
    %c0_318 = arith.constant 0 : index
    %323 = vector.load %arg3[%c3_316, %c0_317, %c0_318] : memref<4x4x1xf32, #tpu.memory_space<vmem>>, vector<1x4x1xf32>
    %324 = vector.shape_cast %323 : vector<1x4x1xf32> to vector<4x1xf32>
    %325 = vector.broadcast %324 : vector<4x1xf32> to vector<4x256xf32>
    %326 = arith.addf %322, %325 : vector<4x256xf32>
    %cst_319 = arith.constant 0.000000e+00 : f32
    %327 = vector.broadcast %cst_319 : f32 to vector<4x256xf32>
    %328 = arith.maximumf %326, %327 : vector<4x256xf32>
    %329 = arith.addf %247, %328 : vector<4x256xf32>
    %c0_320 = arith.constant 0 : index
    %c0_321 = arith.constant 0 : index
    %c0_322 = arith.constant 0 : index
    %330 = vector.load %arg5[%c0_320, %c0_321, %c0_322] : memref<1x4x256xf32, #tpu.memory_space<vmem>>, vector<1x4x256xf32>
    %331 = vector.shape_cast %330 : vector<1x4x256xf32> to vector<4x256xf32>
    %332 = vector.shape_cast %329 : vector<4x256xf32> to vector<1x4x256xf32>
    tpu.vector_store %arg5[%c0_320, %c0_321, %c0_322], %332 {strides = array<i32>} : memref<1x4x256xf32, #tpu.memory_space<vmem>>, vector<1x4x256xf32>,
    return
  }
  func.func @transform_0(%arg0: i32) -> (i32, i32, i32) {
    %c0_i32 = arith.constant 0 : i32
    %c0_i32_0 = arith.constant 0 : i32
    %c0_i32_1 = arith.constant 0 : i32
    return %arg0, %c0_i32, %c0_i32_0 : i32, i32, i32
  }
  func.func @transform_1(%arg0: i32) -> (i32, i32, i32, i32) {
    %c0_i32 = arith.constant 0 : i32
    %c0_i32_0 = arith.constant 0 : i32
    %c0_i32_1 = arith.constant 0 : i32
    %c0_i32_2 = arith.constant 0 : i32
    %c0_i32_3 = arith.constant 0 : i32
    return %c0_i32, %c0_i32_0, %c0_i32_1, %c0_i32_2 : i32, i32, i32, i32
  }
  func.func @transform_2(%arg0: i32) -> (i32, i32, i32) {
    %c0_i32 = arith.constant 0 : i32
    %c0_i32_0 = arith.constant 0 : i32
    %c0_i32_1 = arith.constant 0 : i32
    %c0_i32_2 = arith.constant 0 : i32
    return %c0_i32, %c0_i32_0, %c0_i32_1 : i32, i32, i32
  }
  func.func @transform_3(%arg0: i32) -> (i32, i32, i32, i32) {
    %c0_i32 = arith.constant 0 : i32
    %c0_i32_0 = arith.constant 0 : i32
    %c0_i32_1 = arith.constant 0 : i32
    %c0_i32_2 = arith.constant 0 : i32
    %c0_i32_3 = arith.constant 0 : i32
    return %c0_i32, %c0_i32_0, %c0_i32_1, %c0_i32_2 : i32, i32, i32, i32
  }
  func.func @transform_4(%arg0: i32) -> (i32, i32, i32) {
    %c0_i32 = arith.constant 0 : i32
    %c0_i32_0 = arith.constant 0 : i32
    %c0_i32_1 = arith.constant 0 : i32
    return %arg0, %c0_i32, %c0_i32_0 : i32, i32, i32
  }
}

</mosaic_0001>

<llo_original>
// kernel: tpu_custom_call.1
$region0: #{tpu_custom_call.1}
  #allocation0 [shape = 'u32[]', space=smem, size = 0x4, offset = 0x4, fixed_abs, tag = 'smem constant byte address 0x4 - core index']
  #allocation1 [shape = 'u32[72,128]{1,0:T(1,128)}', space=vmem, size = 0x9000, scoped, tag = 'internal scratch']
  %s0 = inlined_call_operand.vmem [shape: f32[2,4,256], index: 0, kind: input, shape index: {}]
  %s1 = inlined_call_operand.vmem [shape: f32[4,9,4,4], index: 1, kind: input, shape index: {}]
  %s2 = inlined_call_operand.vmem [shape: f32[4,4,1], index: 2, kind: input, shape index: {}]
  %s3 = inlined_call_operand.vmem [shape: f32[4,9,1,256], index: 3, kind: input, shape index: {}]
  %s4 = inlined_call_operand.hbm [shape: f32[2,4,256], index: 4, kind: output, shape index: {}]
  %s5 = sld [smem:[#allocation0]]
  $region49: #{tpu_custom_call.1} parent=0
    _
  %s7 = ssub.s32 1, %s5
  %s8 = scalar_select 0, %s7, %s5
  $region1: #{tpu_custom_call.1} parent=0
    #allocation2 [shape = 'u8[8192]{0}', space=vmem, size = 0x2000, scoped, tag = 'output window, operand 0']
    #allocation3 [shape = 's32[2]{0}', space=sflag, size = 0x8, scoped, tag = 'scoped memory for tpu_custom_call.1']
    %9 = vsyncpa [#allocation3], 0
    %s10 = scalar_lea.sflag [#allocation3], 1
    %11 = vsyncpa %s10, 0
    loop: start=0, step=1, limit=4
    $region2: #{tpu_custom_call.1} parent=1 // loop_pre_header
      _
    $region3: #{tpu_custom_call.1} parent=1 // loop_header
      %s13 = sphi 0, %s17
      %p14 = scmp.ge.s32.totalorder %s13, 4
      %s23 = sphi 0, %s25
      %s26 = sphi 0, %s23
      %s27 = sphi 0, %s26
      %s43 = sphi 0, %s27
      %s47 = sphi 0, %s47
      %s49 = sphi 0, %s47
      %s50 = sphi 0, %s49
      %s64 = sphi 0, %s50
      %s68 = sphi 0, %s68
      %s70 = sphi 0, %s68
      %s71 = sphi 0, %s70
      %s85 = sphi 0, %s71
      %s89 = sphi 0, %s89
      %s91 = sphi 0, %s89
      %s92 = sphi 0, %s91
      %s106 = sphi 0, %s92
      %s112 = sphi 0, %s114
      %s115 = sphi 0, %s112
      %s116 = sphi 0, %s115
      %s132 = sphi 0, %s116
    $region4: #{tpu_custom_call.1} parent=1 // loop_header_branch
      %16 = sbr.rel (%p14) target = $region8
    $region5: #{tpu_custom_call.1} parent=1 // loop_body
      %s18 = ssub.s32 %s13, 1
      %s19 = ssub.s32 %s13, 2
      %s20 = sadd.s32 %s13, 1
      %s21 = ssub.s32 %s13, %s20
      %p22 = scmp.eq.s32.totalorder %s21, 0
      %s24 = sadd.s32 %s23, 1
      %s25 = scalar_select %p22, %s23, %s24
      %p28 = pneg %p22
      %p29 = scmp.eq.s32.totalorder %s13, 1
      %p30 = por %p28, %p29
      %p31 = scmp.ne.s32.totalorder %s23, %s26
      %p32 = scmp.eq.s32.totalorder %s13, 0
      %p33 = por %p31, %p32
      %p34 = scmp.ne.s32.totalorder %s23, %s26
      %p35 = scmp.eq.s32.totalorder %s18, 1
      %p36 = por %p34, %p35
      %p37 = scmp.ne.s32.totalorder %s26, %s27
      %p38 = scmp.eq.s32.totalorder %s18, 0
      %p39 = por %p37, %p38
      %p40 = scmp.ne.s32.totalorder %s26, %s27
      %p41 = scmp.eq.s32.totalorder %s19, 1
      %p42 = por %p40, %p41
      %p44 = scmp.ne.s32.totalorder %s27, %s43
      %p45 = scmp.eq.s32.totalorder %s19, 0
      %p46 = por %p44, %p45
      %s48 = sadd.s32 %s47, 1
      %p51 = scmp.eq.s32.totalorder %s13, 1
      %p52 = scmp.ne.s32.totalorder %s47, %s49
      %p53 = scmp.eq.s32.totalorder %s13, 0
      %p54 = por %p52, %p53
      %p55 = scmp.ne.s32.totalorder %s47, %s49
      %p56 = scmp.eq.s32.totalorder %s18, 1
      %p57 = por %p55, %p56
      %p58 = scmp.ne.s32.totalorder %s49, %s50
      %p59 = scmp.eq.s32.totalorder %s18, 0
      %p60 = por %p58, %p59
      %p61 = scmp.ne.s32.totalorder %s49, %s50
      %p62 = scmp.eq.s32.totalorder %s19, 1
      %p63 = por %p61, %p62
      %p65 = scmp.ne.s32.totalorder %s50, %s64
      %p66 = scmp.eq.s32.totalorder %s19, 0
      %p67 = por %p65, %p66
      %s69 = sadd.s32 %s68, 1
      %p72 = scmp.eq.s32.totalorder %s13, 1
      %p73 = scmp.ne.s32.totalorder %s68, %s70
      %p74 = scmp.eq.s32.totalorder %s13, 0
      %p75 = por %p73, %p74
      %p76 = scmp.ne.s32.totalorder %s68, %s70
      %p77 = scmp.eq.s32.totalorder %s18, 1
      %p78 = por %p76, %p77
      %p79 = scmp.ne.s32.totalorder %s70, %s71
      %p80 = scmp.eq.s32.totalorder %s18, 0
      %p81 = por %p79, %p80
      %p82 = scmp.ne.s32.totalorder %s70, %s71
      %p83 = scmp.eq.s32.totalorder %s19, 1
      %p84 = por %p82, %p83
      %p86 = scmp.ne.s32.totalorder %s71, %s85
      %p87 = scmp.eq.s32.totalorder %s19, 0
      %p88 = por %p86, %p87
      %s90 = sadd.s32 %s89, 1
      %p93 = scmp.eq.s32.totalorder %s13, 1
      %p94 = scmp.ne.s32.totalorder %s89, %s91
      %p95 = scmp.eq.s32.totalorder %s13, 0
      %p96 = por %p94, %p95
      %p97 = scmp.ne.s32.totalorder %s89, %s91
      %p98 = scmp.eq.s32.totalorder %s18, 1
      %p99 = por %p97, %p98
      %p100 = scmp.ne.s32.totalorder %s91, %s92
      %p101 = scmp.eq.s32.totalorder %s18, 0
      %p102 = por %p100, %p101
      %p103 = scmp.ne.s32.totalorder %s91, %s92
      %p104 = scmp.eq.s32.totalorder %s19, 1
      %p105 = por %p103, %p104
      %p107 = scmp.ne.s32.totalorder %s92, %s106
      %p108 = scmp.eq.s32.totalorder %s19, 0
      %p109 = por %p107, %p108
      %s110 = ssub.s32 %s13, %s20
      %p111 = scmp.eq.s32.totalorder %s110, 0
      %s113 = sadd.s32 %s112, 1
      %s114 = scalar_select %p111, %s112, %s113
      %p117 = pneg %p111
      %p118 = scmp.eq.s32.totalorder %s13, 1
      %p119 = por %p117, %p118
      %p120 = scmp.ne.s32.totalorder %s112, %s115
      %p121 = scmp.eq.s32.totalorder %s13, 0
      %p122 = por %p120, %p121
      %p123 = scmp.ne.s32.totalorder %s112, %s115
      %p124 = scmp.eq.s32.totalorder %s18, 1
      %p125 = por %p123, %p124
      %p126 = scmp.ne.s32.totalorder %s115, %s116
      %p127 = scmp.eq.s32.totalorder %s18, 0
      %p128 = por %p126, %p127
      %p129 = scmp.ne.s32.totalorder %s115, %s116
      %p130 = scmp.eq.s32.totalorder %s19, 1
      %p131 = por %p129, %p130
      %p133 = scmp.ne.s32.totalorder %s116, %s132
      %p134 = scmp.eq.s32.totalorder %s19, 0
      %p135 = por %p133, %p134
      %p136 = scmp.le.s32.totalorder 1, %s13
      %p137 = scmp.lt.s32.totalorder %s13, 3
      %p138 = pnand %p136, %p137
      %p139 = pneg %p138
      // Predicated region
      $region9: #{tpu_custom_call.1} parent=5 // pred_check
        _
      $region10: #{tpu_custom_call.1} parent=5 // pred_check_branch
        %141 = sbr.rel (%p138) target = $region12
      $region11: #{tpu_custom_call.1} parent=5 // pred_region
        %s142 = ssub.s32 %s13, 1
        // Predicated region
        $region13: #{tpu_custom_call.1} parent=11 // pred_check
          %p143 = pneg %p60
        $region14: #{tpu_custom_call.1} parent=11 // pred_check_branch
          %145 = sbr.rel (%p143) target = $region16
        $region15: #{tpu_custom_call.1} parent=11 // pred_region
          _
        $region16: #{tpu_custom_call.1} parent=11 // pred_fallthru
          _
        // Predicated region
        $region17: #{tpu_custom_call.1} parent=11 // pred_check
          %p146 = pneg %p81
        $region18: #{tpu_custom_call.1} parent=11 // pred_check_branch
          %148 = sbr.rel (%p146) target = $region20
        $region19: #{tpu_custom_call.1} parent=11 // pred_region
          _
        $region20: #{tpu_custom_call.1} parent=11 // pred_fallthru
          _
        // Predicated region
        $region21: #{tpu_custom_call.1} parent=11 // pred_check
          %p149 = pneg %p102
        $region22: #{tpu_custom_call.1} parent=11 // pred_check_branch
          %151 = sbr.rel (%p149) target = $region24
        $region23: #{tpu_custom_call.1} parent=11 // pred_region
          _
        $region24: #{tpu_custom_call.1} parent=11 // pred_fallthru
          _
      $region12: #{tpu_custom_call.1} parent=5 // pred_fallthru
        _
      %p152 = scmp.lt.s32.totalorder %s13, 2
      // Predicated region
      $region25: #{tpu_custom_call.1} parent=5 // pred_check
        %p153 = pneg %p152
      $region26: #{tpu_custom_call.1} parent=5 // pred_check_branch
        %155 = sbr.rel (%p153) target = $region28
      $region27: #{tpu_custom_call.1} parent=5 // pred_region
        // Predicated region
        $region29: #{tpu_custom_call.1} parent=27 // pred_check
          %p156 = pneg %p33
        $region30: #{tpu_custom_call.1} parent=27 // pred_check_branch
          %158 = sbr.rel (%p156) target = $region32
        $region31: #{tpu_custom_call.1} parent=27 // pred_region
          %p159 = scmp.lt.s32.totalorder %s13, 1
          %s160 = scalar_select %p159, %s13, 1
          %s161 = smul.addr %s160, 2
          %s162 = smul.addr %s161, 4
          %s163 = scalar_lea.vmem %s0, %s162
        $region32: #{tpu_custom_call.1} parent=27 // pred_fallthru
          _
      $region28: #{tpu_custom_call.1} parent=5 // pred_fallthru
        _
      %p164 = scmp.le.s32.totalorder 1, %s13
      %p165 = scmp.lt.s32.totalorder %s13, 3
      %p166 = pnand %p164, %p165
      %p167 = pneg %p166
      // Predicated region
      $region33: #{tpu_custom_call.1} parent=5 // pred_check
        _
      $region34: #{tpu_custom_call.1} parent=5 // pred_check_branch
        %169 = sbr.rel (%p166) target = $region36
      $region35: #{tpu_custom_call.1} parent=5 // pred_region
        %s170 = ssub.s32 %s13, 1
        %p171 = scmp.lt.s32.totalorder %s18, 1
        %s172 = scalar_select %p171, %s18, 1
        %s173 = smul.addr %s172, 2
        %s174 = smul.addr %s173, 4
        %s175 = scalar_lea.vmem %s0, %s174
        %p176 = pneg %p39
        %p177 = pneg %p36
        %p178 = pneg %p60
        %p179 = pneg %p57
        %p180 = pneg %p81
        %p181 = pneg %p78
        %p182 = pneg %p102
        %p183 = pneg %p99
        %p184 = pneg %p128
        %p185 = pneg %p125
        %s186 = sand.u32 %s115, 1
        %s187 = scalar_lea.sflag [#allocation3], %s186
        %s188 = sand.u32 %s115, 1
        %s189 = smul.addr %s188, 8
        %s190 = scalar_lea.vmem [#allocation2], %s189
        %p191 = scmp.lt.s32.totalorder %s18, 1
        %s192 = scalar_select %p191, %s18, 1
        %s193 = smul.addr %s192, 2
        %s194 = smul.addr %s193, 4
        %s195 = scalar_lea.vmem %s0, %s194
        %v196 = vld [vmem:[%s195] sm:$0xff]
        %198 = vst [vmem:[#allocation1] ss:$2 sm:$0xff] %v196
        %v199 = vld.sshfl [vmem:[#allocation1] sm:$0xff pattern:$0x75316420]
        %v200 = vld.sshfl [vmem:[#allocation1 + $0x8] sm:$0xff pattern:$0x75316420]
        %203 = vrot.lane.b32.xlu0 %v199, 17
        %v204 = vpop.permute.xlu0 %203
        %205 = vrot.lane.b32.xlu0 %v200, 17
        %v206 = vpop.permute.xlu0 %205
        %v207 = vlaneseq
        %v208 = vand.u32 %v207, 127
        %vm209 = vcmp.lt.s32.totalorder %v208, 17
        %v210 = vsel %vm209, %v204, %v206
        %v211 = vsel %vm209, %v206, %v204
        %v212 = vld [vmem:[%s3] sm:$0x3]
        %v214 = vperm.slane %v212, 0
        %v215 = vperm.slane %v212, 1
        %v218 = vmul.f32 %v211, %v214
        %v219 = vmul.f32 %v210, %v215
        %v220 = vld [vmem:[%s1] sm:$0xf]
        %221 = vst [vmem:[#allocation1] ss:$2 sm:$0xff] %v196
        %v222 = vld.sshfl [vmem:[#allocation1] sm:$0xff pattern:$0x75316420]
        %v223 = vld.sshfl [vmem:[#allocation1 + $0x8] sm:$0xff pattern:$0x75316420]
        %226 = vrot.lane.b32.xlu0 %v222, 16
        %v227 = vpop.permute.xlu0 %226
        %228 = vrot.lane.b32.xlu0 %v223, 16
        %v229 = vpop.permute.xlu0 %228
        %vm230 = vcmp.lt.s32.totalorder %v208, 16
        %v231 = vsel %vm230, %v227, %v229
        %v232 = vsel %vm230, %v229, %v227
        %s233 = scalar_lea.vmem %s3, 2
        %v234 = vld [vmem:[%s233] sm:$0x3]
        %v236 = vperm.slane %v234, 0
        %v237 = vperm.slane %v234, 1
        %v240 = vmul.f32 %v232, %v236
        %v241 = vmul.f32 %v231, %v237
        %s242 = scalar_lea.vmem %s1, 4
        %v243 = vld [vmem:[%s242] sm:$0xf]
        %vm244 = vcmask 31744
        %v246 = vsel %vm244, %v243, 0
        %vm248 = vcmask 1043456
        %v250 = vsel %vm248, %v240, 0
        %v253 = vsel %vm248, %v241, 0
        %255 = vmatpush.msra.mxu0 0.0
        %256 = vmatpush.msra.mxu0 0.0
        %257 = vmatpush.msra.mxu0 0.0
        %258 = vmatpush.msra.mxu0 0.0
        %259 = vmatpush.msra.mxu0 0.0
        %260 = vmatpush.msra.mxu0 0.0
        %261 = vmatpush.msra.mxu0 0.0
        %262 = vmatpush.msra.mxu0 0.0
        %263 = vmatpush.msra.mxu0 0.0
        %264 = vmatpush.msra.mxu0 0.0
        %265 = vmatpush.msra.mxu0 0.0
        %266 = vmatpush.msra.mxu0 0.0
        %267 = vmatpush.msra.mxu0 0.0
        %268 = vmatpush.msra.mxu0 0.0
        %269 = vmatpush.msra.mxu0 0.0
        %270 = vmatpush.msra.mxu0 %v250
        %271 = vmatmul.f32.gmra.mxu0 %v246
        %v272 = vpop.f32.mrf.mxu0
        %v273 = vadd.f32 0.0, %v272
        %274 = vdwg.mxu0
        %275 = vmatpush.msra.mxu0 0.0
        %276 = vmatpush.msra.mxu0 0.0
        %277 = vmatpush.msra.mxu0 0.0
        %278 = vmatpush.msra.mxu0 0.0
        %279 = vmatpush.msra.mxu0 0.0
        %280 = vmatpush.msra.mxu0 0.0
        %281 = vmatpush.msra.mxu0 0.0
        %282 = vmatpush.msra.mxu0 0.0
        %283 = vmatpush.msra.mxu0 0.0
        %284 = vmatpush.msra.mxu0 0.0
        %285 = vmatpush.msra.mxu0 0.0
        %286 = vmatpush.msra.mxu0 0.0
        %287 = vmatpush.msra.mxu0 0.0
        %288 = vmatpush.msra.mxu0 0.0
        %289 = vmatpush.msra.mxu0 0.0
        %290 = vmatpush.msra.mxu0 %v253
        %291 = vmatmul.f32.gmra.mxu0 %v246
        %v292 = vpop.f32.mrf.mxu0
        %v293 = vadd.f32 0.0, %v292
        %294 = vdwg.mxu0
        %v296 = vsel %vm244, %v220, 0
        %v299 = vsel %vm248, %v218, 0
        %v302 = vsel %vm248, %v219, 0
        %304 = vmatpush.msra.mxu0 0.0
        %305 = vmatpush.msra.mxu0 0.0
        %306 = vmatpush.msra.mxu0 0.0
        %307 = vmatpush.msra.mxu0 0.0
        %308 = vmatpush.msra.mxu0 0.0
        %309 = vmatpush.msra.mxu0 0.0
        %310 = vmatpush.msra.mxu0 0.0
        %311 = vmatpush.msra.mxu0 0.0
        %312 = vmatpush.msra.mxu0 0.0
        %313 = vmatpush.msra.mxu0 0.0
        %314 = vmatpush.msra.mxu0 0.0
        %315 = vmatpush.msra.mxu0 0.0
        %316 = vmatpush.msra.mxu0 0.0
        %317 = vmatpush.msra.mxu0 0.0
        %318 = vmatpush.msra.mxu0 0.0
        %319 = vmatpush.msra.mxu0 %v299
        %320 = vmatmul.f32.gmra.mxu0 %v296
        %v321 = vpop.f32.mrf.mxu0
        %v322 = vadd.f32 %v273, %v321
        %323 = vdwg.mxu0
        %324 = vmatpush.msra.mxu0 0.0
        %325 = vmatpush.msra.mxu0 0.0
        %326 = vmatpush.msra.mxu0 0.0
        %327 = vmatpush.msra.mxu0 0.0
        %328 = vmatpush.msra.mxu0 0.0
        %329 = vmatpush.msra.mxu0 0.0
        %330 = vmatpush.msra.mxu0 0.0
        %331 = vmatpush.msra.mxu0 0.0
        %332 = vmatpush.msra.mxu0 0.0
        %333 = vmatpush.msra.mxu0 0.0
        %334 = vmatpush.msra.mxu0 0.0
        %335 = vmatpush.msra.mxu0 0.0
        %336 = vmatpush.msra.mxu0 0.0
        %337 = vmatpush.msra.mxu0 0.0
        %338 = vmatpush.msra.mxu0 0.0
        %339 = vmatpush.msra.mxu0 %v302
        %340 = vmatmul.f32.gmra.mxu0 %v296
        %v341 = vpop.f32.mrf.mxu0
        %v342 = vadd.f32 %v293, %v341
        %343 = vdwg.mxu0
        %344 = vst [vmem:[#allocation1] ss:$2 sm:$0xff] %v196
        %v345 = vld.sshfl [vmem:[#allocation1] sm:$0xff pattern:$0x75316420]
        %v346 = vld.sshfl [vmem:[#allocation1 + $0x8] sm:$0xff pattern:$0x75316420]
        %349 = vrot.lane.b32.xlu0 %v345, 15
        %v350 = vpop.permute.xlu0 %349
        %351 = vrot.lane.b32.xlu0 %v346, 15
        %v352 = vpop.permute.xlu0 %351
        %vm353 = vcmp.lt.s32.totalorder %v208, 15
        %v354 = vsel %vm353, %v350, %v352
        %v355 = vsel %vm353, %v352, %v350
        %s356 = scalar_lea.vmem %s3, 4
        %v357 = vld [vmem:[%s356] sm:$0x3]
        %v359 = vperm.slane %v357, 0
        %v360 = vperm.slane %v357, 1
        %v363 = vmul.f32 %v355, %v359
        %v364 = vmul.f32 %v354, %v360
        %s365 = scalar_lea.vmem %s1, 8
        %v366 = vld [vmem:[%s365] sm:$0xf]
        %v368 = vsel %vm244, %v366, 0
        %v371 = vsel %vm248, %v363, 0
        %v374 = vsel %vm248, %v364, 0
        %376 = vmatpush.msra.mxu0 0.0
        %377 = vmatpush.msra.mxu0 0.0
        %378 = vmatpush.msra.mxu0 0.0
        %379 = vmatpush.msra.mxu0 0.0
        %380 = vmatpush.msra.mxu0 0.0
        %381 = vmatpush.msra.mxu0 0.0
        %382 = vmatpush.msra.mxu0 0.0
        %383 = vmatpush.msra.mxu0 0.0
        %384 = vmatpush.msra.mxu0 0.0
        %385 = vmatpush.msra.mxu0 0.0
        %386 = vmatpush.msra.mxu0 0.0
        %387 = vmatpush.msra.mxu0 0.0
        %388 = vmatpush.msra.mxu0 0.0
        %389 = vmatpush.msra.mxu0 0.0
        %390 = vmatpush.msra.mxu0 0.0
        %391 = vmatpush.msra.mxu0 %v371
        %392 = vmatmul.f32.gmra.mxu0 %v368
        %v393 = vpop.f32.mrf.mxu0
        %v394 = vadd.f32 0.0, %v393
        %395 = vdwg.mxu0
        %396 = vmatpush.msra.mxu0 0.0
        %397 = vmatpush.msra.mxu0 0.0
        %398 = vmatpush.msra.mxu0 0.0
        %399 = vmatpush.msra.mxu0 0.0
        %400 = vmatpush.msra.mxu0 0.0
        %401 = vmatpush.msra.mxu0 0.0
        %402 = vmatpush.msra.mxu0 0.0
        %403 = vmatpush.msra.mxu0 0.0
        %404 = vmatpush.msra.mxu0 0.0
        %405 = vmatpush.msra.mxu0 0.0
        %406 = vmatpush.msra.mxu0 0.0
        %407 = vmatpush.msra.mxu0 0.0
        %408 = vmatpush.msra.mxu0 0.0
        %409 = vmatpush.msra.mxu0 0.0
        %410 = vmatpush.msra.mxu0 0.0
        %411 = vmatpush.msra.mxu0 %v374
        %412 = vmatmul.f32.gmra.mxu0 %v368
        %v413 = vpop.f32.mrf.mxu0
        %v414 = vadd.f32 0.0, %v413
        %415 = vdwg.mxu0
        %v416 = vadd.f32 %v322, %v394
        %v417 = vadd.f32 %v342, %v414
        %418 = vst [vmem:[#allocation1] ss:$2 sm:$0xff] %v196
        %v419 = vld.sshfl [vmem:[#allocation1] sm:$0xff pattern:$0x75316420]
        %v420 = vld.sshfl [vmem:[#allocation1 + $0x8] sm:$0xff pattern:$0x75316420]
        %423 = vrot.lane.b32.xlu0 %v419, 1
        %v424 = vpop.permute.xlu0 %423
        %425 = vrot.lane.b32.xlu0 %v420, 1
        %v426 = vpop.permute.xlu0 %425
        %vm427 = vcmp.lt.s32.totalorder %v208, 1
        %v428 = vsel %vm427, %v424, %v426
        %v429 = vsel %vm427, %v426, %v424
        %s430 = scalar_lea.vmem %s3, 6
        %v431 = vld [vmem:[%s430] sm:$0x3]
        %v433 = vperm.slane %v431, 0
        %v434 = vperm.slane %v431, 1
        %v437 = vmul.f32 %v429, %v433
        %v438 = vmul.f32 %v428, %v434
        %s439 = scalar_lea.vmem %s1, 12
        %v440 = vld [vmem:[%s439] sm:$0xf]
        %v442 = vsel %vm244, %v440, 0
        %v445 = vsel %vm248, %v437, 0
        %v448 = vsel %vm248, %v438, 0
        %450 = vmatpush.msra.mxu0 0.0
        %451 = vmatpush.msra.mxu0 0.0
        %452 = vmatpush.msra.mxu0 0.0
        %453 = vmatpush.msra.mxu0 0.0
        %454 = vmatpush.msra.mxu0 0.0
        %455 = vmatpush.msra.mxu0 0.0
        %456 = vmatpush.msra.mxu0 0.0
        %457 = vmatpush.msra.mxu0 0.0
        %458 = vmatpush.msra.mxu0 0.0
        %459 = vmatpush.msra.mxu0 0.0
        %460 = vmatpush.msra.mxu0 0.0
        %461 = vmatpush.msra.mxu0 0.0
        %462 = vmatpush.msra.mxu0 0.0
        %463 = vmatpush.msra.mxu0 0.0
        %464 = vmatpush.msra.mxu0 0.0
        %465 = vmatpush.msra.mxu0 %v445
        %466 = vmatmul.f32.gmra.mxu0 %v442
        %v467 = vpop.f32.mrf.mxu0
        %v468 = vadd.f32 0.0, %v467
        %469 = vdwg.mxu0
        %470 = vmatpush.msra.mxu0 0.0
        %471 = vmatpush.msra.mxu0 0.0
        %472 = vmatpush.msra.mxu0 0.0
        %473 = vmatpush.msra.mxu0 0.0
        %474 = vmatpush.msra.mxu0 0.0
        %475 = vmatpush.msra.mxu0 0.0
        %476 = vmatpush.msra.mxu0 0.0
        %477 = vmatpush.msra.mxu0 0.0
        %478 = vmatpush.msra.mxu0 0.0
        %479 = vmatpush.msra.mxu0 0.0
        %480 = vmatpush.msra.mxu0 0.0
        %481 = vmatpush.msra.mxu0 0.0
        %482 = vmatpush.msra.mxu0 0.0
        %483 = vmatpush.msra.mxu0 0.0
        %484 = vmatpush.msra.mxu0 0.0
        %485 = vmatpush.msra.mxu0 %v448
        %486 = vmatmul.f32.gmra.mxu0 %v442
        %v487 = vpop.f32.mrf.mxu0
        %v488 = vadd.f32 0.0, %v487
        %489 = vdwg.mxu0
        %v490 = vadd.f32 %v416, %v468
        %v491 = vadd.f32 %v417, %v488
        %s492 = scalar_lea.vmem %s1, 16
        %v493 = vld [vmem:[%s492] sm:$0xf]
        %494 = vst [vmem:[#allocation1] ss:$2 sm:$0xff] %v196
        %v495 = vld.sshfl [vmem:[#allocation1] sm:$0xff pattern:$0x75316420]
        %v496 = vld.sshfl [vmem:[#allocation1 + $0x8] sm:$0xff pattern:$0x75316420]
        %v498 = vsel %vm244, %v493, 0
        %v500 = vsel %vm248, %v495, 0
        %v502 = vsel %vm248, %v496, 0
        %504 = vmatpush.msra.mxu0 0.0
        %505 = vmatpush.msra.mxu0 0.0
        %506 = vmatpush.msra.mxu0 0.0
        %507 = vmatpush.msra.mxu0 0.0
        %508 = vmatpush.msra.mxu0 0.0
        %509 = vmatpush.msra.mxu0 0.0
        %510 = vmatpush.msra.mxu0 0.0
        %511 = vmatpush.msra.mxu0 0.0
        %512 = vmatpush.msra.mxu0 0.0
        %513 = vmatpush.msra.mxu0 0.0
        %514 = vmatpush.msra.mxu0 0.0
        %515 = vmatpush.msra.mxu0 0.0
        %516 = vmatpush.msra.mxu0 0.0
        %517 = vmatpush.msra.mxu0 0.0
        %518 = vmatpush.msra.mxu0 0.0
        %519 = vmatpush.msra.mxu0 %v500
        %520 = vmatmul.f32.gmra.mxu0 %v498
        %v521 = vpop.f32.mrf.mxu0
        %v522 = vadd.f32 0.0, %v521
        %523 = vdwg.mxu0
        %524 = vmatpush.msra.mxu0 0.0
        %525 = vmatpush.msra.mxu0 0.0
        %526 = vmatpush.msra.mxu0 0.0
        %527 = vmatpush.msra.mxu0 0.0
        %528 = vmatpush.msra.mxu0 0.0
        %529 = vmatpush.msra.mxu0 0.0
        %530 = vmatpush.msra.mxu0 0.0
        %531 = vmatpush.msra.mxu0 0.0
        %532 = vmatpush.msra.mxu0 0.0
        %533 = vmatpush.msra.mxu0 0.0
        %534 = vmatpush.msra.mxu0 0.0
        %535 = vmatpush.msra.mxu0 0.0
        %536 = vmatpush.msra.mxu0 0.0
        %537 = vmatpush.msra.mxu0 0.0
        %538 = vmatpush.msra.mxu0 0.0
        %539 = vmatpush.msra.mxu0 %v502
        %540 = vmatmul.f32.gmra.mxu0 %v498
        %v541 = vpop.f32.mrf.mxu0
        %v542 = vadd.f32 0.0, %v541
        %543 = vdwg.mxu0
        %v544 = vadd.f32 %v490, %v522
        %v545 = vadd.f32 %v491, %v542
        %546 = vst [vmem:[#allocation1] ss:$2 sm:$0xff] %v196
        %v547 = vld.sshfl [vmem:[#allocation1] sm:$0xff pattern:$0x75316420]
        %v548 = vld.sshfl [vmem:[#allocation1 + $0x8] sm:$0xff pattern:$0x75316420]
        %551 = vrot.lane.b32.xlu0 %v547, 127
        %v552 = vpop.permute.xlu0 %551
        %553 = vrot.lane.b32.xlu0 %v548, 127
        %v554 = vpop.permute.xlu0 %553
        %vm555 = vcmp.lt.s32.totalorder %v208, 127
        %v556 = vsel %vm555, %v552, %v554
        %v557 = vsel %vm555, %v554, %v552
        %s558 = scalar_lea.vmem %s3, 10
        %v559 = vld [vmem:[%s558] sm:$0x3]
        %v561 = vperm.slane %v559, 0
        %v562 = vperm.slane %v559, 1
        %v565 = vmul.f32 %v556, %v561
        %v566 = vmul.f32 %v557, %v562
        %s567 = scalar_lea.vmem %s1, 20
        %v568 = vld [vmem:[%s567] sm:$0xf]
        %v570 = vsel %vm244, %v568, 0
        %v573 = vsel %vm248, %v565, 0
        %v576 = vsel %vm248, %v566, 0
        %578 = vmatpush.msra.mxu0 0.0
        %579 = vmatpush.msra.mxu0 0.0
        %580 = vmatpush.msra.mxu0 0.0
        %581 = vmatpush.msra.mxu0 0.0
        %582 = vmatpush.msra.mxu0 0.0
        %583 = vmatpush.msra.mxu0 0.0
        %584 = vmatpush.msra.mxu0 0.0
        %585 = vmatpush.msra.mxu0 0.0
        %586 = vmatpush.msra.mxu0 0.0
        %587 = vmatpush.msra.mxu0 0.0
        %588 = vmatpush.msra.mxu0 0.0
        %589 = vmatpush.msra.mxu0 0.0
        %590 = vmatpush.msra.mxu0 0.0
        %591 = vmatpush.msra.mxu0 0.0
        %592 = vmatpush.msra.mxu0 0.0
        %593 = vmatpush.msra.mxu0 %v573
        %594 = vmatmul.f32.gmra.mxu0 %v570
        %v595 = vpop.f32.mrf.mxu0
        %v596 = vadd.f32 0.0, %v595
        %597 = vdwg.mxu0
        %598 = vmatpush.msra.mxu0 0.0
        %599 = vmatpush.msra.mxu0 0.0
        %600 = vmatpush.msra.mxu0 0.0
        %601 = vmatpush.msra.mxu0 0.0
        %602 = vmatpush.msra.mxu0 0.0
        %603 = vmatpush.msra.mxu0 0.0
        %604 = vmatpush.msra.mxu0 0.0
        %605 = vmatpush.msra.mxu0 0.0
        %606 = vmatpush.msra.mxu0 0.0
        %607 = vmatpush.msra.mxu0 0.0
        %608 = vmatpush.msra.mxu0 0.0
        %609 = vmatpush.msra.mxu0 0.0
        %610 = vmatpush.msra.mxu0 0.0
        %611 = vmatpush.msra.mxu0 0.0
        %612 = vmatpush.msra.mxu0 0.0
        %613 = vmatpush.msra.mxu0 %v576
        %614 = vmatmul.f32.gmra.mxu0 %v570
        %v615 = vpop.f32.mrf.mxu0
        %v616 = vadd.f32 0.0, %v615
        %617 = vdwg.mxu0
        %v618 = vadd.f32 %v544, %v596
        %v619 = vadd.f32 %v545, %v616
        %620 = vst [vmem:[#allocation1] ss:$2 sm:$0xff] %v196
        %v621 = vld.sshfl [vmem:[#allocation1] sm:$0xff pattern:$0x75316420]
        %v622 = vld.sshfl [vmem:[#allocation1 + $0x8] sm:$0xff pattern:$0x75316420]
        %625 = vrot.lane.b32.xlu0 %v621, 113
        %v626 = vpop.permute.xlu0 %625
        %627 = vrot.lane.b32.xlu0 %v622, 113
        %v628 = vpop.permute.xlu0 %627
        %vm629 = vcmp.lt.s32.totalorder %v208, 113
        %v630 = vsel %vm629, %v626, %v628
        %v631 = vsel %vm629, %v628, %v626
        %s632 = scalar_lea.vmem %s3, 12
        %v633 = vld [vmem:[%s632] sm:$0x3]
        %v635 = vperm.slane %v633, 0
        %v636 = vperm.slane %v633, 1
        %v639 = vmul.f32 %v630, %v635
        %v640 = vmul.f32 %v631, %v636
        %s641 = scalar_lea.vmem %s1, 24
        %v642 = vld [vmem:[%s641] sm:$0xf]
        %v644 = vsel %vm244, %v642, 0
        %v647 = vsel %vm248, %v639, 0
        %v650 = vsel %vm248, %v640, 0
        %652 = vmatpush.msra.mxu0 0.0
        %653 = vmatpush.msra.mxu0 0.0
        %654 = vmatpush.msra.mxu0 0.0
        %655 = vmatpush.msra.mxu0 0.0
        %656 = vmatpush.msra.mxu0 0.0
        %657 = vmatpush.msra.mxu0 0.0
        %658 = vmatpush.msra.mxu0 0.0
        %659 = vmatpush.msra.mxu0 0.0
        %660 = vmatpush.msra.mxu0 0.0
        %661 = vmatpush.msra.mxu0 0.0
        %662 = vmatpush.msra.mxu0 0.0
        %663 = vmatpush.msra.mxu0 0.0
        %664 = vmatpush.msra.mxu0 0.0
        %665 = vmatpush.msra.mxu0 0.0
        %666 = vmatpush.msra.mxu0 0.0
        %667 = vmatpush.msra.mxu0 %v647
        %668 = vmatmul.f32.gmra.mxu0 %v644
        %v669 = vpop.f32.mrf.mxu0
        %v670 = vadd.f32 0.0, %v669
        %671 = vdwg.mxu0
        %672 = vmatpush.msra.mxu0 0.0
        %673 = vmatpush.msra.mxu0 0.0
        %674 = vmatpush.msra.mxu0 0.0
        %675 = vmatpush.msra.mxu0 0.0
        %676 = vmatpush.msra.mxu0 0.0
        %677 = vmatpush.msra.mxu0 0.0
        %678 = vmatpush.msra.mxu0 0.0
        %679 = vmatpush.msra.mxu0 0.0
        %680 = vmatpush.msra.mxu0 0.0
        %681 = vmatpush.msra.mxu0 0.0
        %682 = vmatpush.msra.mxu0 0.0
        %683 = vmatpush.msra.mxu0 0.0
        %684 = vmatpush.msra.mxu0 0.0
        %685 = vmatpush.msra.mxu0 0.0
        %686 = vmatpush.msra.mxu0 0.0
        %687 = vmatpush.msra.mxu0 %v650
        %688 = vmatmul.f32.gmra.mxu0 %v644
        %v689 = vpop.f32.mrf.mxu0
        %v690 = vadd.f32 0.0, %v689
        %691 = vdwg.mxu0
        %v692 = vadd.f32 %v618, %v670
        %v693 = vadd.f32 %v619, %v690
        %694 = vst [vmem:[#allocation1] ss:$2 sm:$0xff] %v196
        %v695 = vld.sshfl [vmem:[#allocation1] sm:$0xff pattern:$0x75316420]
        %v696 = vld.sshfl [vmem:[#allocation1 + $0x8] sm:$0xff pattern:$0x75316420]
        %699 = vrot.lane.b32.xlu0 %v695, 112
        %v700 = vpop.permute.xlu0 %699
        %701 = vrot.lane.b32.xlu0 %v696, 112
        %v702 = vpop.permute.xlu0 %701
        %vm703 = vcmp.lt.s32.totalorder %v208, 112
        %v704 = vsel %vm703, %v700, %v702
        %v705 = vsel %vm703, %v702, %v700
        %s706 = scalar_lea.vmem %s3, 14
        %v707 = vld [vmem:[%s706] sm:$0x3]
        %v709 = vperm.slane %v707, 0
        %v710 = vperm.slane %v707, 1
        %v713 = vmul.f32 %v704, %v709
        %v714 = vmul.f32 %v705, %v710
        %s715 = scalar_lea.vmem %s1, 28
        %v716 = vld [vmem:[%s715] sm:$0xf]
        %v718 = vsel %vm244, %v716, 0
        %v721 = vsel %vm248, %v713, 0
        %v724 = vsel %vm248, %v714, 0
        %726 = vmatpush.msra.mxu0 0.0
        %727 = vmatpush.msra.mxu0 0.0
        %728 = vmatpush.msra.mxu0 0.0
        %729 = vmatpush.msra.mxu0 0.0
        %730 = vmatpush.msra.mxu0 0.0
        %731 = vmatpush.msra.mxu0 0.0
        %732 = vmatpush.msra.mxu0 0.0
        %733 = vmatpush.msra.mxu0 0.0
        %734 = vmatpush.msra.mxu0 0.0
        %735 = vmatpush.msra.mxu0 0.0
        %736 = vmatpush.msra.mxu0 0.0
        %737 = vmatpush.msra.mxu0 0.0
        %738 = vmatpush.msra.mxu0 0.0
        %739 = vmatpush.msra.mxu0 0.0
        %740 = vmatpush.msra.mxu0 0.0
        %741 = vmatpush.msra.mxu0 %v721
        %742 = vmatmul.f32.gmra.mxu0 %v718
        %v743 = vpop.f32.mrf.mxu0
        %v744 = vadd.f32 0.0, %v743
        %745 = vdwg.mxu0
        %746 = vmatpush.msra.mxu0 0.0
        %747 = vmatpush.msra.mxu0 0.0
        %748 = vmatpush.msra.mxu0 0.0
        %749 = vmatpush.msra.mxu0 0.0
        %750 = vmatpush.msra.mxu0 0.0
        %751 = vmatpush.msra.mxu0 0.0
        %752 = vmatpush.msra.mxu0 0.0
        %753 = vmatpush.msra.mxu0 0.0
        %754 = vmatpush.msra.mxu0 0.0
        %755 = vmatpush.msra.mxu0 0.0
        %756 = vmatpush.msra.mxu0 0.0
        %757 = vmatpush.msra.mxu0 0.0
        %758 = vmatpush.msra.mxu0 0.0
        %759 = vmatpush.msra.mxu0 0.0
        %760 = vmatpush.msra.mxu0 0.0
        %761 = vmatpush.msra.mxu0 %v724
        %762 = vmatmul.f32.gmra.mxu0 %v718
        %v763 = vpop.f32.mrf.mxu0
        %v764 = vadd.f32 0.0, %v763
        %765 = vdwg.mxu0
        %v766 = vadd.f32 %v692, %v744
        %v767 = vadd.f32 %v693, %v764
        %768 = vst [vmem:[#allocation1] ss:$2 sm:$0xff] %v196
        %v769 = vld.sshfl [vmem:[#allocation1] sm:$0xff pattern:$0x75316420]
        %v770 = vld.sshfl [vmem:[#allocation1 + $0x8] sm:$0xff pattern:$0x75316420]
        %773 = vrot.lane.b32.xlu0 %v769, 111
        %v774 = vpop.permute.xlu0 %773
        %775 = vrot.lane.b32.xlu0 %v770, 111
        %v776 = vpop.permute.xlu0 %775
        %vm777 = vcmp.lt.s32.totalorder %v208, 111
        %v778 = vsel %vm777, %v774, %v776
        %v779 = vsel %vm777, %v776, %v774
        %s780 = scalar_lea.vmem %s3, 16
        %v781 = vld [vmem:[%s780] sm:$0x3]
        %v783 = vperm.slane %v781, 0
        %v784 = vperm.slane %v781, 1
        %v787 = vmul.f32 %v778, %v783
        %v788 = vmul.f32 %v779, %v784
        %s789 = scalar_lea.vmem %s1, 32
        %v790 = vld [vmem:[%s789] sm:$0xf]
        %v792 = vsel %vm244, %v790, 0
        %v795 = vsel %vm248, %v787, 0
        %v798 = vsel %vm248, %v788, 0
        %800 = vmatpush.msra.mxu0 0.0
        %801 = vmatpush.msra.mxu0 0.0
        %802 = vmatpush.msra.mxu0 0.0
        %803 = vmatpush.msra.mxu0 0.0
        %804 = vmatpush.msra.mxu0 0.0
        %805 = vmatpush.msra.mxu0 0.0
        %806 = vmatpush.msra.mxu0 0.0
        %807 = vmatpush.msra.mxu0 0.0
        %808 = vmatpush.msra.mxu0 0.0
        %809 = vmatpush.msra.mxu0 0.0
        %810 = vmatpush.msra.mxu0 0.0
        %811 = vmatpush.msra.mxu0 0.0
        %812 = vmatpush.msra.mxu0 0.0
        %813 = vmatpush.msra.mxu0 0.0
        %814 = vmatpush.msra.mxu0 0.0
        %815 = vmatpush.msra.mxu0 %v795
        %816 = vmatmul.f32.gmra.mxu0 %v792
        %v817 = vpop.f32.mrf.mxu0
        %v818 = vadd.f32 0.0, %v817
        %819 = vdwg.mxu0
        %820 = vmatpush.msra.mxu0 0.0
        %821 = vmatpush.msra.mxu0 0.0
        %822 = vmatpush.msra.mxu0 0.0
        %823 = vmatpush.msra.mxu0 0.0
        %824 = vmatpush.msra.mxu0 0.0
        %825 = vmatpush.msra.mxu0 0.0
        %826 = vmatpush.msra.mxu0 0.0
        %827 = vmatpush.msra.mxu0 0.0
        %828 = vmatpush.msra.mxu0 0.0
        %829 = vmatpush.msra.mxu0 0.0
        %830 = vmatpush.msra.mxu0 0.0
        %831 = vmatpush.msra.mxu0 0.0
        %832 = vmatpush.msra.mxu0 0.0
        %833 = vmatpush.msra.mxu0 0.0
        %834 = vmatpush.msra.mxu0 0.0
        %835 = vmatpush.msra.mxu0 %v798
        %836 = vmatmul.f32.gmra.mxu0 %v792
        %v837 = vpop.f32.mrf.mxu0
        %v838 = vadd.f32 0.0, %v837
        %839 = vdwg.mxu0
        %v840 = vadd.f32 %v766, %v818
        %v841 = vadd.f32 %v767, %v838
        %v842 = vld [vmem:[%s2] sm:$0xf]
        %844 = vset.pattern.permute.xlu0 0
        %845 = vperm.xlu0 %844, %v842
        %v846 = vpop.permute.xlu0 %845
        %v848 = vadd.f32 %v840, %v846
        %v849 = vadd.f32 %v841, %v846
        %v850 = vmax.f32 %v848, 0.0
        %v851 = vmax.f32 %v849, 0.0
        %v854 = vrot.slane %v851, 4
        %v855 = vsel %vm248, %v850, %v854
        %v857 = vadd.f32 %v196, %v855
        %858 = vrot.lane.b32.xlu0 %v850, 34
        %v859 = vpop.permute.xlu0 %858
        %860 = vrot.lane.b32.xlu0 %v851, 34
        %v861 = vpop.permute.xlu0 %860
        %vm862 = vcmp.lt.s32.totalorder %v208, 34
        %v863 = vsel %vm862, %v859, %v861
        %v864 = vsel %vm862, %v861, %v859
        %s865 = scalar_lea.vmem %s3, 18
        %v866 = vld [vmem:[%s865] sm:$0x3]
        %v868 = vperm.slane %v866, 0
        %v869 = vperm.slane %v866, 1
        %v872 = vmul.f32 %v864, %v868
        %v873 = vmul.f32 %v863, %v869
        %s874 = scalar_lea.vmem %s1, 36
        %v875 = vld [vmem:[%s874] sm:$0xf]
        %876 = vrot.lane.b32.xlu0 %v850, 32
        %v877 = vpop.permute.xlu0 %876
        %878 = vrot.lane.b32.xlu0 %v851, 32
        %v879 = vpop.permute.xlu0 %878
        %vm880 = vcmp.lt.s32.totalorder %v208, 32
        %v881 = vsel %vm880, %v877, %v879
        %v882 = vsel %vm880, %v879, %v877
        %s883 = scalar_lea.vmem %s3, 20
        %v884 = vld [vmem:[%s883] sm:$0x3]
        %v886 = vperm.slane %v884, 0
        %v887 = vperm.slane %v884, 1
        %v890 = vmul.f32 %v882, %v886
        %v891 = vmul.f32 %v881, %v887
        %s892 = scalar_lea.vmem %s1, 40
        %v893 = vld [vmem:[%s892] sm:$0xf]
        %v895 = vsel %vm244, %v893, 0
        %v898 = vsel %vm248, %v890, 0
        %v901 = vsel %vm248, %v891, 0
        %903 = vmatpush.msra.mxu0 0.0
        %904 = vmatpush.msra.mxu0 0.0
        %905 = vmatpush.msra.mxu0 0.0
        %906 = vmatpush.msra.mxu0 0.0
        %907 = vmatpush.msra.mxu0 0.0
        %908 = vmatpush.msra.mxu0 0.0
        %909 = vmatpush.msra.mxu0 0.0
        %910 = vmatpush.msra.mxu0 0.0
        %911 = vmatpush.msra.mxu0 0.0
        %912 = vmatpush.msra.mxu0 0.0
        %913 = vmatpush.msra.mxu0 0.0
        %914 = vmatpush.msra.mxu0 0.0
        %915 = vmatpush.msra.mxu0 0.0
        %916 = vmatpush.msra.mxu0 0.0
        %917 = vmatpush.msra.mxu0 0.0
        %918 = vmatpush.msra.mxu0 %v898
        %919 = vmatmul.f32.gmra.mxu0 %v895
        %v920 = vpop.f32.mrf.mxu0
        %v921 = vadd.f32 0.0, %v920
        %922 = vdwg.mxu0
        %923 = vmatpush.msra.mxu0 0.0
        %924 = vmatpush.msra.mxu0 0.0
        %925 = vmatpush.msra.mxu0 0.0
        %926 = vmatpush.msra.mxu0 0.0
        %927 = vmatpush.msra.mxu0 0.0
        %928 = vmatpush.msra.mxu0 0.0
        %929 = vmatpush.msra.mxu0 0.0
        %930 = vmatpush.msra.mxu0 0.0
        %931 = vmatpush.msra.mxu0 0.0
        %932 = vmatpush.msra.mxu0 0.0
        %933 = vmatpush.msra.mxu0 0.0
        %934 = vmatpush.msra.mxu0 0.0
        %935 = vmatpush.msra.mxu0 0.0
        %936 = vmatpush.msra.mxu0 0.0
        %937 = vmatpush.msra.mxu0 0.0
        %938 = vmatpush.msra.mxu0 %v901
        %939 = vmatmul.f32.gmra.mxu0 %v895
        %v940 = vpop.f32.mrf.mxu0
        %v941 = vadd.f32 0.0, %v940
        %942 = vdwg.mxu0
        %v944 = vsel %vm244, %v875, 0
        %v947 = vsel %vm248, %v872, 0
        %v950 = vsel %vm248, %v873, 0
        %952 = vmatpush.msra.mxu0 0.0
        %953 = vmatpush.msra.mxu0 0.0
        %954 = vmatpush.msra.mxu0 0.0
        %955 = vmatpush.msra.mxu0 0.0
        %956 = vmatpush.msra.mxu0 0.0
        %957 = vmatpush.msra.mxu0 0.0
        %958 = vmatpush.msra.mxu0 0.0
        %959 = vmatpush.msra.mxu0 0.0
        %960 = vmatpush.msra.mxu0 0.0
        %961 = vmatpush.msra.mxu0 0.0
        %962 = vmatpush.msra.mxu0 0.0
        %963 = vmatpush.msra.mxu0 0.0
        %964 = vmatpush.msra.mxu0 0.0
        %965 = vmatpush.msra.mxu0 0.0
        %966 = vmatpush.msra.mxu0 0.0
        %967 = vmatpush.msra.mxu0 %v947
        %968 = vmatmul.f32.gmra.mxu0 %v944
        %v969 = vpop.f32.mrf.mxu0
        %v970 = vadd.f32 %v921, %v969
        %971 = vdwg.mxu0
        %972 = vmatpush.msra.mxu0 0.0
        %973 = vmatpush.msra.mxu0 0.0
        %974 = vmatpush.msra.mxu0 0.0
        %975 = vmatpush.msra.mxu0 0.0
        %976 = vmatpush.msra.mxu0 0.0
        %977 = vmatpush.msra.mxu0 0.0
        %978 = vmatpush.msra.mxu0 0.0
        %979 = vmatpush.msra.mxu0 0.0
        %980 = vmatpush.msra.mxu0 0.0
        %981 = vmatpush.msra.mxu0 0.0
        %982 = vmatpush.msra.mxu0 0.0
        %983 = vmatpush.msra.mxu0 0.0
        %984 = vmatpush.msra.mxu0 0.0
        %985 = vmatpush.msra.mxu0 0.0
        %986 = vmatpush.msra.mxu0 0.0
        %987 = vmatpush.msra.mxu0 %v950
        %988 = vmatmul.f32.gmra.mxu0 %v944
        %v989 = vpop.f32.mrf.mxu0
        %v990 = vadd.f32 %v941, %v989
        %991 = vdwg.mxu0
        %992 = vrot.lane.b32.xlu0 %v850, 30
        %v993 = vpop.permute.xlu0 %992
        %994 = vrot.lane.b32.xlu0 %v851, 30
        %v995 = vpop.permute.xlu0 %994
        %vm996 = vcmp.lt.s32.totalorder %v208, 30
        %v997 = vsel %vm996, %v993, %v995
        %v998 = vsel %vm996, %v995, %v993
        %s999 = scalar_lea.vmem %s3, 22
        %v1000 = vld [vmem:[%s999] sm:$0x3]
        %v1002 = vperm.slane %v1000, 0
        %v1003 = vperm.slane %v1000, 1
        %v1006 = vmul.f32 %v998, %v1002
        %v1007 = vmul.f32 %v997, %v1003
        %s1008 = scalar_lea.vmem %s1, 44
        %v1009 = vld [vmem:[%s1008] sm:$0xf]
        %v1011 = vsel %vm244, %v1009, 0
        %v1014 = vsel %vm248, %v1006, 0
        %v1017 = vsel %vm248, %v1007, 0
        %1019 = vmatpush.msra.mxu0 0.0
        %1020 = vmatpush.msra.mxu0 0.0
        %1021 = vmatpush.msra.mxu0 0.0
        %1022 = vmatpush.msra.mxu0 0.0
        %1023 = vmatpush.msra.mxu0 0.0
        %1024 = vmatpush.msra.mxu0 0.0
        %1025 = vmatpush.msra.mxu0 0.0
        %1026 = vmatpush.msra.mxu0 0.0
        %1027 = vmatpush.msra.mxu0 0.0
        %1028 = vmatpush.msra.mxu0 0.0
        %1029 = vmatpush.msra.mxu0 0.0
        %1030 = vmatpush.msra.mxu0 0.0
        %1031 = vmatpush.msra.mxu0 0.0
        %1032 = vmatpush.msra.mxu0 0.0
        %1033 = vmatpush.msra.mxu0 0.0
        %1034 = vmatpush.msra.mxu0 %v1014
        %1035 = vmatmul.f32.gmra.mxu0 %v1011
        %v1036 = vpop.f32.mrf.mxu0
        %v1037 = vadd.f32 0.0, %v1036
        %1038 = vdwg.mxu0
        %1039 = vmatpush.msra.mxu0 0.0
        %1040 = vmatpush.msra.mxu0 0.0
        %1041 = vmatpush.msra.mxu0 0.0
        %1042 = vmatpush.msra.mxu0 0.0
        %1043 = vmatpush.msra.mxu0 0.0
        %1044 = vmatpush.msra.mxu0 0.0
        %1045 = vmatpush.msra.mxu0 0.0
        %1046 = vmatpush.msra.mxu0 0.0
        %1047 = vmatpush.msra.mxu0 0.0
        %1048 = vmatpush.msra.mxu0 0.0
        %1049 = vmatpush.msra.mxu0 0.0
        %1050 = vmatpush.msra.mxu0 0.0
        %1051 = vmatpush.msra.mxu0 0.0
        %1052 = vmatpush.msra.mxu0 0.0
        %1053 = vmatpush.msra.mxu0 0.0
        %1054 = vmatpush.msra.mxu0 %v1017
        %1055 = vmatmul.f32.gmra.mxu0 %v1011
        %v1056 = vpop.f32.mrf.mxu0
        %v1057 = vadd.f32 0.0, %v1056
        %1058 = vdwg.mxu0
        %v1059 = vadd.f32 %v970, %v1037
        %v1060 = vadd.f32 %v990, %v1057
        %1061 = vrot.lane.b32.xlu0 %v850, 2
        %v1062 = vpop.permute.xlu0 %1061
        %1063 = vrot.lane.b32.xlu0 %v851, 2
        %v1064 = vpop.permute.xlu0 %1063
        %vm1065 = vcmp.lt.s32.totalorder %v208, 2
        %v1066 = vsel %vm1065, %v1062, %v1064
        %v1067 = vsel %vm1065, %v1064, %v1062
        %s1068 = scalar_lea.vmem %s3, 24
        %v1069 = vld [vmem:[%s1068] sm:$0x3]
        %v1071 = vperm.slane %v1069, 0
        %v1072 = vperm.slane %v1069, 1
        %v1075 = vmul.f32 %v1067, %v1071
        %v1076 = vmul.f32 %v1066, %v1072
        %s1077 = scalar_lea.vmem %s1, 48
        %v1078 = vld [vmem:[%s1077] sm:$0xf]
        %v1080 = vsel %vm244, %v1078, 0
        %v1083 = vsel %vm248, %v1075, 0
        %v1086 = vsel %vm248, %v1076, 0
        %1088 = vmatpush.msra.mxu0 0.0
        %1089 = vmatpush.msra.mxu0 0.0
        %1090 = vmatpush.msra.mxu0 0.0
        %1091 = vmatpush.msra.mxu0 0.0
        %1092 = vmatpush.msra.mxu0 0.0
        %1093 = vmatpush.msra.mxu0 0.0
        %1094 = vmatpush.msra.mxu0 0.0
        %1095 = vmatpush.msra.mxu0 0.0
        %1096 = vmatpush.msra.mxu0 0.0
        %1097 = vmatpush.msra.mxu0 0.0
        %1098 = vmatpush.msra.mxu0 0.0
        %1099 = vmatpush.msra.mxu0 0.0
        %1100 = vmatpush.msra.mxu0 0.0
        %1101 = vmatpush.msra.mxu0 0.0
        %1102 = vmatpush.msra.mxu0 0.0
        %1103 = vmatpush.msra.mxu0 %v1083
        %1104 = vmatmul.f32.gmra.mxu0 %v1080
        %v1105 = vpop.f32.mrf.mxu0
        %v1106 = vadd.f32 0.0, %v1105
        %1107 = vdwg.mxu0
        %1108 = vmatpush.msra.mxu0 0.0
        %1109 = vmatpush.msra.mxu0 0.0
        %1110 = vmatpush.msra.mxu0 0.0
        %1111 = vmatpush.msra.mxu0 0.0
        %1112 = vmatpush.msra.mxu0 0.0
        %1113 = vmatpush.msra.mxu0 0.0
        %1114 = vmatpush.msra.mxu0 0.0
        %1115 = vmatpush.msra.mxu0 0.0
        %1116 = vmatpush.msra.mxu0 0.0
        %1117 = vmatpush.msra.mxu0 0.0
        %1118 = vmatpush.msra.mxu0 0.0
        %1119 = vmatpush.msra.mxu0 0.0
        %1120 = vmatpush.msra.mxu0 0.0
        %1121 = vmatpush.msra.mxu0 0.0
        %1122 = vmatpush.msra.mxu0 0.0
        %1123 = vmatpush.msra.mxu0 %v1086
        %1124 = vmatmul.f32.gmra.mxu0 %v1080
        %v1125 = vpop.f32.mrf.mxu0
        %v1126 = vadd.f32 0.0, %v1125
        %1127 = vdwg.mxu0
        %v1128 = vadd.f32 %v1059, %v1106
        %v1129 = vadd.f32 %v1060, %v1126
        %s1130 = scalar_lea.vmem %s1, 52
        %v1131 = vld [vmem:[%s1130] sm:$0xf]
        %v1133 = vsel %vm244, %v1131, 0
        %v1135 = vsel %vm248, %v850, 0
        %v1137 = vsel %vm248, %v851, 0
        %1139 = vmatpush.msra.mxu0 0.0
        %1140 = vmatpush.msra.mxu0 0.0
        %1141 = vmatpush.msra.mxu0 0.0
        %1142 = vmatpush.msra.mxu0 0.0
        %1143 = vmatpush.msra.mxu0 0.0
        %1144 = vmatpush.msra.mxu0 0.0
        %1145 = vmatpush.msra.mxu0 0.0
        %1146 = vmatpush.msra.mxu0 0.0
        %1147 = vmatpush.msra.mxu0 0.0
        %1148 = vmatpush.msra.mxu0 0.0
        %1149 = vmatpush.msra.mxu0 0.0
        %1150 = vmatpush.msra.mxu0 0.0
        %1151 = vmatpush.msra.mxu0 0.0
        %1152 = vmatpush.msra.mxu0 0.0
        %1153 = vmatpush.msra.mxu0 0.0
        %1154 = vmatpush.msra.mxu0 %v1135
        %1155 = vmatmul.f32.gmra.mxu0 %v1133
        %v1156 = vpop.f32.mrf.mxu0
        %v1157 = vadd.f32 0.0, %v1156
        %1158 = vdwg.mxu0
        %1159 = vmatpush.msra.mxu0 0.0
        %1160 = vmatpush.msra.mxu0 0.0
        %1161 = vmatpush.msra.mxu0 0.0
        %1162 = vmatpush.msra.mxu0 0.0
        %1163 = vmatpush.msra.mxu0 0.0
        %1164 = vmatpush.msra.mxu0 0.0
        %1165 = vmatpush.msra.mxu0 0.0
        %1166 = vmatpush.msra.mxu0 0.0
        %1167 = vmatpush.msra.mxu0 0.0
        %1168 = vmatpush.msra.mxu0 0.0
        %1169 = vmatpush.msra.mxu0 0.0
        %1170 = vmatpush.msra.mxu0 0.0
        %1171 = vmatpush.msra.mxu0 0.0
        %1172 = vmatpush.msra.mxu0 0.0
        %1173 = vmatpush.msra.mxu0 0.0
        %1174 = vmatpush.msra.mxu0 %v1137
        %1175 = vmatmul.f32.gmra.mxu0 %v1133
        %v1176 = vpop.f32.mrf.mxu0
        %v1177 = vadd.f32 0.0, %v1176
        %1178 = vdwg.mxu0
        %v1179 = vadd.f32 %v1128, %v1157
        %v1180 = vadd.f32 %v1129, %v1177
        %1181 = vrot.lane.b32.xlu0 %v850, 126
        %v1182 = vpop.permute.xlu0 %1181
        %1183 = vrot.lane.b32.xlu0 %v851, 126
        %v1184 = vpop.permute.xlu0 %1183
        %vm1185 = vcmp.lt.s32.totalorder %v208, 126
        %v1186 = vsel %vm1185, %v1182, %v1184
        %v1187 = vsel %vm1185, %v1184, %v1182
        %s1188 = scalar_lea.vmem %s3, 28
        %v1189 = vld [vmem:[%s1188] sm:$0x3]
        %v1191 = vperm.slane %v1189, 0
        %v1192 = vperm.slane %v1189, 1
        %v1195 = vmul.f32 %v1186, %v1191
        %v1196 = vmul.f32 %v1187, %v1192
        %s1197 = scalar_lea.vmem %s1, 56
        %v1198 = vld [vmem:[%s1197] sm:$0xf]
        %v1200 = vsel %vm244, %v1198, 0
        %v1203 = vsel %vm248, %v1195, 0
        %v1206 = vsel %vm248, %v1196, 0
        %1208 = vmatpush.msra.mxu0 0.0
        %1209 = vmatpush.msra.mxu0 0.0
        %1210 = vmatpush.msra.mxu0 0.0
        %1211 = vmatpush.msra.mxu0 0.0
        %1212 = vmatpush.msra.mxu0 0.0
        %1213 = vmatpush.msra.mxu0 0.0
        %1214 = vmatpush.msra.mxu0 0.0
        %1215 = vmatpush.msra.mxu0 0.0
        %1216 = vmatpush.msra.mxu0 0.0
        %1217 = vmatpush.msra.mxu0 0.0
        %1218 = vmatpush.msra.mxu0 0.0
        %1219 = vmatpush.msra.mxu0 0.0
        %1220 = vmatpush.msra.mxu0 0.0
        %1221 = vmatpush.msra.mxu0 0.0
        %1222 = vmatpush.msra.mxu0 0.0
        %1223 = vmatpush.msra.mxu0 %v1203
        %1224 = vmatmul.f32.gmra.mxu0 %v1200
        %v1225 = vpop.f32.mrf.mxu0
        %v1226 = vadd.f32 0.0, %v1225
        %1227 = vdwg.mxu0
        %1228 = vmatpush.msra.mxu0 0.0
        %1229 = vmatpush.msra.mxu0 0.0
        %1230 = vmatpush.msra.mxu0 0.0
        %1231 = vmatpush.msra.mxu0 0.0
        %1232 = vmatpush.msra.mxu0 0.0
        %1233 = vmatpush.msra.mxu0 0.0
        %1234 = vmatpush.msra.mxu0 0.0
        %1235 = vmatpush.msra.mxu0 0.0
        %1236 = vmatpush.msra.mxu0 0.0
        %1237 = vmatpush.msra.mxu0 0.0
        %1238 = vmatpush.msra.mxu0 0.0
        %1239 = vmatpush.msra.mxu0 0.0
        %1240 = vmatpush.msra.mxu0 0.0
        %1241 = vmatpush.msra.mxu0 0.0
        %1242 = vmatpush.msra.mxu0 0.0
        %1243 = vmatpush.msra.mxu0 %v1206
        %1244 = vmatmul.f32.gmra.mxu0 %v1200
        %v1245 = vpop.f32.mrf.mxu0
        %v1246 = vadd.f32 0.0, %v1245
        %1247 = vdwg.mxu0
        %v1248 = vadd.f32 %v1179, %v1226
        %v1249 = vadd.f32 %v1180, %v1246
        %1250 = vrot.lane.b32.xlu0 %v850, 98
        %v1251 = vpop.permute.xlu0 %1250
        %1252 = vrot.lane.b32.xlu0 %v851, 98
        %v1253 = vpop.permute.xlu0 %1252
        %vm1254 = vcmp.lt.s32.totalorder %v208, 98
        %v1255 = vsel %vm1254, %v1251, %v1253
        %v1256 = vsel %vm1254, %v1253, %v1251
        %s1257 = scalar_lea.vmem %s3, 30
        %v1258 = vld [vmem:[%s1257] sm:$0x3]
        %v1260 = vperm.slane %v1258, 0
        %v1261 = vperm.slane %v1258, 1
        %v1264 = vmul.f32 %v1255, %v1260
        %v1265 = vmul.f32 %v1256, %v1261
        %s1266 = scalar_lea.vmem %s1, 60
        %v1267 = vld [vmem:[%s1266] sm:$0xf]
        %v1269 = vsel %vm244, %v1267, 0
        %v1272 = vsel %vm248, %v1264, 0
        %v1275 = vsel %vm248, %v1265, 0
        %1277 = vmatpush.msra.mxu0 0.0
        %1278 = vmatpush.msra.mxu0 0.0
        %1279 = vmatpush.msra.mxu0 0.0
        %1280 = vmatpush.msra.mxu0 0.0
        %1281 = vmatpush.msra.mxu0 0.0
        %1282 = vmatpush.msra.mxu0 0.0
        %1283 = vmatpush.msra.mxu0 0.0
        %1284 = vmatpush.msra.mxu0 0.0
        %1285 = vmatpush.msra.mxu0 0.0
        %1286 = vmatpush.msra.mxu0 0.0
        %1287 = vmatpush.msra.mxu0 0.0
        %1288 = vmatpush.msra.mxu0 0.0
        %1289 = vmatpush.msra.mxu0 0.0
        %1290 = vmatpush.msra.mxu0 0.0
        %1291 = vmatpush.msra.mxu0 0.0
        %1292 = vmatpush.msra.mxu0 %v1272
        %1293 = vmatmul.f32.gmra.mxu0 %v1269
        %v1294 = vpop.f32.mrf.mxu0
        %v1295 = vadd.f32 0.0, %v1294
        %1296 = vdwg.mxu0
        %1297 = vmatpush.msra.mxu0 0.0
        %1298 = vmatpush.msra.mxu0 0.0
        %1299 = vmatpush.msra.mxu0 0.0
        %1300 = vmatpush.msra.mxu0 0.0
        %1301 = vmatpush.msra.mxu0 0.0
        %1302 = vmatpush.msra.mxu0 0.0
        %1303 = vmatpush.msra.mxu0 0.0
        %1304 = vmatpush.msra.mxu0 0.0
        %1305 = vmatpush.msra.mxu0 0.0
        %1306 = vmatpush.msra.mxu0 0.0
        %1307 = vmatpush.msra.mxu0 0.0
        %1308 = vmatpush.msra.mxu0 0.0
        %1309 = vmatpush.msra.mxu0 0.0
        %1310 = vmatpush.msra.mxu0 0.0
        %1311 = vmatpush.msra.mxu0 0.0
        %1312 = vmatpush.msra.mxu0 %v1275
        %1313 = vmatmul.f32.gmra.mxu0 %v1269
        %v1314 = vpop.f32.mrf.mxu0
        %v1315 = vadd.f32 0.0, %v1314
        %1316 = vdwg.mxu0
        %v1317 = vadd.f32 %v1248, %v1295
        %v1318 = vadd.f32 %v1249, %v1315
        %1319 = vrot.lane.b32.xlu0 %v850, 96
        %v1320 = vpop.permute.xlu0 %1319
        %1321 = vrot.lane.b32.xlu0 %v851, 96
        %v1322 = vpop.permute.xlu0 %1321
        %vm1323 = vcmp.lt.s32.totalorder %v208, 96
        %v1324 = vsel %vm1323, %v1320, %v1322
        %v1325 = vsel %vm1323, %v1322, %v1320
        %s1326 = scalar_lea.vmem %s3, 32
        %v1327 = vld [vmem:[%s1326] sm:$0x3]
        %v1329 = vperm.slane %v1327, 0
        %v1330 = vperm.slane %v1327, 1
        %v1333 = vmul.f32 %v1324, %v1329
        %v1334 = vmul.f32 %v1325, %v1330
        %s1335 = scalar_lea.vmem %s1, 64
        %v1336 = vld [vmem:[%s1335] sm:$0xf]
        %v1338 = vsel %vm244, %v1336, 0
        %v1341 = vsel %vm248, %v1333, 0
        %v1344 = vsel %vm248, %v1334, 0
        %1346 = vmatpush.msra.mxu0 0.0
        %1347 = vmatpush.msra.mxu0 0.0
        %1348 = vmatpush.msra.mxu0 0.0
        %1349 = vmatpush.msra.mxu0 0.0
        %1350 = vmatpush.msra.mxu0 0.0
        %1351 = vmatpush.msra.mxu0 0.0
        %1352 = vmatpush.msra.mxu0 0.0
        %1353 = vmatpush.msra.mxu0 0.0
        %1354 = vmatpush.msra.mxu0 0.0
        %1355 = vmatpush.msra.mxu0 0.0
        %1356 = vmatpush.msra.mxu0 0.0
        %1357 = vmatpush.msra.mxu0 0.0
        %1358 = vmatpush.msra.mxu0 0.0
        %1359 = vmatpush.msra.mxu0 0.0
        %1360 = vmatpush.msra.mxu0 0.0
        %1361 = vmatpush.msra.mxu0 %v1341
        %1362 = vmatmul.f32.gmra.mxu0 %v1338
        %v1363 = vpop.f32.mrf.mxu0
        %v1364 = vadd.f32 0.0, %v1363
        %1365 = vdwg.mxu0
        %1366 = vmatpush.msra.mxu0 0.0
        %1367 = vmatpush.msra.mxu0 0.0
        %1368 = vmatpush.msra.mxu0 0.0
        %1369 = vmatpush.msra.mxu0 0.0
        %1370 = vmatpush.msra.mxu0 0.0
        %1371 = vmatpush.msra.mxu0 0.0
        %1372 = vmatpush.msra.mxu0 0.0
        %1373 = vmatpush.msra.mxu0 0.0
        %1374 = vmatpush.msra.mxu0 0.0
        %1375 = vmatpush.msra.mxu0 0.0
        %1376 = vmatpush.msra.mxu0 0.0
        %1377 = vmatpush.msra.mxu0 0.0
        %1378 = vmatpush.msra.mxu0 0.0
        %1379 = vmatpush.msra.mxu0 0.0
        %1380 = vmatpush.msra.mxu0 0.0
        %1381 = vmatpush.msra.mxu0 %v1344
        %1382 = vmatmul.f32.gmra.mxu0 %v1338
        %v1383 = vpop.f32.mrf.mxu0
        %v1384 = vadd.f32 0.0, %v1383
        %1385 = vdwg.mxu0
        %v1386 = vadd.f32 %v1317, %v1364
        %v1387 = vadd.f32 %v1318, %v1384
        %1388 = vrot.lane.b32.xlu0 %v850, 94
        %v1389 = vpop.permute.xlu0 %1388
        %1390 = vrot.lane.b32.xlu0 %v851, 94
        %v1391 = vpop.permute.xlu0 %1390
        %vm1392 = vcmp.lt.s32.totalorder %v208, 94
        %v1393 = vsel %vm1392, %v1389, %v1391
        %v1394 = vsel %vm1392, %v1391, %v1389
        %s1395 = scalar_lea.vmem %s3, 34
        %v1396 = vld [vmem:[%s1395] sm:$0x3]
        %v1398 = vperm.slane %v1396, 0
        %v1399 = vperm.slane %v1396, 1
        %v1402 = vmul.f32 %v1393, %v1398
        %v1403 = vmul.f32 %v1394, %v1399
        %s1404 = scalar_lea.vmem %s1, 68
        %v1405 = vld [vmem:[%s1404] sm:$0xf]
        %v1407 = vsel %vm244, %v1405, 0
        %v1410 = vsel %vm248, %v1402, 0
        %v1413 = vsel %vm248, %v1403, 0
        %1415 = vmatpush.msra.mxu0 0.0
        %1416 = vmatpush.msra.mxu0 0.0
        %1417 = vmatpush.msra.mxu0 0.0
        %1418 = vmatpush.msra.mxu0 0.0
        %1419 = vmatpush.msra.mxu0 0.0
        %1420 = vmatpush.msra.mxu0 0.0
        %1421 = vmatpush.msra.mxu0 0.0
        %1422 = vmatpush.msra.mxu0 0.0
        %1423 = vmatpush.msra.mxu0 0.0
        %1424 = vmatpush.msra.mxu0 0.0
        %1425 = vmatpush.msra.mxu0 0.0
        %1426 = vmatpush.msra.mxu0 0.0
        %1427 = vmatpush.msra.mxu0 0.0
        %1428 = vmatpush.msra.mxu0 0.0
        %1429 = vmatpush.msra.mxu0 0.0
        %1430 = vmatpush.msra.mxu0 %v1410
        %1431 = vmatmul.f32.gmra.mxu0 %v1407
        %v1432 = vpop.f32.mrf.mxu0
        %v1433 = vadd.f32 0.0, %v1432
        %1434 = vdwg.mxu0
        %1435 = vmatpush.msra.mxu0 0.0
        %1436 = vmatpush.msra.mxu0 0.0
        %1437 = vmatpush.msra.mxu0 0.0
        %1438 = vmatpush.msra.mxu0 0.0
        %1439 = vmatpush.msra.mxu0 0.0
        %1440 = vmatpush.msra.mxu0 0.0
        %1441 = vmatpush.msra.mxu0 0.0
        %1442 = vmatpush.msra.mxu0 0.0
        %1443 = vmatpush.msra.mxu0 0.0
        %1444 = vmatpush.msra.mxu0 0.0
        %1445 = vmatpush.msra.mxu0 0.0
        %1446 = vmatpush.msra.mxu0 0.0
        %1447 = vmatpush.msra.mxu0 0.0
        %1448 = vmatpush.msra.mxu0 0.0
        %1449 = vmatpush.msra.mxu0 0.0
        %1450 = vmatpush.msra.mxu0 %v1413
        %1451 = vmatmul.f32.gmra.mxu0 %v1407
        %v1452 = vpop.f32.mrf.mxu0
        %v1453 = vadd.f32 0.0, %v1452
        %1454 = vdwg.mxu0
        %v1455 = vadd.f32 %v1386, %v1433
        %v1456 = vadd.f32 %v1387, %v1453
        %s1457 = scalar_lea.vmem %s2, 4
        %v1458 = vld [vmem:[%s1457] sm:$0xf]
        %1460 = vset.pattern.permute.xlu0 0
        %1461 = vperm.xlu0 %1460, %v1458
        %v1462 = vpop.permute.xlu0 %1461
        %v1464 = vadd.f32 %v1455, %v1462
        %v1465 = vadd.f32 %v1456, %v1462
        %v1466 = vmax.f32 %v1464, 0.0
        %v1467 = vmax.f32 %v1465, 0.0
        %v1470 = vrot.slane %v1467, 4
        %v1471 = vsel %vm248, %v1466, %v1470
        %v1473 = vadd.f32 %v857, %v1471
        %1474 = vrot.lane.b32.xlu0 %v1466, 68
        %v1475 = vpop.permute.xlu0 %1474
        %1476 = vrot.lane.b32.xlu0 %v1467, 68
        %v1477 = vpop.permute.xlu0 %1476
        %vm1478 = vcmp.lt.s32.totalorder %v208, 68
        %v1479 = vsel %vm1478, %v1475, %v1477
        %v1480 = vsel %vm1478, %v1477, %v1475
        %s1481 = scalar_lea.vmem %s3, 36
        %v1482 = vld [vmem:[%s1481] sm:$0x3]
        %v1484 = vperm.slane %v1482, 0
        %v1485 = vperm.slane %v1482, 1
        %v1488 = vmul.f32 %v1480, %v1484
        %v1489 = vmul.f32 %v1479, %v1485
        %s1490 = scalar_lea.vmem %s1, 72
        %v1491 = vld [vmem:[%s1490] sm:$0xf]
        %1492 = vrot.lane.b32.xlu0 %v1466, 64
        %v1493 = vpop.permute.xlu0 %1492
        %1494 = vrot.lane.b32.xlu0 %v1467, 64
        %v1495 = vpop.permute.xlu0 %1494
        %vm1496 = vcmp.lt.s32.totalorder %v208, 64
        %v1497 = vsel %vm1496, %v1493, %v1495
        %v1498 = vsel %vm1496, %v1495, %v1493
        %s1499 = scalar_lea.vmem %s3, 38
        %v1500 = vld [vmem:[%s1499] sm:$0x3]
        %v1502 = vperm.slane %v1500, 0
        %v1503 = vperm.slane %v1500, 1
        %v1506 = vmul.f32 %v1498, %v1502
        %v1507 = vmul.f32 %v1497, %v1503
        %s1508 = scalar_lea.vmem %s1, 76
        %v1509 = vld [vmem:[%s1508] sm:$0xf]
        %v1511 = vsel %vm244, %v1509, 0
        %v1514 = vsel %vm248, %v1506, 0
        %v1517 = vsel %vm248, %v1507, 0
        %1519 = vmatpush.msra.mxu0 0.0
        %1520 = vmatpush.msra.mxu0 0.0
        %1521 = vmatpush.msra.mxu0 0.0
        %1522 = vmatpush.msra.mxu0 0.0
        %1523 = vmatpush.msra.mxu0 0.0
        %1524 = vmatpush.msra.mxu0 0.0
        %1525 = vmatpush.msra.mxu0 0.0
        %1526 = vmatpush.msra.mxu0 0.0
        %1527 = vmatpush.msra.mxu0 0.0
        %1528 = vmatpush.msra.mxu0 0.0
        %1529 = vmatpush.msra.mxu0 0.0
        %1530 = vmatpush.msra.mxu0 0.0
        %1531 = vmatpush.msra.mxu0 0.0
        %1532 = vmatpush.msra.mxu0 0.0
        %1533 = vmatpush.msra.mxu0 0.0
        %1534 = vmatpush.msra.mxu0 %v1514
        %1535 = vmatmul.f32.gmra.mxu0 %v1511
        %v1536 = vpop.f32.mrf.mxu0
        %v1537 = vadd.f32 0.0, %v1536
        %1538 = vdwg.mxu0
        %1539 = vmatpush.msra.mxu0 0.0
        %1540 = vmatpush.msra.mxu0 0.0
        %1541 = vmatpush.msra.mxu0 0.0
        %1542 = vmatpush.msra.mxu0 0.0
        %1543 = vmatpush.msra.mxu0 0.0
        %1544 = vmatpush.msra.mxu0 0.0
        %1545 = vmatpush.msra.mxu0 0.0
        %1546 = vmatpush.msra.mxu0 0.0
        %1547 = vmatpush.msra.mxu0 0.0
        %1548 = vmatpush.msra.mxu0 0.0
        %1549 = vmatpush.msra.mxu0 0.0
        %1550 = vmatpush.msra.mxu0 0.0
        %1551 = vmatpush.msra.mxu0 0.0
        %1552 = vmatpush.msra.mxu0 0.0
        %1553 = vmatpush.msra.mxu0 0.0
        %1554 = vmatpush.msra.mxu0 %v1517
        %1555 = vmatmul.f32.gmra.mxu0 %v1511
        %v1556 = vpop.f32.mrf.mxu0
        %v1557 = vadd.f32 0.0, %v1556
        %1558 = vdwg.mxu0
        %v1560 = vsel %vm244, %v1491, 0
        %v1563 = vsel %vm248, %v1488, 0
        %v1566 = vsel %vm248, %v1489, 0
        %1568 = vmatpush.msra.mxu0 0.0
        %1569 = vmatpush.msra.mxu0 0.0
        %1570 = vmatpush.msra.mxu0 0.0
        %1571 = vmatpush.msra.mxu0 0.0
        %1572 = vmatpush.msra.mxu0 0.0
        %1573 = vmatpush.msra.mxu0 0.0
        %1574 = vmatpush.msra.mxu0 0.0
        %1575 = vmatpush.msra.mxu0 0.0
        %1576 = vmatpush.msra.mxu0 0.0
        %1577 = vmatpush.msra.mxu0 0.0
        %1578 = vmatpush.msra.mxu0 0.0
        %1579 = vmatpush.msra.mxu0 0.0
        %1580 = vmatpush.msra.mxu0 0.0
        %1581 = vmatpush.msra.mxu0 0.0
        %1582 = vmatpush.msra.mxu0 0.0
        %1583 = vmatpush.msra.mxu0 %v1563
        %1584 = vmatmul.f32.gmra.mxu0 %v1560
        %v1585 = vpop.f32.mrf.mxu0
        %v1586 = vadd.f32 %v1537, %v1585
        %1587 = vdwg.mxu0
        %1588 = vmatpush.msra.mxu0 0.0
        %1589 = vmatpush.msra.mxu0 0.0
        %1590 = vmatpush.msra.mxu0 0.0
        %1591 = vmatpush.msra.mxu0 0.0
        %1592 = vmatpush.msra.mxu0 0.0
        %1593 = vmatpush.msra.mxu0 0.0
        %1594 = vmatpush.msra.mxu0 0.0
        %1595 = vmatpush.msra.mxu0 0.0
        %1596 = vmatpush.msra.mxu0 0.0
        %1597 = vmatpush.msra.mxu0 0.0
        %1598 = vmatpush.msra.mxu0 0.0
        %1599 = vmatpush.msra.mxu0 0.0
        %1600 = vmatpush.msra.mxu0 0.0
        %1601 = vmatpush.msra.mxu0 0.0
        %1602 = vmatpush.msra.mxu0 0.0
        %1603 = vmatpush.msra.mxu0 %v1566
        %1604 = vmatmul.f32.gmra.mxu0 %v1560
        %v1605 = vpop.f32.mrf.mxu0
        %v1606 = vadd.f32 %v1557, %v1605
        %1607 = vdwg.mxu0
        %1608 = vrot.lane.b32.xlu0 %v1466, 60
        %v1609 = vpop.permute.xlu0 %1608
        %1610 = vrot.lane.b32.xlu0 %v1467, 60
        %v1611 = vpop.permute.xlu0 %1610
        %vm1612 = vcmp.lt.s32.totalorder %v208, 60
        %v1613 = vsel %vm1612, %v1609, %v1611
        %v1614 = vsel %vm1612, %v1611, %v1609
        %s1615 = scalar_lea.vmem %s3, 40
        %v1616 = vld [vmem:[%s1615] sm:$0x3]
        %v1618 = vperm.slane %v1616, 0
        %v1619 = vperm.slane %v1616, 1
        %v1622 = vmul.f32 %v1614, %v1618
        %v1623 = vmul.f32 %v1613, %v1619
        %s1624 = scalar_lea.vmem %s1, 80
        %v1625 = vld [vmem:[%s1624] sm:$0xf]
        %v1627 = vsel %vm244, %v1625, 0
        %v1630 = vsel %vm248, %v1622, 0
        %v1633 = vsel %vm248, %v1623, 0
        %1635 = vmatpush.msra.mxu0 0.0
        %1636 = vmatpush.msra.mxu0 0.0
        %1637 = vmatpush.msra.mxu0 0.0
        %1638 = vmatpush.msra.mxu0 0.0
        %1639 = vmatpush.msra.mxu0 0.0
        %1640 = vmatpush.msra.mxu0 0.0
        %1641 = vmatpush.msra.mxu0 0.0
        %1642 = vmatpush.msra.mxu0 0.0
        %1643 = vmatpush.msra.mxu0 0.0
        %1644 = vmatpush.msra.mxu0 0.0
        %1645 = vmatpush.msra.mxu0 0.0
        %1646 = vmatpush.msra.mxu0 0.0
        %1647 = vmatpush.msra.mxu0 0.0
        %1648 = vmatpush.msra.mxu0 0.0
        %1649 = vmatpush.msra.mxu0 0.0
        %1650 = vmatpush.msra.mxu0 %v1630
        %1651 = vmatmul.f32.gmra.mxu0 %v1627
        %v1652 = vpop.f32.mrf.mxu0
        %v1653 = vadd.f32 0.0, %v1652
        %1654 = vdwg.mxu0
        %1655 = vmatpush.msra.mxu0 0.0
        %1656 = vmatpush.msra.mxu0 0.0
        %1657 = vmatpush.msra.mxu0 0.0
        %1658 = vmatpush.msra.mxu0 0.0
        %1659 = vmatpush.msra.mxu0 0.0
        %1660 = vmatpush.msra.mxu0 0.0
        %1661 = vmatpush.msra.mxu0 0.0
        %1662 = vmatpush.msra.mxu0 0.0
        %1663 = vmatpush.msra.mxu0 0.0
        %1664 = vmatpush.msra.mxu0 0.0
        %1665 = vmatpush.msra.mxu0 0.0
        %1666 = vmatpush.msra.mxu0 0.0
        %1667 = vmatpush.msra.mxu0 0.0
        %1668 = vmatpush.msra.mxu0 0.0
        %1669 = vmatpush.msra.mxu0 0.0
        %1670 = vmatpush.msra.mxu0 %v1633
        %1671 = vmatmul.f32.gmra.mxu0 %v1627
        %v1672 = vpop.f32.mrf.mxu0
        %v1673 = vadd.f32 0.0, %v1672
        %1674 = vdwg.mxu0
        %v1675 = vadd.f32 %v1586, %v1653
        %v1676 = vadd.f32 %v1606, %v1673
        %1677 = vrot.lane.b32.xlu0 %v1466, 4
        %v1678 = vpop.permute.xlu0 %1677
        %1679 = vrot.lane.b32.xlu0 %v1467, 4
        %v1680 = vpop.permute.xlu0 %1679
        %vm1681 = vcmp.lt.s32.totalorder %v208, 4
        %v1682 = vsel %vm1681, %v1678, %v1680
        %v1683 = vsel %vm1681, %v1680, %v1678
        %s1684 = scalar_lea.vmem %s3, 42
        %v1685 = vld [vmem:[%s1684] sm:$0x3]
        %v1687 = vperm.slane %v1685, 0
        %v1688 = vperm.slane %v1685, 1
        %v1691 = vmul.f32 %v1683, %v1687
        %v1692 = vmul.f32 %v1682, %v1688
        %s1693 = scalar_lea.vmem %s1, 84
        %v1694 = vld [vmem:[%s1693] sm:$0xf]
        %v1696 = vsel %vm244, %v1694, 0
        %v1699 = vsel %vm248, %v1691, 0
        %v1702 = vsel %vm248, %v1692, 0
        %1704 = vmatpush.msra.mxu0 0.0
        %1705 = vmatpush.msra.mxu0 0.0
        %1706 = vmatpush.msra.mxu0 0.0
        %1707 = vmatpush.msra.mxu0 0.0
        %1708 = vmatpush.msra.mxu0 0.0
        %1709 = vmatpush.msra.mxu0 0.0
        %1710 = vmatpush.msra.mxu0 0.0
        %1711 = vmatpush.msra.mxu0 0.0
        %1712 = vmatpush.msra.mxu0 0.0
        %1713 = vmatpush.msra.mxu0 0.0
        %1714 = vmatpush.msra.mxu0 0.0
        %1715 = vmatpush.msra.mxu0 0.0
        %1716 = vmatpush.msra.mxu0 0.0
        %1717 = vmatpush.msra.mxu0 0.0
        %1718 = vmatpush.msra.mxu0 0.0
        %1719 = vmatpush.msra.mxu0 %v1699
        %1720 = vmatmul.f32.gmra.mxu0 %v1696
        %v1721 = vpop.f32.mrf.mxu0
        %v1722 = vadd.f32 0.0, %v1721
        %1723 = vdwg.mxu0
        %1724 = vmatpush.msra.mxu0 0.0
        %1725 = vmatpush.msra.mxu0 0.0
        %1726 = vmatpush.msra.mxu0 0.0
        %1727 = vmatpush.msra.mxu0 0.0
        %1728 = vmatpush.msra.mxu0 0.0
        %1729 = vmatpush.msra.mxu0 0.0
        %1730 = vmatpush.msra.mxu0 0.0
        %1731 = vmatpush.msra.mxu0 0.0
        %1732 = vmatpush.msra.mxu0 0.0
        %1733 = vmatpush.msra.mxu0 0.0
        %1734 = vmatpush.msra.mxu0 0.0
        %1735 = vmatpush.msra.mxu0 0.0
        %1736 = vmatpush.msra.mxu0 0.0
        %1737 = vmatpush.msra.mxu0 0.0
        %1738 = vmatpush.msra.mxu0 0.0
        %1739 = vmatpush.msra.mxu0 %v1702
        %1740 = vmatmul.f32.gmra.mxu0 %v1696
        %v1741 = vpop.f32.mrf.mxu0
        %v1742 = vadd.f32 0.0, %v1741
        %1743 = vdwg.mxu0
        %v1744 = vadd.f32 %v1675, %v1722
        %v1745 = vadd.f32 %v1676, %v1742
        %s1746 = scalar_lea.vmem %s1, 88
        %v1747 = vld [vmem:[%s1746] sm:$0xf]
        %v1749 = vsel %vm244, %v1747, 0
        %v1751 = vsel %vm248, %v1466, 0
        %v1753 = vsel %vm248, %v1467, 0
        %1755 = vmatpush.msra.mxu0 0.0
        %1756 = vmatpush.msra.mxu0 0.0
        %1757 = vmatpush.msra.mxu0 0.0
        %1758 = vmatpush.msra.mxu0 0.0
        %1759 = vmatpush.msra.mxu0 0.0
        %1760 = vmatpush.msra.mxu0 0.0
        %1761 = vmatpush.msra.mxu0 0.0
        %1762 = vmatpush.msra.mxu0 0.0
        %1763 = vmatpush.msra.mxu0 0.0
        %1764 = vmatpush.msra.mxu0 0.0
        %1765 = vmatpush.msra.mxu0 0.0
        %1766 = vmatpush.msra.mxu0 0.0
        %1767 = vmatpush.msra.mxu0 0.0
        %1768 = vmatpush.msra.mxu0 0.0
        %1769 = vmatpush.msra.mxu0 0.0
        %1770 = vmatpush.msra.mxu0 %v1751
        %1771 = vmatmul.f32.gmra.mxu0 %v1749
        %v1772 = vpop.f32.mrf.mxu0
        %v1773 = vadd.f32 0.0, %v1772
        %1774 = vdwg.mxu0
        %1775 = vmatpush.msra.mxu0 0.0
        %1776 = vmatpush.msra.mxu0 0.0
        %1777 = vmatpush.msra.mxu0 0.0
        %1778 = vmatpush.msra.mxu0 0.0
        %1779 = vmatpush.msra.mxu0 0.0
        %1780 = vmatpush.msra.mxu0 0.0
        %1781 = vmatpush.msra.mxu0 0.0
        %1782 = vmatpush.msra.mxu0 0.0
        %1783 = vmatpush.msra.mxu0 0.0
        %1784 = vmatpush.msra.mxu0 0.0
        %1785 = vmatpush.msra.mxu0 0.0
        %1786 = vmatpush.msra.mxu0 0.0
        %1787 = vmatpush.msra.mxu0 0.0
        %1788 = vmatpush.msra.mxu0 0.0
        %1789 = vmatpush.msra.mxu0 0.0
        %1790 = vmatpush.msra.mxu0 %v1753
        %1791 = vmatmul.f32.gmra.mxu0 %v1749
        %v1792 = vpop.f32.mrf.mxu0
        %v1793 = vadd.f32 0.0, %v1792
        %1794 = vdwg.mxu0
        %v1795 = vadd.f32 %v1744, %v1773
        %v1796 = vadd.f32 %v1745, %v1793
        %1797 = vrot.lane.b32.xlu0 %v1466, 124
        %v1798 = vpop.permute.xlu0 %1797
        %1799 = vrot.lane.b32.xlu0 %v1467, 124
        %v1800 = vpop.permute.xlu0 %1799
        %vm1801 = vcmp.lt.s32.totalorder %v208, 124
        %v1802 = vsel %vm1801, %v1798, %v1800
        %v1803 = vsel %vm1801, %v1800, %v1798
        %s1804 = scalar_lea.vmem %s3, 46
        %v1805 = vld [vmem:[%s1804] sm:$0x3]
        %v1807 = vperm.slane %v1805, 0
        %v1808 = vperm.slane %v1805, 1
        %v1811 = vmul.f32 %v1802, %v1807
        %v1812 = vmul.f32 %v1803, %v1808
        %s1813 = scalar_lea.vmem %s1, 92
        %v1814 = vld [vmem:[%s1813] sm:$0xf]
        %v1816 = vsel %vm244, %v1814, 0
        %v1819 = vsel %vm248, %v1811, 0
        %v1822 = vsel %vm248, %v1812, 0
        %1824 = vmatpush.msra.mxu0 0.0
        %1825 = vmatpush.msra.mxu0 0.0
        %1826 = vmatpush.msra.mxu0 0.0
        %1827 = vmatpush.msra.mxu0 0.0
        %1828 = vmatpush.msra.mxu0 0.0
        %1829 = vmatpush.msra.mxu0 0.0
        %1830 = vmatpush.msra.mxu0 0.0
        %1831 = vmatpush.msra.mxu0 0.0
        %1832 = vmatpush.msra.mxu0 0.0
        %1833 = vmatpush.msra.mxu0 0.0
        %1834 = vmatpush.msra.mxu0 0.0
        %1835 = vmatpush.msra.mxu0 0.0
        %1836 = vmatpush.msra.mxu0 0.0
        %1837 = vmatpush.msra.mxu0 0.0
        %1838 = vmatpush.msra.mxu0 0.0
        %1839 = vmatpush.msra.mxu0 %v1819
        %1840 = vmatmul.f32.gmra.mxu0 %v1816
        %v1841 = vpop.f32.mrf.mxu0
        %v1842 = vadd.f32 0.0, %v1841
        %1843 = vdwg.mxu0
        %1844 = vmatpush.msra.mxu0 0.0
        %1845 = vmatpush.msra.mxu0 0.0
        %1846 = vmatpush.msra.mxu0 0.0
        %1847 = vmatpush.msra.mxu0 0.0
        %1848 = vmatpush.msra.mxu0 0.0
        %1849 = vmatpush.msra.mxu0 0.0
        %1850 = vmatpush.msra.mxu0 0.0
        %1851 = vmatpush.msra.mxu0 0.0
        %1852 = vmatpush.msra.mxu0 0.0
        %1853 = vmatpush.msra.mxu0 0.0
        %1854 = vmatpush.msra.mxu0 0.0
        %1855 = vmatpush.msra.mxu0 0.0
        %1856 = vmatpush.msra.mxu0 0.0
        %1857 = vmatpush.msra.mxu0 0.0
        %1858 = vmatpush.msra.mxu0 0.0
        %1859 = vmatpush.msra.mxu0 %v1822
        %1860 = vmatmul.f32.gmra.mxu0 %v1816
        %v1861 = vpop.f32.mrf.mxu0
        %v1862 = vadd.f32 0.0, %v1861
        %1863 = vdwg.mxu0
        %v1864 = vadd.f32 %v1795, %v1842
        %v1865 = vadd.f32 %v1796, %v1862
        %s1866 = scalar_lea.vmem %s3, 48
        %v1867 = vld [vmem:[%s1866] sm:$0x3]
        %v1869 = vperm.slane %v1867, 0
        %v1870 = vperm.slane %v1867, 1
        %v1873 = vmul.f32 %v1479, %v1869
        %v1874 = vmul.f32 %v1480, %v1870
        %s1875 = scalar_lea.vmem %s1, 96
        %v1876 = vld [vmem:[%s1875] sm:$0xf]
        %v1878 = vsel %vm244, %v1876, 0
        %v1881 = vsel %vm248, %v1873, 0
        %v1884 = vsel %vm248, %v1874, 0
        %1886 = vmatpush.msra.mxu0 0.0
        %1887 = vmatpush.msra.mxu0 0.0
        %1888 = vmatpush.msra.mxu0 0.0
        %1889 = vmatpush.msra.mxu0 0.0
        %1890 = vmatpush.msra.mxu0 0.0
        %1891 = vmatpush.msra.mxu0 0.0
        %1892 = vmatpush.msra.mxu0 0.0
        %1893 = vmatpush.msra.mxu0 0.0
        %1894 = vmatpush.msra.mxu0 0.0
        %1895 = vmatpush.msra.mxu0 0.0
        %1896 = vmatpush.msra.mxu0 0.0
        %1897 = vmatpush.msra.mxu0 0.0
        %1898 = vmatpush.msra.mxu0 0.0
        %1899 = vmatpush.msra.mxu0 0.0
        %1900 = vmatpush.msra.mxu0 0.0
        %1901 = vmatpush.msra.mxu0 %v1881
        %1902 = vmatmul.f32.gmra.mxu0 %v1878
        %v1903 = vpop.f32.mrf.mxu0
        %v1904 = vadd.f32 0.0, %v1903
        %1905 = vdwg.mxu0
        %1906 = vmatpush.msra.mxu0 0.0
        %1907 = vmatpush.msra.mxu0 0.0
        %1908 = vmatpush.msra.mxu0 0.0
        %1909 = vmatpush.msra.mxu0 0.0
        %1910 = vmatpush.msra.mxu0 0.0
        %1911 = vmatpush.msra.mxu0 0.0
        %1912 = vmatpush.msra.mxu0 0.0
        %1913 = vmatpush.msra.mxu0 0.0
        %1914 = vmatpush.msra.mxu0 0.0
        %1915 = vmatpush.msra.mxu0 0.0
        %1916 = vmatpush.msra.mxu0 0.0
        %1917 = vmatpush.msra.mxu0 0.0
        %1918 = vmatpush.msra.mxu0 0.0
        %1919 = vmatpush.msra.mxu0 0.0
        %1920 = vmatpush.msra.mxu0 0.0
        %1921 = vmatpush.msra.mxu0 %v1884
        %1922 = vmatmul.f32.gmra.mxu0 %v1878
        %v1923 = vpop.f32.mrf.mxu0
        %v1924 = vadd.f32 0.0, %v1923
        %1925 = vdwg.mxu0
        %v1926 = vadd.f32 %v1864, %v1904
        %v1927 = vadd.f32 %v1865, %v1924
        %s1928 = scalar_lea.vmem %s3, 50
        %v1929 = vld [vmem:[%s1928] sm:$0x3]
        %v1931 = vperm.slane %v1929, 0
        %v1932 = vperm.slane %v1929, 1
        %v1935 = vmul.f32 %v1497, %v1931
        %v1936 = vmul.f32 %v1498, %v1932
        %s1937 = scalar_lea.vmem %s1, 100
        %v1938 = vld [vmem:[%s1937] sm:$0xf]
        %v1940 = vsel %vm244, %v1938, 0
        %v1943 = vsel %vm248, %v1935, 0
        %v1946 = vsel %vm248, %v1936, 0
        %1948 = vmatpush.msra.mxu0 0.0
        %1949 = vmatpush.msra.mxu0 0.0
        %1950 = vmatpush.msra.mxu0 0.0
        %1951 = vmatpush.msra.mxu0 0.0
        %1952 = vmatpush.msra.mxu0 0.0
        %1953 = vmatpush.msra.mxu0 0.0
        %1954 = vmatpush.msra.mxu0 0.0
        %1955 = vmatpush.msra.mxu0 0.0
        %1956 = vmatpush.msra.mxu0 0.0
        %1957 = vmatpush.msra.mxu0 0.0
        %1958 = vmatpush.msra.mxu0 0.0
        %1959 = vmatpush.msra.mxu0 0.0
        %1960 = vmatpush.msra.mxu0 0.0
        %1961 = vmatpush.msra.mxu0 0.0
        %1962 = vmatpush.msra.mxu0 0.0
        %1963 = vmatpush.msra.mxu0 %v1943
        %1964 = vmatmul.f32.gmra.mxu0 %v1940
        %v1965 = vpop.f32.mrf.mxu0
        %v1966 = vadd.f32 0.0, %v1965
        %1967 = vdwg.mxu0
        %1968 = vmatpush.msra.mxu0 0.0
        %1969 = vmatpush.msra.mxu0 0.0
        %1970 = vmatpush.msra.mxu0 0.0
        %1971 = vmatpush.msra.mxu0 0.0
        %1972 = vmatpush.msra.mxu0 0.0
        %1973 = vmatpush.msra.mxu0 0.0
        %1974 = vmatpush.msra.mxu0 0.0
        %1975 = vmatpush.msra.mxu0 0.0
        %1976 = vmatpush.msra.mxu0 0.0
        %1977 = vmatpush.msra.mxu0 0.0
        %1978 = vmatpush.msra.mxu0 0.0
        %1979 = vmatpush.msra.mxu0 0.0
        %1980 = vmatpush.msra.mxu0 0.0
        %1981 = vmatpush.msra.mxu0 0.0
        %1982 = vmatpush.msra.mxu0 0.0
        %1983 = vmatpush.msra.mxu0 %v1946
        %1984 = vmatmul.f32.gmra.mxu0 %v1940
        %v1985 = vpop.f32.mrf.mxu0
        %v1986 = vadd.f32 0.0, %v1985
        %1987 = vdwg.mxu0
        %v1988 = vadd.f32 %v1926, %v1966
        %v1989 = vadd.f32 %v1927, %v1986
        %s1990 = scalar_lea.vmem %s3, 52
        %v1991 = vld [vmem:[%s1990] sm:$0x3]
        %v1993 = vperm.slane %v1991, 0
        %v1994 = vperm.slane %v1991, 1
        %v1997 = vmul.f32 %v1613, %v1993
        %v1998 = vmul.f32 %v1614, %v1994
        %s1999 = scalar_lea.vmem %s1, 104
        %v2000 = vld [vmem:[%s1999] sm:$0xf]
        %v2002 = vsel %vm244, %v2000, 0
        %v2005 = vsel %vm248, %v1997, 0
        %v2008 = vsel %vm248, %v1998, 0
        %2010 = vmatpush.msra.mxu0 0.0
        %2011 = vmatpush.msra.mxu0 0.0
        %2012 = vmatpush.msra.mxu0 0.0
        %2013 = vmatpush.msra.mxu0 0.0
        %2014 = vmatpush.msra.mxu0 0.0
        %2015 = vmatpush.msra.mxu0 0.0
        %2016 = vmatpush.msra.mxu0 0.0
        %2017 = vmatpush.msra.mxu0 0.0
        %2018 = vmatpush.msra.mxu0 0.0
        %2019 = vmatpush.msra.mxu0 0.0
        %2020 = vmatpush.msra.mxu0 0.0
        %2021 = vmatpush.msra.mxu0 0.0
        %2022 = vmatpush.msra.mxu0 0.0
        %2023 = vmatpush.msra.mxu0 0.0
        %2024 = vmatpush.msra.mxu0 0.0
        %2025 = vmatpush.msra.mxu0 %v2005
        %2026 = vmatmul.f32.gmra.mxu0 %v2002
        %v2027 = vpop.f32.mrf.mxu0
        %v2028 = vadd.f32 0.0, %v2027
        %2029 = vdwg.mxu0
        %2030 = vmatpush.msra.mxu0 0.0
        %2031 = vmatpush.msra.mxu0 0.0
        %2032 = vmatpush.msra.mxu0 0.0
        %2033 = vmatpush.msra.mxu0 0.0
        %2034 = vmatpush.msra.mxu0 0.0
        %2035 = vmatpush.msra.mxu0 0.0
        %2036 = vmatpush.msra.mxu0 0.0
        %2037 = vmatpush.msra.mxu0 0.0
        %2038 = vmatpush.msra.mxu0 0.0
        %2039 = vmatpush.msra.mxu0 0.0
        %2040 = vmatpush.msra.mxu0 0.0
        %2041 = vmatpush.msra.mxu0 0.0
        %2042 = vmatpush.msra.mxu0 0.0
        %2043 = vmatpush.msra.mxu0 0.0
        %2044 = vmatpush.msra.mxu0 0.0
        %2045 = vmatpush.msra.mxu0 %v2008
        %2046 = vmatmul.f32.gmra.mxu0 %v2002
        %v2047 = vpop.f32.mrf.mxu0
        %v2048 = vadd.f32 0.0, %v2047
        %2049 = vdwg.mxu0
        %v2050 = vadd.f32 %v1988, %v2028
        %v2051 = vadd.f32 %v1989, %v2048
        %s2052 = scalar_lea.vmem %s2, 8
        %v2053 = vld [vmem:[%s2052] sm:$0xf]
        %2055 = vset.pattern.permute.xlu0 0
        %2056 = vperm.xlu0 %2055, %v2053
        %v2057 = vpop.permute.xlu0 %2056
        %v2059 = vadd.f32 %v2050, %v2057
        %v2060 = vadd.f32 %v2051, %v2057
        %v2061 = vmax.f32 %v2059, 0.0
        %v2062 = vmax.f32 %v2060, 0.0
        %v2065 = vrot.slane %v2062, 4
        %v2066 = vsel %vm248, %v2061, %v2065
        %v2068 = vadd.f32 %v1473, %v2066
        %2069 = vrot.lane.b32.xlu0 %v2061, 8
        %v2070 = vpop.permute.xlu0 %2069
        %2071 = vrot.lane.b32.xlu0 %v2062, 8
        %v2072 = vpop.permute.xlu0 %2071
        %vm2073 = vcmp.lt.s32.totalorder %v208, 8
        %v2074 = vsel %vm2073, %v2070, %v2072
        %v2075 = vsel %vm2073, %v2072, %v2070
        %s2076 = scalar_lea.vmem %s3, 54
        %v2077 = vld [vmem:[%s2076] sm:$0x3]
        %v2079 = vperm.slane %v2077, 0
        %v2080 = vperm.slane %v2077, 1
        %v2083 = vmul.f32 %v2074, %v2079
        %v2084 = vmul.f32 %v2075, %v2080
        %s2085 = scalar_lea.vmem %s1, 108
        %v2086 = vld [vmem:[%s2085] sm:$0xf]
        %s2087 = scalar_lea.vmem %s3, 56
        %v2088 = vld [vmem:[%s2087] sm:$0x3]
        %v2090 = vperm.slane %v2088, 0
        %v2091 = vperm.slane %v2088, 1
        %v2094 = vmul.f32 %v2062, %v2090
        %v2095 = vmul.f32 %v2061, %v2091
        %s2096 = scalar_lea.vmem %s1, 112
        %v2097 = vld [vmem:[%s2096] sm:$0xf]
        %v2099 = vsel %vm244, %v2097, 0
        %v2102 = vsel %vm248, %v2094, 0
        %v2105 = vsel %vm248, %v2095, 0
        %2107 = vmatpush.msra.mxu0 0.0
        %2108 = vmatpush.msra.mxu0 0.0
        %2109 = vmatpush.msra.mxu0 0.0
        %2110 = vmatpush.msra.mxu0 0.0
        %2111 = vmatpush.msra.mxu0 0.0
        %2112 = vmatpush.msra.mxu0 0.0
        %2113 = vmatpush.msra.mxu0 0.0
        %2114 = vmatpush.msra.mxu0 0.0
        %2115 = vmatpush.msra.mxu0 0.0
        %2116 = vmatpush.msra.mxu0 0.0
        %2117 = vmatpush.msra.mxu0 0.0
        %2118 = vmatpush.msra.mxu0 0.0
        %2119 = vmatpush.msra.mxu0 0.0
        %2120 = vmatpush.msra.mxu0 0.0
        %2121 = vmatpush.msra.mxu0 0.0
        %2122 = vmatpush.msra.mxu0 %v2102
        %2123 = vmatmul.f32.gmra.mxu0 %v2099
        %v2124 = vpop.f32.mrf.mxu0
        %v2125 = vadd.f32 0.0, %v2124
        %2126 = vdwg.mxu0
        %2127 = vmatpush.msra.mxu0 0.0
        %2128 = vmatpush.msra.mxu0 0.0
        %2129 = vmatpush.msra.mxu0 0.0
        %2130 = vmatpush.msra.mxu0 0.0
        %2131 = vmatpush.msra.mxu0 0.0
        %2132 = vmatpush.msra.mxu0 0.0
        %2133 = vmatpush.msra.mxu0 0.0
        %2134 = vmatpush.msra.mxu0 0.0
        %2135 = vmatpush.msra.mxu0 0.0
        %2136 = vmatpush.msra.mxu0 0.0
        %2137 = vmatpush.msra.mxu0 0.0
        %2138 = vmatpush.msra.mxu0 0.0
        %2139 = vmatpush.msra.mxu0 0.0
        %2140 = vmatpush.msra.mxu0 0.0
        %2141 = vmatpush.msra.mxu0 0.0
        %2142 = vmatpush.msra.mxu0 %v2105
        %2143 = vmatmul.f32.gmra.mxu0 %v2099
        %v2144 = vpop.f32.mrf.mxu0
        %v2145 = vadd.f32 0.0, %v2144
        %2146 = vdwg.mxu0
        %v2148 = vsel %vm244, %v2086, 0
        %v2151 = vsel %vm248, %v2083, 0
        %v2154 = vsel %vm248, %v2084, 0
        %2156 = vmatpush.msra.mxu0 0.0
        %2157 = vmatpush.msra.mxu0 0.0
        %2158 = vmatpush.msra.mxu0 0.0
        %2159 = vmatpush.msra.mxu0 0.0
        %2160 = vmatpush.msra.mxu0 0.0
        %2161 = vmatpush.msra.mxu0 0.0
        %2162 = vmatpush.msra.mxu0 0.0
        %2163 = vmatpush.msra.mxu0 0.0
        %2164 = vmatpush.msra.mxu0 0.0
        %2165 = vmatpush.msra.mxu0 0.0
        %2166 = vmatpush.msra.mxu0 0.0
        %2167 = vmatpush.msra.mxu0 0.0
        %2168 = vmatpush.msra.mxu0 0.0
        %2169 = vmatpush.msra.mxu0 0.0
        %2170 = vmatpush.msra.mxu0 0.0
        %2171 = vmatpush.msra.mxu0 %v2151
        %2172 = vmatmul.f32.gmra.mxu0 %v2148
        %v2173 = vpop.f32.mrf.mxu0
        %v2174 = vadd.f32 %v2125, %v2173
        %2175 = vdwg.mxu0
        %2176 = vmatpush.msra.mxu0 0.0
        %2177 = vmatpush.msra.mxu0 0.0
        %2178 = vmatpush.msra.mxu0 0.0
        %2179 = vmatpush.msra.mxu0 0.0
        %2180 = vmatpush.msra.mxu0 0.0
        %2181 = vmatpush.msra.mxu0 0.0
        %2182 = vmatpush.msra.mxu0 0.0
        %2183 = vmatpush.msra.mxu0 0.0
        %2184 = vmatpush.msra.mxu0 0.0
        %2185 = vmatpush.msra.mxu0 0.0
        %2186 = vmatpush.msra.mxu0 0.0
        %2187 = vmatpush.msra.mxu0 0.0
        %2188 = vmatpush.msra.mxu0 0.0
        %2189 = vmatpush.msra.mxu0 0.0
        %2190 = vmatpush.msra.mxu0 0.0
        %2191 = vmatpush.msra.mxu0 %v2154
        %2192 = vmatmul.f32.gmra.mxu0 %v2148
        %v2193 = vpop.f32.mrf.mxu0
        %v2194 = vadd.f32 %v2145, %v2193
        %2195 = vdwg.mxu0
        %2196 = vrot.lane.b32.xlu0 %v2061, 120
        %v2197 = vpop.permute.xlu0 %2196
        %2198 = vrot.lane.b32.xlu0 %v2062, 120
        %v2199 = vpop.permute.xlu0 %2198
        %vm2200 = vcmp.lt.s32.totalorder %v208, 120
        %v2201 = vsel %vm2200, %v2197, %v2199
        %v2202 = vsel %vm2200, %v2199, %v2197
        %s2203 = scalar_lea.vmem %s3, 58
        %v2204 = vld [vmem:[%s2203] sm:$0x3]
        %v2206 = vperm.slane %v2204, 0
        %v2207 = vperm.slane %v2204, 1
        %v2210 = vmul.f32 %v2202, %v2206
        %v2211 = vmul.f32 %v2201, %v2207
        %s2212 = scalar_lea.vmem %s1, 116
        %v2213 = vld [vmem:[%s2212] sm:$0xf]
        %v2215 = vsel %vm244, %v2213, 0
        %v2218 = vsel %vm248, %v2210, 0
        %v2221 = vsel %vm248, %v2211, 0
        %2223 = vmatpush.msra.mxu0 0.0
        %2224 = vmatpush.msra.mxu0 0.0
        %2225 = vmatpush.msra.mxu0 0.0
        %2226 = vmatpush.msra.mxu0 0.0
        %2227 = vmatpush.msra.mxu0 0.0
        %2228 = vmatpush.msra.mxu0 0.0
        %2229 = vmatpush.msra.mxu0 0.0
        %2230 = vmatpush.msra.mxu0 0.0
        %2231 = vmatpush.msra.mxu0 0.0
        %2232 = vmatpush.msra.mxu0 0.0
        %2233 = vmatpush.msra.mxu0 0.0
        %2234 = vmatpush.msra.mxu0 0.0
        %2235 = vmatpush.msra.mxu0 0.0
        %2236 = vmatpush.msra.mxu0 0.0
        %2237 = vmatpush.msra.mxu0 0.0
        %2238 = vmatpush.msra.mxu0 %v2218
        %2239 = vmatmul.f32.gmra.mxu0 %v2215
        %v2240 = vpop.f32.mrf.mxu0
        %v2241 = vadd.f32 0.0, %v2240
        %2242 = vdwg.mxu0
        %2243 = vmatpush.msra.mxu0 0.0
        %2244 = vmatpush.msra.mxu0 0.0
        %2245 = vmatpush.msra.mxu0 0.0
        %2246 = vmatpush.msra.mxu0 0.0
        %2247 = vmatpush.msra.mxu0 0.0
        %2248 = vmatpush.msra.mxu0 0.0
        %2249 = vmatpush.msra.mxu0 0.0
        %2250 = vmatpush.msra.mxu0 0.0
        %2251 = vmatpush.msra.mxu0 0.0
        %2252 = vmatpush.msra.mxu0 0.0
        %2253 = vmatpush.msra.mxu0 0.0
        %2254 = vmatpush.msra.mxu0 0.0
        %2255 = vmatpush.msra.mxu0 0.0
        %2256 = vmatpush.msra.mxu0 0.0
        %2257 = vmatpush.msra.mxu0 0.0
        %2258 = vmatpush.msra.mxu0 %v2221
        %2259 = vmatmul.f32.gmra.mxu0 %v2215
        %v2260 = vpop.f32.mrf.mxu0
        %v2261 = vadd.f32 0.0, %v2260
        %2262 = vdwg.mxu0
        %v2263 = vadd.f32 %v2174, %v2241
        %v2264 = vadd.f32 %v2194, %v2261
        %s2265 = scalar_lea.vmem %s3, 60
        %v2266 = vld [vmem:[%s2265] sm:$0x3]
        %v2268 = vperm.slane %v2266, 0
        %v2269 = vperm.slane %v2266, 1
        %v2272 = vmul.f32 %v2075, %v2268
        %v2273 = vmul.f32 %v2074, %v2269
        %s2274 = scalar_lea.vmem %s1, 120
        %v2275 = vld [vmem:[%s2274] sm:$0xf]
        %v2277 = vsel %vm244, %v2275, 0
        %v2280 = vsel %vm248, %v2272, 0
        %v2283 = vsel %vm248, %v2273, 0
        %2285 = vmatpush.msra.mxu0 0.0
        %2286 = vmatpush.msra.mxu0 0.0
        %2287 = vmatpush.msra.mxu0 0.0
        %2288 = vmatpush.msra.mxu0 0.0
        %2289 = vmatpush.msra.mxu0 0.0
        %2290 = vmatpush.msra.mxu0 0.0
        %2291 = vmatpush.msra.mxu0 0.0
        %2292 = vmatpush.msra.mxu0 0.0
        %2293 = vmatpush.msra.mxu0 0.0
        %2294 = vmatpush.msra.mxu0 0.0
        %2295 = vmatpush.msra.mxu0 0.0
        %2296 = vmatpush.msra.mxu0 0.0
        %2297 = vmatpush.msra.mxu0 0.0
        %2298 = vmatpush.msra.mxu0 0.0
        %2299 = vmatpush.msra.mxu0 0.0
        %2300 = vmatpush.msra.mxu0 %v2280
        %2301 = vmatmul.f32.gmra.mxu0 %v2277
        %v2302 = vpop.f32.mrf.mxu0
        %v2303 = vadd.f32 0.0, %v2302
        %2304 = vdwg.mxu0
        %2305 = vmatpush.msra.mxu0 0.0
        %2306 = vmatpush.msra.mxu0 0.0
        %2307 = vmatpush.msra.mxu0 0.0
        %2308 = vmatpush.msra.mxu0 0.0
        %2309 = vmatpush.msra.mxu0 0.0
        %2310 = vmatpush.msra.mxu0 0.0
        %2311 = vmatpush.msra.mxu0 0.0
        %2312 = vmatpush.msra.mxu0 0.0
        %2313 = vmatpush.msra.mxu0 0.0
        %2314 = vmatpush.msra.mxu0 0.0
        %2315 = vmatpush.msra.mxu0 0.0
        %2316 = vmatpush.msra.mxu0 0.0
        %2317 = vmatpush.msra.mxu0 0.0
        %2318 = vmatpush.msra.mxu0 0.0
        %2319 = vmatpush.msra.mxu0 0.0
        %2320 = vmatpush.msra.mxu0 %v2283
        %2321 = vmatmul.f32.gmra.mxu0 %v2277
        %v2322 = vpop.f32.mrf.mxu0
        %v2323 = vadd.f32 0.0, %v2322
        %2324 = vdwg.mxu0
        %v2325 = vadd.f32 %v2263, %v2303
        %v2326 = vadd.f32 %v2264, %v2323
        %s2327 = scalar_lea.vmem %s1, 124
        %v2328 = vld [vmem:[%s2327] sm:$0xf]
        %v2330 = vsel %vm244, %v2328, 0
        %v2332 = vsel %vm248, %v2061, 0
        %v2334 = vsel %vm248, %v2062, 0
        %2336 = vmatpush.msra.mxu0 0.0
        %2337 = vmatpush.msra.mxu0 0.0
        %2338 = vmatpush.msra.mxu0 0.0
        %2339 = vmatpush.msra.mxu0 0.0
        %2340 = vmatpush.msra.mxu0 0.0
        %2341 = vmatpush.msra.mxu0 0.0
        %2342 = vmatpush.msra.mxu0 0.0
        %2343 = vmatpush.msra.mxu0 0.0
        %2344 = vmatpush.msra.mxu0 0.0
        %2345 = vmatpush.msra.mxu0 0.0
        %2346 = vmatpush.msra.mxu0 0.0
        %2347 = vmatpush.msra.mxu0 0.0
        %2348 = vmatpush.msra.mxu0 0.0
        %2349 = vmatpush.msra.mxu0 0.0
        %2350 = vmatpush.msra.mxu0 0.0
        %2351 = vmatpush.msra.mxu0 %v2332
        %2352 = vmatmul.f32.gmra.mxu0 %v2330
        %v2353 = vpop.f32.mrf.mxu0
        %v2354 = vadd.f32 0.0, %v2353
        %2355 = vdwg.mxu0
        %2356 = vmatpush.msra.mxu0 0.0
        %2357 = vmatpush.msra.mxu0 0.0
        %2358 = vmatpush.msra.mxu0 0.0
        %2359 = vmatpush.msra.mxu0 0.0
        %2360 = vmatpush.msra.mxu0 0.0
        %2361 = vmatpush.msra.mxu0 0.0
        %2362 = vmatpush.msra.mxu0 0.0
        %2363 = vmatpush.msra.mxu0 0.0
        %2364 = vmatpush.msra.mxu0 0.0
        %2365 = vmatpush.msra.mxu0 0.0
        %2366 = vmatpush.msra.mxu0 0.0
        %2367 = vmatpush.msra.mxu0 0.0
        %2368 = vmatpush.msra.mxu0 0.0
        %2369 = vmatpush.msra.mxu0 0.0
        %2370 = vmatpush.msra.mxu0 0.0
        %2371 = vmatpush.msra.mxu0 %v2334
        %2372 = vmatmul.f32.gmra.mxu0 %v2330
        %v2373 = vpop.f32.mrf.mxu0
        %v2374 = vadd.f32 0.0, %v2373
        %2375 = vdwg.mxu0
        %v2376 = vadd.f32 %v2325, %v2354
        %v2377 = vadd.f32 %v2326, %v2374
        %s2378 = scalar_lea.vmem %s3, 64
        %v2379 = vld [vmem:[%s2378] sm:$0x3]
        %v2381 = vperm.slane %v2379, 0
        %v2382 = vperm.slane %v2379, 1
        %v2385 = vmul.f32 %v2201, %v2381
        %v2386 = vmul.f32 %v2202, %v2382
        %s2387 = scalar_lea.vmem %s1, 128
        %v2388 = vld [vmem:[%s2387] sm:$0xf]
        %v2390 = vsel %vm244, %v2388, 0
        %v2393 = vsel %vm248, %v2385, 0
        %v2396 = vsel %vm248, %v2386, 0
        %2398 = vmatpush.msra.mxu0 0.0
        %2399 = vmatpush.msra.mxu0 0.0
        %2400 = vmatpush.msra.mxu0 0.0
        %2401 = vmatpush.msra.mxu0 0.0
        %2402 = vmatpush.msra.mxu0 0.0
        %2403 = vmatpush.msra.mxu0 0.0
        %2404 = vmatpush.msra.mxu0 0.0
        %2405 = vmatpush.msra.mxu0 0.0
        %2406 = vmatpush.msra.mxu0 0.0
        %2407 = vmatpush.msra.mxu0 0.0
        %2408 = vmatpush.msra.mxu0 0.0
        %2409 = vmatpush.msra.mxu0 0.0
        %2410 = vmatpush.msra.mxu0 0.0
        %2411 = vmatpush.msra.mxu0 0.0
        %2412 = vmatpush.msra.mxu0 0.0
        %2413 = vmatpush.msra.mxu0 %v2393
        %2414 = vmatmul.f32.gmra.mxu0 %v2390
        %v2415 = vpop.f32.mrf.mxu0
        %v2416 = vadd.f32 0.0, %v2415
        %2417 = vdwg.mxu0
        %2418 = vmatpush.msra.mxu0 0.0
        %2419 = vmatpush.msra.mxu0 0.0
        %2420 = vmatpush.msra.mxu0 0.0
        %2421 = vmatpush.msra.mxu0 0.0
        %2422 = vmatpush.msra.mxu0 0.0
        %2423 = vmatpush.msra.mxu0 0.0
        %2424 = vmatpush.msra.mxu0 0.0
        %2425 = vmatpush.msra.mxu0 0.0
        %2426 = vmatpush.msra.mxu0 0.0
        %2427 = vmatpush.msra.mxu0 0.0
        %2428 = vmatpush.msra.mxu0 0.0
        %2429 = vmatpush.msra.mxu0 0.0
        %2430 = vmatpush.msra.mxu0 0.0
        %2431 = vmatpush.msra.mxu0 0.0
        %2432 = vmatpush.msra.mxu0 0.0
        %2433 = vmatpush.msra.mxu0 %v2396
        %2434 = vmatmul.f32.gmra.mxu0 %v2390
        %v2435 = vpop.f32.mrf.mxu0
        %v2436 = vadd.f32 0.0, %v2435
        %2437 = vdwg.mxu0
        %v2438 = vadd.f32 %v2376, %v2416
        %v2439 = vadd.f32 %v2377, %v2436
        %s2440 = scalar_lea.vmem %s3, 66
        %v2441 = vld [vmem:[%s2440] sm:$0x3]
        %v2443 = vperm.slane %v2441, 0
        %v2444 = vperm.slane %v2441, 1
        %v2447 = vmul.f32 %v2074, %v2443
        %v2448 = vmul.f32 %v2075, %v2444
        %s2449 = scalar_lea.vmem %s1, 132
        %v2450 = vld [vmem:[%s2449] sm:$0xf]
        %v2452 = vsel %vm244, %v2450, 0
        %v2455 = vsel %vm248, %v2447, 0
        %v2458 = vsel %vm248, %v2448, 0
        %2460 = vmatpush.msra.mxu0 0.0
        %2461 = vmatpush.msra.mxu0 0.0
        %2462 = vmatpush.msra.mxu0 0.0
        %2463 = vmatpush.msra.mxu0 0.0
        %2464 = vmatpush.msra.mxu0 0.0
        %2465 = vmatpush.msra.mxu0 0.0
        %2466 = vmatpush.msra.mxu0 0.0
        %2467 = vmatpush.msra.mxu0 0.0
        %2468 = vmatpush.msra.mxu0 0.0
        %2469 = vmatpush.msra.mxu0 0.0
        %2470 = vmatpush.msra.mxu0 0.0
        %2471 = vmatpush.msra.mxu0 0.0
        %2472 = vmatpush.msra.mxu0 0.0
        %2473 = vmatpush.msra.mxu0 0.0
        %2474 = vmatpush.msra.mxu0 0.0
        %2475 = vmatpush.msra.mxu0 %v2455
        %2476 = vmatmul.f32.gmra.mxu0 %v2452
        %v2477 = vpop.f32.mrf.mxu0
        %v2478 = vadd.f32 0.0, %v2477
        %2479 = vdwg.mxu0
        %2480 = vmatpush.msra.mxu0 0.0
        %2481 = vmatpush.msra.mxu0 0.0
        %2482 = vmatpush.msra.mxu0 0.0
        %2483 = vmatpush.msra.mxu0 0.0
        %2484 = vmatpush.msra.mxu0 0.0
        %2485 = vmatpush.msra.mxu0 0.0
        %2486 = vmatpush.msra.mxu0 0.0
        %2487 = vmatpush.msra.mxu0 0.0
        %2488 = vmatpush.msra.mxu0 0.0
        %2489 = vmatpush.msra.mxu0 0.0
        %2490 = vmatpush.msra.mxu0 0.0
        %2491 = vmatpush.msra.mxu0 0.0
        %2492 = vmatpush.msra.mxu0 0.0
        %2493 = vmatpush.msra.mxu0 0.0
        %2494 = vmatpush.msra.mxu0 0.0
        %2495 = vmatpush.msra.mxu0 %v2458
        %2496 = vmatmul.f32.gmra.mxu0 %v2452
        %v2497 = vpop.f32.mrf.mxu0
        %v2498 = vadd.f32 0.0, %v2497
        %2499 = vdwg.mxu0
        %v2500 = vadd.f32 %v2438, %v2478
        %v2501 = vadd.f32 %v2439, %v2498
        %s2502 = scalar_lea.vmem %s3, 68
        %v2503 = vld [vmem:[%s2502] sm:$0x3]
        %v2505 = vperm.slane %v2503, 0
        %v2506 = vperm.slane %v2503, 1
        %v2509 = vmul.f32 %v2062, %v2505
        %v2510 = vmul.f32 %v2061, %v2506
        %s2511 = scalar_lea.vmem %s1, 136
        %v2512 = vld [vmem:[%s2511] sm:$0xf]
        %v2514 = vsel %vm244, %v2512, 0
        %v2517 = vsel %vm248, %v2509, 0
        %v2520 = vsel %vm248, %v2510, 0
        %2522 = vmatpush.msra.mxu0 0.0
        %2523 = vmatpush.msra.mxu0 0.0
        %2524 = vmatpush.msra.mxu0 0.0
        %2525 = vmatpush.msra.mxu0 0.0
        %2526 = vmatpush.msra.mxu0 0.0
        %2527 = vmatpush.msra.mxu0 0.0
        %2528 = vmatpush.msra.mxu0 0.0
        %2529 = vmatpush.msra.mxu0 0.0
        %2530 = vmatpush.msra.mxu0 0.0
        %2531 = vmatpush.msra.mxu0 0.0
        %2532 = vmatpush.msra.mxu0 0.0
        %2533 = vmatpush.msra.mxu0 0.0
        %2534 = vmatpush.msra.mxu0 0.0
        %2535 = vmatpush.msra.mxu0 0.0
        %2536 = vmatpush.msra.mxu0 0.0
        %2537 = vmatpush.msra.mxu0 %v2517
        %2538 = vmatmul.f32.gmra.mxu0 %v2514
        %v2539 = vpop.f32.mrf.mxu0
        %v2540 = vadd.f32 0.0, %v2539
        %2541 = vdwg.mxu0
        %2542 = vmatpush.msra.mxu0 0.0
        %2543 = vmatpush.msra.mxu0 0.0
        %2544 = vmatpush.msra.mxu0 0.0
        %2545 = vmatpush.msra.mxu0 0.0
        %2546 = vmatpush.msra.mxu0 0.0
        %2547 = vmatpush.msra.mxu0 0.0
        %2548 = vmatpush.msra.mxu0 0.0
        %2549 = vmatpush.msra.mxu0 0.0
        %2550 = vmatpush.msra.mxu0 0.0
        %2551 = vmatpush.msra.mxu0 0.0
        %2552 = vmatpush.msra.mxu0 0.0
        %2553 = vmatpush.msra.mxu0 0.0
        %2554 = vmatpush.msra.mxu0 0.0
        %2555 = vmatpush.msra.mxu0 0.0
        %2556 = vmatpush.msra.mxu0 0.0
        %2557 = vmatpush.msra.mxu0 %v2520
        %2558 = vmatmul.f32.gmra.mxu0 %v2514
        %v2559 = vpop.f32.mrf.mxu0
        %v2560 = vadd.f32 0.0, %v2559
        %2561 = vdwg.mxu0
        %v2562 = vadd.f32 %v2500, %v2540
        %v2563 = vadd.f32 %v2501, %v2560
        %s2564 = scalar_lea.vmem %s3, 70
        %v2565 = vld [vmem:[%s2564] sm:$0x3]
        %v2567 = vperm.slane %v2565, 0
        %v2568 = vperm.slane %v2565, 1
        %v2571 = vmul.f32 %v2202, %v2567
        %v2572 = vmul.f32 %v2201, %v2568
        %s2573 = scalar_lea.vmem %s1, 140
        %v2574 = vld [vmem:[%s2573] sm:$0xf]
        %v2576 = vsel %vm244, %v2574, 0
        %v2579 = vsel %vm248, %v2571, 0
        %v2582 = vsel %vm248, %v2572, 0
        %2584 = vmatpush.msra.mxu0 0.0
        %2585 = vmatpush.msra.mxu0 0.0
        %2586 = vmatpush.msra.mxu0 0.0
        %2587 = vmatpush.msra.mxu0 0.0
        %2588 = vmatpush.msra.mxu0 0.0
        %2589 = vmatpush.msra.mxu0 0.0
        %2590 = vmatpush.msra.mxu0 0.0
        %2591 = vmatpush.msra.mxu0 0.0
        %2592 = vmatpush.msra.mxu0 0.0
        %2593 = vmatpush.msra.mxu0 0.0
        %2594 = vmatpush.msra.mxu0 0.0
        %2595 = vmatpush.msra.mxu0 0.0
        %2596 = vmatpush.msra.mxu0 0.0
        %2597 = vmatpush.msra.mxu0 0.0
        %2598 = vmatpush.msra.mxu0 0.0
        %2599 = vmatpush.msra.mxu0 %v2579
        %2600 = vmatmul.f32.gmra.mxu0 %v2576
        %v2601 = vpop.f32.mrf.mxu0
        %v2602 = vadd.f32 0.0, %v2601
        %2603 = vdwg.mxu0
        %2604 = vmatpush.msra.mxu0 0.0
        %2605 = vmatpush.msra.mxu0 0.0
        %2606 = vmatpush.msra.mxu0 0.0
        %2607 = vmatpush.msra.mxu0 0.0
        %2608 = vmatpush.msra.mxu0 0.0
        %2609 = vmatpush.msra.mxu0 0.0
        %2610 = vmatpush.msra.mxu0 0.0
        %2611 = vmatpush.msra.mxu0 0.0
        %2612 = vmatpush.msra.mxu0 0.0
        %2613 = vmatpush.msra.mxu0 0.0
        %2614 = vmatpush.msra.mxu0 0.0
        %2615 = vmatpush.msra.mxu0 0.0
        %2616 = vmatpush.msra.mxu0 0.0
        %2617 = vmatpush.msra.mxu0 0.0
        %2618 = vmatpush.msra.mxu0 0.0
        %2619 = vmatpush.msra.mxu0 %v2582
        %2620 = vmatmul.f32.gmra.mxu0 %v2576
        %v2621 = vpop.f32.mrf.mxu0
        %v2622 = vadd.f32 0.0, %v2621
        %2623 = vdwg.mxu0
        %v2624 = vadd.f32 %v2562, %v2602
        %v2625 = vadd.f32 %v2563, %v2622
        %s2626 = scalar_lea.vmem %s2, 12
        %v2627 = vld [vmem:[%s2626] sm:$0xf]
        %2629 = vset.pattern.permute.xlu0 0
        %2630 = vperm.xlu0 %2629, %v2627
        %v2631 = vpop.permute.xlu0 %2630
        %v2633 = vadd.f32 %v2624, %v2631
        %v2634 = vadd.f32 %v2625, %v2631
        %v2635 = vmax.f32 %v2633, 0.0
        %v2636 = vmax.f32 %v2634, 0.0
        %v2639 = vrot.slane %v2636, 4
        %v2640 = vsel %vm248, %v2635, %v2639
        %v2642 = vadd.f32 %v2068, %v2640
        %2643 = vst [vmem:[%s190] sm:$0xff] %v2642
        %s2644 = sand.u32 %s115, 1
        %s2645 = scalar_lea.sflag [#allocation3], %s2644
        %s2646 = sand.u32 %s115, 1
        %s2647 = smul.addr %s2646, 8
        %s2648 = scalar_lea.vmem [#allocation2], %s2647
        // Predicated region
        $region37: #{tpu_custom_call.1} parent=35 // pred_check
          %p2649 = pneg %p125
        $region38: #{tpu_custom_call.1} parent=35 // pred_check_branch
          %2651 = sbr.rel (%p2649) target = $region40
        $region39: #{tpu_custom_call.1} parent=35 // pred_region
          %2653 = vsyncadd %s2645, 0
          %s2654 = smul.addr %s18, 2
          %s2655 = smul.addr %s2654, 4
          %s2656 = scalar_lea.hbm %s4, %s2655
          %s2658 = sshll.u32 %s2648, 4
          %s2659 = int_to_ptr.vmem [resolvable:$true] %s2658
          %s2660 = sshll.u32 %s2656, 4
          %s2661 = int_to_ptr.hbm [resolvable:$true] %s2660
          %2663 = dma.vmem_to_hbm [thread:$0]  %s2659, 128, %s2661, %s2645
        $region40: #{tpu_custom_call.1} parent=35 // pred_fallthru
          _
      $region36: #{tpu_custom_call.1} parent=5 // pred_fallthru
        _
      %p2664 = scmp.le.s32.totalorder 2, %s13
      // Predicated region
      $region41: #{tpu_custom_call.1} parent=5 // pred_check
        %p2665 = pneg %p2664
      $region42: #{tpu_custom_call.1} parent=5 // pred_check_branch
        %2667 = sbr.rel (%p2665) target = $region44
      $region43: #{tpu_custom_call.1} parent=5 // pred_region
        %s2668 = ssub.s32 %s13, 2
        // Predicated region
        $region45: #{tpu_custom_call.1} parent=43 // pred_check
          %p2669 = pneg %p131
        $region46: #{tpu_custom_call.1} parent=43 // pred_check_branch
          %2671 = sbr.rel (%p2669) target = $region48
        $region47: #{tpu_custom_call.1} parent=43 // pred_region
          %s2672 = sand.u32 %s116, 1
          %s2673 = scalar_lea.sflag [#allocation3], %s2672
          %s2674 = sand.u32 %s116, 1
          %s2675 = smul.addr %s2674, 8
          %s2676 = scalar_lea.vmem [#allocation2], %s2675
          %2678 = dma.done %s2673, 128
        $region48: #{tpu_custom_call.1} parent=43 // pred_fallthru
          _
      $region44: #{tpu_custom_call.1} parent=5 // pred_fallthru
        _
    $region6: #{tpu_custom_call.1} parent=1 // loop_footer
      %s17 = sadd.s32 1, %s13
    $region7: #{tpu_custom_call.1} parent=1 // loop_footer_branch
      %12 = sbr.rel target = $region3
    $region8: #{tpu_custom_call.1} parent=1 // loop_exit
      _
    %2679 = vsyncpa [#allocation3], 1
    %s2680 = scalar_lea.sflag [#allocation3], 1
    %2681 = vsyncpa %s2680, 1

</llo_original>
